<compile_context>
chip_gen: v5e
topology: v5e:2x2
jax: 0.10.0
libtpu: 0.0.40
codegen_flags: <defaults>
</compile_context>

<pallas_src>
import functools
import inspect
import math

import jax
import jax.numpy as jnp
from jax.experimental import pallas as pl
from jax.experimental.pallas import tpu as pltpu


def _round_up(x, m):
    return (x + m - 1) // m * m


_HAS_PIPELINE_MODE = (
    hasattr(pl, "Buffered")
    and "pipeline_mode" in inspect.signature(pl.BlockSpec).parameters
)


def _weight_spec(shape, single_buffer=True):
    """Full-array block with a constant index_map (grid-invariant -> DMA'd once)."""
    ndim = len(shape)
    imap = lambda b, _n=ndim: (0,) * _n
    if single_buffer and _HAS_PIPELINE_MODE:
        # Grid-invariant block: one VMEM buffer instead of the default two.
        return pl.BlockSpec(shape, imap, pipeline_mode=pl.Buffered(1))
    return pl.BlockSpec(shape, imap)


# -----------------------------------------------------------------------------
# Fused decoder-layer kernel (one grid step == one block of `bb` batch elements)
# -----------------------------------------------------------------------------
def _decoder_layer_kernel(*refs, nhead, d_model, hd_pad, d_pad, bb, s_tgt, s_mem,
                          has_qpos, has_pos, compute_dtype):
    it = iter(refs)
    tgt_ref = next(it)                       # (bb, St, Dp) f32
    mem_ref = next(it)                       # (bb, Sm, Dp) f32
    qpos_ref = next(it) if has_qpos else None
    pos_ref = next(it) if has_pos else None
    sa_wq, sa_wk, sa_wv, sa_wo, sa_b = (next(it) for _ in range(5))
    ca_wq, ca_wk, ca_wv, ca_wo, ca_b = (next(it) for _ in range(5))
    ln_ref = next(it)                        # (8, Dp) f32 gamma/beta pack
    w1_ref, b1_ref, w2_ref, b2_ref = (next(it) for _ in range(4))
    out_ref = next(it)                       # (bb, St, Dp)

    mt = bb * s_tgt
    mm = bb * s_mem

    # Flatten the batch block: projections / FFN see bb*seq MXU rows.
    tgt = tgt_ref[...].reshape(mt, d_pad)
    mem = mem_ref[...].reshape(mm, d_pad)

    ln = ln_ref[...]                         # (8, Dp), resident f32
    lane = jax.lax.broadcasted_iota(jnp.int32, (1, d_pad), 1)
    dmask = (lane < d_model).astype(jnp.float32)   # LN stats over real lanes only
    inv_d = 1.0 / d_model

    def mm_bias(x, w_ref, b):
        # bf16 (or f32) operands, f32 accumulation on the MXU.
        return (jnp.dot(x.astype(compute_dtype), w_ref[...],
                        preferred_element_type=jnp.float32) + b)

    def add_ln(x, y, g, b):
        # residual + LayerNorm fused; pad lanes stay exactly zero.
        z = x + y
        mean = jnp.sum(z, axis=-1, keepdims=True) * inv_d
        zc = (z - mean) * dmask
        var = jnp.sum(zc * zc, axis=-1, keepdims=True) * inv_d
        return zc * jax.lax.rsqrt(var + 1e-5) * g + b

    def attention(xq, xk, xv, wq, wk, wv, wo, b_ref, sq, sk):
        b_all = b_ref[...]                   # (4, Dp): q,k,v,o biases (f32)
        q = mm_bias(xq, wq, b_all[0:1])      # 1/sqrt(hd) pre-folded into wq/bq
        k = mm_bias(xk, wk, b_all[1:2])
        v = mm_bias(xv, wv, b_all[2:3])
        # Per-head padded layout: within-head lanes >= hd are exactly zero,
        # so contracting over hd_pad equals contracting over the real hd.
        qh = q.reshape(bb, sq, nhead, hd_pad)
        kh = k.reshape(bb, sk, nhead, hd_pad)
        vh = v.reshape(bb, sk, nhead, hd_pad)
        outs = []
        for i in range(bb):                  # static unroll: softmax per example
            s = jnp.einsum('qhd,khd->hqk',
                           qh[i].astype(compute_dtype), kh[i].astype(compute_dtype),
                           preferred_element_type=jnp.float32)  # (H, sq, sk) f32
            m = jnp.max(s, axis=-1, keepdims=True)              # f32 softmax stats
            p = jnp.exp(s - m)
            p = p * pl.reciprocal(jnp.sum(p, axis=-1, keepdims=True), approx=True)
            o = jnp.einsum('hqk,khd->qhd',
                           p.astype(compute_dtype), vh[i].astype(compute_dtype),
                           preferred_element_type=jnp.float32)
            outs.append(o.reshape(sq, d_pad))
        o_all = outs[0] if bb == 1 else jnp.concatenate(outs, axis=0)
        return mm_bias(o_all, wo, b_all[3:4])   # output proj on flattened rows

    # --- self-attention on tgt AND memory with SHARED self_attn weights ------
    tgt2 = attention(tgt, tgt, tgt, sa_wq, sa_wk, sa_wv, sa_wo, sa_b, s_tgt, s_tgt)
    mem2 = attention(mem, mem, mem, sa_wq, sa_wk, sa_wv, sa_wo, sa_b, s_mem, s_mem)
    tgt_n = add_ln(tgt, tgt2, ln[0:1], ln[1:2])      # tgt + dropout1(tgt2); norm_tgt
    mem_n = add_ln(mem, mem2, ln[2:3], ln[3:4])      # memory + dropout1; norm_memory

    # --- cross-attention (optional positional embeds fused in-kernel) --------
    q_in = tgt_n + qpos_ref[...].reshape(mt, d_pad) if has_qpos else tgt_n
    k_in = mem_n + pos_ref[...].reshape(mm, d_pad) if has_pos else mem_n
    tgt2 = attention(q_in, k_in, mem_n, ca_wq, ca_wk, ca_wv, ca_wo, ca_b, s_tgt, s_mem)
    tgt_n = add_ln(tgt_n, tgt2, ln[4:5], ln[5:6])    # norm2

    # --- feed-forward: linear2(relu(linear1(x))) ------------------------------
    h = jnp.maximum(mm_bias(tgt_n, w1_ref, b1_ref[...]), 0.0)
    y = mm_bias(h, w2_ref, b2_ref[...])
    out = add_ln(tgt_n, y, ln[6:7], ln[7:8])         # norm3

    out_ref[...] = out.reshape(bb, s_tgt, d_pad).astype(out_ref.dtype)


# -----------------------------------------------------------------------------
# One-time weight preparation (hoisted out of the per-call hot path)
# -----------------------------------------------------------------------------
def prepare_params(params, d_model, nhead, dim_ff, compute_dtype=jnp.bfloat16):
    assert d_model % nhead == 0
    hd = d_model // nhead
    d_pad0 = _round_up(d_model, 128)
    if d_pad0 % nhead == 0:
        hd_pad = d_pad0 // nhead
    else:  # e.g. d_model=192, nhead=6: lane-align each head independently
        hd_pad = _round_up(hd, 128)
    d_pad = nhead * hd_pad
    f_pad = _round_up(dim_ff, 128)

    def pad_in_proj(w, b, scale=1.0):
        # (D, D) -> (Dp, Dp); output features padded PER HEAD so the head
        # layout in padded space is h*hd_pad + j with j < hd real.
        w3 = (w * scale).reshape(d_model, nhead, hd)
        w3 = jnp.pad(w3, ((0, d_pad - d_model), (0, 0), (0, hd_pad - hd)))
        b2 = jnp.pad((b * scale).reshape(nhead, hd), ((0, 0), (0, hd_pad - hd)))
        return w3.reshape(d_pad, d_pad).astype(compute_dtype), b2.reshape(d_pad)

    def pad_out_proj(w, b):
        w3 = w.reshape(nhead, hd, d_model)
        w3 = jnp.pad(w3, ((0, 0), (0, hd_pad - hd), (0, d_pad - d_model)))
        b1 = jnp.pad(b.reshape(d_model), (0, d_pad - d_model))
        return w3.reshape(d_pad, d_pad).astype(compute_dtype), b1

    def pad_vec(v):
        return jnp.pad(v.reshape(-1), (0, d_pad - d_model))

    scale = 1.0 / math.sqrt(hd)              # folded into wq/bq (matches PyTorch)

    def attn_pack(p):
        wq, bq = pad_in_proj(p['wq'], p['bq'], scale)
        wk, bk = pad_in_proj(p['wk'], p['bk'])
        wv, bv = pad_in_proj(p['wv'], p['bv'])
        wo, bo = pad_out_proj(p['wo'], p['bo'])
        bias = jnp.stack([bq, bk, bv, bo], axis=0)      # (4, Dp) f32
        return [wq, wk, wv, wo, bias]

    ln_pack = jnp.stack(
        [pad_vec(params['norm_tgt']['g']), pad_vec(params['norm_tgt']['b']),
         pad_vec(params['norm_memory']['g']), pad_vec(params['norm_memory']['b']),
         pad_vec(params['norm2']['g']), pad_vec(params['norm2']['b']),
         pad_vec(params['norm3']['g']), pad_vec(params['norm3']['b'])], axis=0)

    ffn = params['ffn']
    w1 = jnp.pad(ffn['w1'], ((0, d_pad - d_model), (0, f_pad - dim_ff))).astype(compute_dtype)
    b1 = jnp.pad(ffn['b1'], ((0, 0), (0, f_pad - dim_ff)))
    w2 = jnp.pad(ffn['w2'], ((0, f_pad - dim_ff), (0, d_pad - d_model))).astype(compute_dtype)
    b2 = jnp.pad(ffn['b2'], ((0, 0), (0, d_pad - d_model)))

    flat = (attn_pack(params['self_attn']) + attn_pack(params['cross_attn'])
            + [ln_pack, w1, b1, w2, b2])
    meta = dict(d_model=d_model, nhead=nhead, dim_ff=dim_ff, hd=hd,
                d_pad=d_pad, hd_pad=hd_pad, f_pad=f_pad,
                compute_dtype=compute_dtype)
    return flat, meta


# -----------------------------------------------------------------------------
# Full decoder-layer forward (forward_post, eval mode, no masks) — 1 pallas_call
# -----------------------------------------------------------------------------
def decoder_layer_forward(tgt, memory, flat_w, meta, pos=None, query_pos=None,
                          batch_block=None, unpad_output=True,
                          single_buffer_weights=True):
    B, St, D = tgt.shape
    Sm = memory.shape[1]
    assert D == meta['d_model']
    d_pad = meta['d_pad']
    compute_dtype = meta['compute_dtype']

    # Batch-block so projections / FFN see ~128 MXU rows per dot.
    if batch_block is None:
        batch_block = max(1, min(B, pl.cdiv(128, max(St, 1))))
    bb = batch_block
    nblk = pl.cdiv(B, bb)
    b_pad = nblk * bb

    def pad_act(x):
        db = b_pad - x.shape[0]
        dd = d_pad - x.shape[-1]
        if db or dd:
            x = jnp.pad(x, ((0, db), (0, 0), (0, dd)))
        return x

    has_qpos = query_pos is not None
    has_pos = pos is not None

    inputs = [pad_act(tgt), pad_act(memory)]
    in_specs = [pl.BlockSpec((bb, St, d_pad), lambda b: (b, 0, 0)),
                pl.BlockSpec((bb, Sm, d_pad), lambda b: (b, 0, 0))]
    if has_qpos:
        inputs.append(pad_act(query_pos))
        in_specs.append(pl.BlockSpec((bb, St, d_pad), lambda b: (b, 0, 0)))
    if has_pos:
        inputs.append(pad_act(pos))
        in_specs.append(pl.BlockSpec((bb, Sm, d_pad), lambda b: (b, 0, 0)))

    # Weight / bias / LN blocks: full array, constant index_map, single-buffered.
    for w in flat_w:
        inputs.append(w)
        in_specs.append(_weight_spec(w.shape, single_buffer_weights))

    # Explicit VMEM budget: single-buffered weights + double-buffered activation
    # blocks + headroom for in-kernel intermediates (scores, q/k/v, FFN hidden).
    wbuf = 1 if (single_buffer_weights and _HAS_PIPELINE_MODE) else 2
    act_itemsize = tgt.dtype.itemsize
    weight_bytes = sum(int(w.size) * w.dtype.itemsize for w in flat_w) * wbuf
    act_block = (2 * St + (2 if has_pos else 1) * Sm + (St if has_qpos else 0)) \
        * bb * d_pad * act_itemsize
    scratch = bb * (meta['nhead'] * max(St, Sm) ** 2
                    + 8 * max(St, Sm) * max(d_pad, meta['f_pad'])) * 4
    vmem_limit = int(min(64 << 20,
                         max(weight_bytes + 2 * act_block + scratch, 16 << 20)))

    kern = functools.partial(
        _decoder_layer_kernel, nhead=meta['nhead'], d_model=D,
        hd_pad=meta['hd_pad'], d_pad=d_pad, bb=bb, s_tgt=St, s_mem=Sm,
        has_qpos=has_qpos, has_pos=has_pos, compute_dtype=compute_dtype)

    out = pl.pallas_call(
        kern,
        out_shape=jax.ShapeDtypeStruct((b_pad, St, d_pad), tgt.dtype),
        grid=(nblk,),
        in_specs=in_specs,
        out_specs=pl.BlockSpec((bb, St, d_pad), lambda b: (b, 0, 0)),
        compiler_params=pltpu.CompilerParams(
            dimension_semantics=("parallel",),
            vmem_limit_bytes=vmem_limit),
    )(*inputs)

    out = out[:B]
    return out[..., :D] if unpad_output else out


# -----------------------------------------------------------------------------
# Pure-JAX reference (same math as PyTorch forward_post, eval mode)
# -----------------------------------------------------------------------------
def _ref_mha(q_in, k_in, v_in, p, nhead):
    q = q_in @ p['wq'] + p['bq'][0]
    k = k_in @ p['wk'] + p['bk'][0]
    v = v_in @ p['wv'] + p['bv'][0]
    B, Sq, D = q.shape
    Sk = k.shape[1]
    hd = D // nhead
    qh = q.reshape(B, Sq, nhead, hd)
    kh = k.reshape(B, Sk, nhead, hd)
    vh = v.reshape(B, Sk, nhead, hd)
    s = jnp.einsum('bqhd,bkhd->bhqk', qh / math.sqrt(hd), kh)
    p_attn = jax.nn.softmax(s, axis=-1)
    o = jnp.einsum('bhqk,bkhd->bqhd', p_attn, vh).reshape(B, Sq, D)
    return o @ p['wo'] + p['bo'][0]


def _ref_ln(x, y, p):
    z = x + y
    m = jnp.mean(z, axis=-1, keepdims=True)
    v = jnp.mean((z - m) ** 2, axis=-1, keepdims=True)
    return (z - m) * jax.lax.rsqrt(v + 1e-5) * p['g'][0] + p['b'][0]


def _ref_forward(tgt, memory, params, nhead):
    tgt2 = _ref_mha(tgt, tgt, tgt, params['self_attn'], nhead)
    mem2 = _ref_mha(memory, memory, memory, params['self_attn'], nhead)
    tgt = _ref_ln(tgt, tgt2, params['norm_tgt'])
    memory = _ref_ln(memory, mem2, params['norm_memory'])
    tgt2 = _ref_mha(tgt, memory, memory, params['cross_attn'], nhead)
    tgt = _ref_ln(tgt, tgt2, params['norm2'])
    h = jnp.maximum(tgt @ params['ffn']['w1'] + params['ffn']['b1'][0], 0.0)
    tgt2 = h @ params['ffn']['w2'] + params['ffn']['b2'][0]
    return _ref_ln(tgt, tgt2, params['norm3'])


# -----------------------------------------------------------------------------
# Deterministic parameter construction
# -----------------------------------------------------------------------------
def make_params(key, d_model, nhead, dim_feedforward):
    def attn_params(k):
        ks = jax.random.split(k, 5)
        scale = 0.02
        return {
            'wq': scale * jax.random.normal(ks[0], (d_model, d_model), jnp.float32),
            'wk': scale * jax.random.normal(ks[1], (d_model, d_model), jnp.float32),
            'wv': scale * jax.random.normal(ks[2], (d_model, d_model), jnp.float32),
            'bq': jnp.zeros((1, d_model), jnp.float32),
            'bk': jnp.zeros((1, d_model), jnp.float32),
            'bv': jnp.zeros((1, d_model), jnp.float32),
            'wo': scale * jax.random.normal(ks[3], (d_model, d_model), jnp.float32),
            'bo': 0.01 * jax.random.normal(ks[4], (1, d_model), jnp.float32),
        }

    def ln_params(k):
        return {
            'g': jnp.ones((1, d_model), jnp.float32)
                 + 0.01 * jax.random.normal(k, (1, d_model), jnp.float32),
            'b': jnp.zeros((1, d_model), jnp.float32),
        }

    keys = jax.random.split(key, 9)
    return {
        'self_attn': attn_params(keys[0]),
        'cross_attn': attn_params(keys[1]),
        'norm_tgt': ln_params(keys[2]),
        'norm_memory': ln_params(keys[3]),
        'norm2': ln_params(keys[4]),
        'norm3': ln_params(keys[5]),
        'ffn': {
            'w1': 0.02 * jax.random.normal(keys[6], (d_model, dim_feedforward), jnp.float32),
            'b1': jnp.zeros((1, dim_feedforward), jnp.float32),
            'w2': 0.02 * jax.random.normal(keys[7], (dim_feedforward, d_model), jnp.float32),
            'b2': 0.01 * jax.random.normal(keys[8], (1, d_model), jnp.float32),
        },
    }


# -----------------------------------------------------------------------------
if __name__ == "__main__":
    B, S_TGT, S_MEM = 2, 8, 16
    D_MODEL, NHEAD, DIM_FF = 32, 4, 64

    key = jax.random.PRNGKey(0)
    k_tgt, k_mem, k_par = jax.random.split(key, 3)

    tgt = jax.random.normal(k_tgt, (B, S_TGT, D_MODEL), jnp.float32)
    memory = jax.random.normal(k_mem, (B, S_MEM, D_MODEL), jnp.float32)
    params = make_params(k_par, D_MODEL, NHEAD, DIM_FF)

    ref = _ref_forward(tgt, memory, params, NHEAD)

    # f32 path, batch_block=1 (two grid steps -> exercises the pipeline and
    # both v7x TensorCores). Tight check; approx softmax recip adds ~1e-4.
    w_f32, meta_f32 = prepare_params(params, D_MODEL, NHEAD, DIM_FF,
                                     compute_dtype=jnp.float32)
    out = decoder_layer_forward(tgt, memory, w_f32, meta_f32, batch_block=1)
    out = jax.block_until_ready(out)
    assert out.shape == (B, S_TGT, D_MODEL)
    err = float(jnp.max(jnp.abs(out - ref)))
    assert err < 2e-3, f"f32 mismatch vs reference: {err}"

    # Default bf16 matmul path, whole batch per grid step -> projections / FFN
    # run on flattened (B*St) MXU rows; softmax / LayerNorm stats stay f32.
    w_bf16, meta_bf16 = prepare_params(params, D_MODEL, NHEAD, DIM_FF,
                                       compute_dtype=jnp.bfloat16)
    out_bf16 = decoder_layer_forward(tgt, memory, w_bf16, meta_bf16)
    out_bf16 = jax.block_until_ready(out_bf16)
    err16 = float(jnp.max(jnp.abs(out_bf16 - ref)))
    assert err16 < 8e-2, f"bf16 mismatch vs reference: {err16}"

    print("KERNEL_OK")
</pallas_src>

<mosaic_0001>
module attributes {stable_mosaic.version = 11 : i64} {
  func.func @_decoder_layer_kernel(%arg0: i32, %arg1: memref<1x8x128xf32, #tpu.memory_space<vmem>>, %arg2: memref<1x16x128xf32, #tpu.memory_space<vmem>>, %arg3: memref<128x128xf32, #tpu.memory_space<vmem>>, %arg4: memref<128x128xf32, #tpu.memory_space<vmem>>, %arg5: memref<128x128xf32, #tpu.memory_space<vmem>>, %arg6: memref<128x128xf32, #tpu.memory_space<vmem>>, %arg7: memref<4x128xf32, #tpu.memory_space<vmem>>, %arg8: memref<128x128xf32, #tpu.memory_space<vmem>>, %arg9: memref<128x128xf32, #tpu.memory_space<vmem>>, %arg10: memref<128x128xf32, #tpu.memory_space<vmem>>, %arg11: memref<128x128xf32, #tpu.memory_space<vmem>>, %arg12: memref<4x128xf32, #tpu.memory_space<vmem>>, %arg13: memref<8x128xf32, #tpu.memory_space<vmem>>, %arg14: memref<128x128xf32, #tpu.memory_space<vmem>>, %arg15: memref<1x128xf32, #tpu.memory_space<vmem>>, %arg16: memref<128x128xf32, #tpu.memory_space<vmem>>, %arg17: memref<1x128xf32, #tpu.memory_space<vmem>>, %arg18: memref<1x8x128xf32, #tpu.memory_space<vmem>>) attributes {dimension_semantics = [#tpu.dimension_semantics<parallel>], iteration_bounds = array<i64: 2>, scalar_prefetch = 0 : i64, scratch_operands = 0 : i64, tpu.core_type = #tpu.core_type<tc>, window_params = [{transform_indices = @transform_0, window_bounds = array<i64: 1, 8, 128>}, {transform_indices = @transform_1, window_bounds = array<i64: 1, 16, 128>}, {pipeline_mode = #tpu.pipeline_mode<synchronous>, transform_indices = @transform_2, window_bounds = array<i64: 128, 128>}, {pipeline_mode = #tpu.pipeline_mode<synchronous>, transform_indices = @transform_3, window_bounds = array<i64: 128, 128>}, {pipeline_mode = #tpu.pipeline_mode<synchronous>, transform_indices = @transform_4, window_bounds = array<i64: 128, 128>}, {pipeline_mode = #tpu.pipeline_mode<synchronous>, transform_indices = @transform_5, window_bounds = array<i64: 128, 128>}, {pipeline_mode = #tpu.pipeline_mode<synchronous>, transform_indices = @transform_6, window_bounds = array<i64: 4, 128>}, {pipeline_mode = #tpu.pipeline_mode<synchronous>, transform_indices = @transform_7, window_bounds = array<i64: 128, 128>}, {pipeline_mode = #tpu.pipeline_mode<synchronous>, transform_indices = @transform_8, window_bounds = array<i64: 128, 128>}, {pipeline_mode = #tpu.pipeline_mode<synchronous>, transform_indices = @transform_9, window_bounds = array<i64: 128, 128>}, {pipeline_mode = #tpu.pipeline_mode<synchronous>, transform_indices = @transform_10, window_bounds = array<i64: 128, 128>}, {pipeline_mode = #tpu.pipeline_mode<synchronous>, transform_indices = @transform_11, window_bounds = array<i64: 4, 128>}, {pipeline_mode = #tpu.pipeline_mode<synchronous>, transform_indices = @transform_12, window_bounds = array<i64: 8, 128>}, {pipeline_mode = #tpu.pipeline_mode<synchronous>, transform_indices = @transform_13, window_bounds = array<i64: 128, 128>}, {pipeline_mode = #tpu.pipeline_mode<synchronous>, transform_indices = @transform_14, window_bounds = array<i64: 1, 128>}, {pipeline_mode = #tpu.pipeline_mode<synchronous>, transform_indices = @transform_15, window_bounds = array<i64: 128, 128>}, {pipeline_mode = #tpu.pipeline_mode<synchronous>, transform_indices = @transform_16, window_bounds = array<i64: 1, 128>}, {transform_indices = @transform_17, window_bounds = array<i64: 1, 8, 128>}]} {
    %c0 = arith.constant 0 : index
    %c0_0 = arith.constant 0 : index
    %c0_1 = arith.constant 0 : index
    %0 = vector.load %arg1[%c0, %c0_0, %c0_1] : memref<1x8x128xf32, #tpu.memory_space<vmem>>, vector<1x8x128xf32>
    %1 = vector.shape_cast %0 : vector<1x8x128xf32> to vector<8x128xf32>
    %c0_2 = arith.constant 0 : index
    %c0_3 = arith.constant 0 : index
    %c0_4 = arith.constant 0 : index
    %2 = vector.load %arg2[%c0_2, %c0_3, %c0_4] : memref<1x16x128xf32, #tpu.memory_space<vmem>>, vector<1x16x128xf32>
    %3 = vector.shape_cast %2 : vector<1x16x128xf32> to vector<16x128xf32>
    %c0_5 = arith.constant 0 : index
    %c0_6 = arith.constant 0 : index
    %4 = vector.load %arg13[%c0_5, %c0_6] : memref<8x128xf32, #tpu.memory_space<vmem>>, vector<8x128xf32>
    %5 = tpu.iota {dimensions = array<i32: 1>} : vector<1x128xi32>
    %c32_i32 = arith.constant 32 : i32
    %6 = vector.broadcast %c32_i32 : i32 to vector<1x128xi32>
    %7 = arith.cmpi slt, %5, %6 : vector<1x128xi32>
    %8 = arith.extui %7 : vector<1x128xi1> to vector<1x128xi32>
    %9 = arith.sitofp %8 : vector<1x128xi32> to vector<1x128xf32>
    %c0_7 = arith.constant 0 : index
    %c0_8 = arith.constant 0 : index
    %10 = vector.load %arg7[%c0_7, %c0_8] : memref<4x128xf32, #tpu.memory_space<vmem>>, vector<4x128xf32>
    %11 = vector.extract_strided_slice %10 {offsets = [0, 0], sizes = [1, 128], strides = [1, 1]} : vector<4x128xf32> to vector<1x128xf32>
    %c0_9 = arith.constant 0 : index
    %c0_10 = arith.constant 0 : index
    %12 = vector.load %arg3[%c0_9, %c0_10] : memref<128x128xf32, #tpu.memory_space<vmem>>, vector<128x128xf32>
    %cst = arith.constant dense<0.000000e+00> : vector<8x128xf32>
    %13 = tpu.matmul %1, %12, %cst {dimension_numbers = #tpu.dot_dimension_numbers<[1], [0], [0], [1], [0, 0, 1, 1], [], []>} : vector<8x128xf32>, vector<128x128xf32>, vector<8x128xf32> -> vector<8x128xf32>
    %14 = vector.broadcast %11 : vector<1x128xf32> to vector<8x128xf32>
    %15 = arith.addf %13, %14 : vector<8x128xf32>
    %16 = vector.extract_strided_slice %10 {offsets = [1, 0], sizes = [1, 128], strides = [1, 1]} : vector<4x128xf32> to vector<1x128xf32>
    %c0_11 = arith.constant 0 : index
    %c0_12 = arith.constant 0 : index
    %17 = vector.load %arg4[%c0_11, %c0_12] : memref<128x128xf32, #tpu.memory_space<vmem>>, vector<128x128xf32>
    %cst_13 = arith.constant dense<0.000000e+00> : vector<8x128xf32>
    %18 = tpu.matmul %1, %17, %cst_13 {dimension_numbers = #tpu.dot_dimension_numbers<[1], [0], [0], [1], [0, 0, 1, 1], [], []>} : vector<8x128xf32>, vector<128x128xf32>, vector<8x128xf32> -> vector<8x128xf32>
    %19 = vector.broadcast %16 : vector<1x128xf32> to vector<8x128xf32>
    %20 = arith.addf %18, %19 : vector<8x128xf32>
    %21 = vector.extract_strided_slice %10 {offsets = [2, 0], sizes = [1, 128], strides = [1, 1]} : vector<4x128xf32> to vector<1x128xf32>
    %c0_14 = arith.constant 0 : index
    %c0_15 = arith.constant 0 : index
    %22 = vector.load %arg5[%c0_14, %c0_15] : memref<128x128xf32, #tpu.memory_space<vmem>>, vector<128x128xf32>
    %cst_16 = arith.constant dense<0.000000e+00> : vector<8x128xf32>
    %23 = tpu.matmul %1, %22, %cst_16 {dimension_numbers = #tpu.dot_dimension_numbers<[1], [0], [0], [1], [0, 0, 1, 1], [], []>} : vector<8x128xf32>, vector<128x128xf32>, vector<8x128xf32> -> vector<8x128xf32>
    %24 = vector.broadcast %21 : vector<1x128xf32> to vector<8x128xf32>
    %25 = arith.addf %23, %24 : vector<8x128xf32>
    %26 = vector.shape_cast %15 : vector<8x128xf32> to vector<1x8x4x32xf32>
    %27 = vector.shape_cast %20 : vector<8x128xf32> to vector<1x8x4x32xf32>
    %28 = vector.shape_cast %25 : vector<8x128xf32> to vector<1x8x4x32xf32>
    %29 = vector.shape_cast %26 : vector<1x8x4x32xf32> to vector<8x4x32xf32>
    %30 = vector.shape_cast %27 : vector<1x8x4x32xf32> to vector<8x4x32xf32>
    "tpu.trace_start"() <{level = 10 : i32, message = "qhd,khd->hqk"}> : () -> ()
    %cst_17 = arith.constant dense<0.000000e+00> : vector<4x8x8xf32>
    %31 = tpu.matmul %29, %30, %cst_17 {dimension_numbers = #tpu.dot_dimension_numbers<[2], [2], [0], [0], [0, 1, 0, 0, 1, 0], [1], [1]>} : vector<8x4x32xf32>, vector<8x4x32xf32>, vector<4x8x8xf32> -> vector<4x8x8xf32>
    "tpu.trace_stop"() : () -> ()
    %cst_18 = arith.constant dense<0xFF800000> : vector<4x8xf32>
    %32 = vector.multi_reduction <maximumf>, %31, %cst_18 [2] : vector<4x8x8xf32> to vector<4x8xf32>
    %33 = vector.shape_cast %32 : vector<4x8xf32> to vector<4x8x1xf32>
    %34 = vector.broadcast %33 : vector<4x8x1xf32> to vector<4x8x8xf32>
    %35 = arith.subf %31, %34 : vector<4x8x8xf32>
    %36 = math.exp %35 : vector<4x8x8xf32>
    %cst_19 = arith.constant dense<0.000000e+00> : vector<4x8xf32>
    %37 = vector.multi_reduction <add>, %36, %cst_19 [2] : vector<4x8x8xf32> to vector<4x8xf32>
    %38 = vector.shape_cast %37 : vector<4x8xf32> to vector<4x8x1xf32>
    %39 = tpu.reciprocal %38 {approx = true} : vector<4x8x1xf32> -> vector<4x8x1xf32>
    %40 = vector.broadcast %39 : vector<4x8x1xf32> to vector<4x8x8xf32>
    %41 = arith.mulf %36, %40 : vector<4x8x8xf32>
    %42 = vector.shape_cast %28 : vector<1x8x4x32xf32> to vector<8x4x32xf32>
    "tpu.trace_start"() <{level = 10 : i32, message = "hqk,khd->qhd"}> : () -> ()
    %cst_20 = arith.constant dense<0.000000e+00> : vector<4x32x8xf32>
    %43 = tpu.matmul %42, %41, %cst_20 {dimension_numbers = #tpu.dot_dimension_numbers<[0], [2], [2], [1], [0, 1, 0, 2, 1, 1], [1], [0]>} : vector<8x4x32xf32>, vector<4x8x8xf32>, vector<4x32x8xf32> -> vector<4x32x8xf32>
    %44 = tpu.transpose %43, [2, 0, 1] : vector<4x32x8xf32> -> vector<8x4x32xf32>
    "tpu.trace_stop"() : () -> ()
    %45 = vector.shape_cast %44 : vector<8x4x32xf32> to vector<8x128xf32>
    %46 = vector.extract_strided_slice %10 {offsets = [3, 0], sizes = [1, 128], strides = [1, 1]} : vector<4x128xf32> to vector<1x128xf32>
    %c0_21 = arith.constant 0 : index
    %c0_22 = arith.constant 0 : index
    %47 = vector.load %arg6[%c0_21, %c0_22] : memref<128x128xf32, #tpu.memory_space<vmem>>, vector<128x128xf32>
    %cst_23 = arith.constant dense<0.000000e+00> : vector<8x128xf32>
    %48 = tpu.matmul %45, %47, %cst_23 {dimension_numbers = #tpu.dot_dimension_numbers<[1], [0], [0], [1], [0, 0, 1, 1], [], []>} : vector<8x128xf32>, vector<128x128xf32>, vector<8x128xf32> -> vector<8x128xf32>
    %49 = vector.broadcast %46 : vector<1x128xf32> to vector<8x128xf32>
    %50 = arith.addf %48, %49 : vector<8x128xf32>
    %c0_24 = arith.constant 0 : index
    %c0_25 = arith.constant 0 : index
    %51 = vector.load %arg7[%c0_24, %c0_25] : memref<4x128xf32, #tpu.memory_space<vmem>>, vector<4x128xf32>
    %52 = vector.extract_strided_slice %51 {offsets = [0, 0], sizes = [1, 128], strides = [1, 1]} : vector<4x128xf32> to vector<1x128xf32>
    %c0_26 = arith.constant 0 : index
    %c0_27 = arith.constant 0 : index
    %53 = vector.load %arg3[%c0_26, %c0_27] : memref<128x128xf32, #tpu.memory_space<vmem>>, vector<128x128xf32>
    %cst_28 = arith.constant dense<0.000000e+00> : vector<16x128xf32>
    %54 = tpu.matmul %3, %53, %cst_28 {dimension_numbers = #tpu.dot_dimension_numbers<[1], [0], [0], [1], [0, 0, 1, 1], [], []>} : vector<16x128xf32>, vector<128x128xf32>, vector<16x128xf32> -> vector<16x128xf32>
    %55 = vector.broadcast %52 : vector<1x128xf32> to vector<16x128xf32>
    %56 = arith.addf %54, %55 : vector<16x128xf32>
    %57 = vector.extract_strided_slice %51 {offsets = [1, 0], sizes = [1, 128], strides = [1, 1]} : vector<4x128xf32> to vector<1x128xf32>
    %c0_29 = arith.constant 0 : index
    %c0_30 = arith.constant 0 : index
    %58 = vector.load %arg4[%c0_29, %c0_30] : memref<128x128xf32, #tpu.memory_space<vmem>>, vector<128x128xf32>
    %cst_31 = arith.constant dense<0.000000e+00> : vector<16x128xf32>
    %59 = tpu.matmul %3, %58, %cst_31 {dimension_numbers = #tpu.dot_dimension_numbers<[1], [0], [0], [1], [0, 0, 1, 1], [], []>} : vector<16x128xf32>, vector<128x128xf32>, vector<16x128xf32> -> vector<16x128xf32>
    %60 = vector.broadcast %57 : vector<1x128xf32> to vector<16x128xf32>
    %61 = arith.addf %59, %60 : vector<16x128xf32>
    %62 = vector.extract_strided_slice %51 {offsets = [2, 0], sizes = [1, 128], strides = [1, 1]} : vector<4x128xf32> to vector<1x128xf32>
    %c0_32 = arith.constant 0 : index
    %c0_33 = arith.constant 0 : index
    %63 = vector.load %arg5[%c0_32, %c0_33] : memref<128x128xf32, #tpu.memory_space<vmem>>, vector<128x128xf32>
    %cst_34 = arith.constant dense<0.000000e+00> : vector<16x128xf32>
    %64 = tpu.matmul %3, %63, %cst_34 {dimension_numbers = #tpu.dot_dimension_numbers<[1], [0], [0], [1], [0, 0, 1, 1], [], []>} : vector<16x128xf32>, vector<128x128xf32>, vector<16x128xf32> -> vector<16x128xf32>
    %65 = vector.broadcast %62 : vector<1x128xf32> to vector<16x128xf32>
    %66 = arith.addf %64, %65 : vector<16x128xf32>
    %67 = vector.shape_cast %56 : vector<16x128xf32> to vector<1x16x4x32xf32>
    %68 = vector.shape_cast %61 : vector<16x128xf32> to vector<1x16x4x32xf32>
    %69 = vector.shape_cast %66 : vector<16x128xf32> to vector<1x16x4x32xf32>
    %70 = vector.shape_cast %67 : vector<1x16x4x32xf32> to vector<16x4x32xf32>
    %71 = vector.shape_cast %68 : vector<1x16x4x32xf32> to vector<16x4x32xf32>
    "tpu.trace_start"() <{level = 10 : i32, message = "qhd,khd->hqk"}> : () -> ()
    %cst_35 = arith.constant dense<0.000000e+00> : vector<4x16x16xf32>
    %72 = tpu.matmul %70, %71, %cst_35 {dimension_numbers = #tpu.dot_dimension_numbers<[2], [2], [0], [0], [0, 1, 0, 0, 1, 0], [1], [1]>} : vector<16x4x32xf32>, vector<16x4x32xf32>, vector<4x16x16xf32> -> vector<4x16x16xf32>
    "tpu.trace_stop"() : () -> ()
    %cst_36 = arith.constant dense<0xFF800000> : vector<4x16xf32>
    %73 = vector.multi_reduction <maximumf>, %72, %cst_36 [2] : vector<4x16x16xf32> to vector<4x16xf32>
    %74 = vector.shape_cast %73 : vector<4x16xf32> to vector<4x16x1xf32>
    %75 = vector.broadcast %74 : vector<4x16x1xf32> to vector<4x16x16xf32>
    %76 = arith.subf %72, %75 : vector<4x16x16xf32>
    %77 = math.exp %76 : vector<4x16x16xf32>
    %cst_37 = arith.constant dense<0.000000e+00> : vector<4x16xf32>
    %78 = vector.multi_reduction <add>, %77, %cst_37 [2] : vector<4x16x16xf32> to vector<4x16xf32>
    %79 = vector.shape_cast %78 : vector<4x16xf32> to vector<4x16x1xf32>
    %80 = tpu.reciprocal %79 {approx = true} : vector<4x16x1xf32> -> vector<4x16x1xf32>
    %81 = vector.broadcast %80 : vector<4x16x1xf32> to vector<4x16x16xf32>
    %82 = arith.mulf %77, %81 : vector<4x16x16xf32>
    %83 = vector.shape_cast %69 : vector<1x16x4x32xf32> to vector<16x4x32xf32>
    "tpu.trace_start"() <{level = 10 : i32, message = "hqk,khd->qhd"}> : () -> ()
    %cst_38 = arith.constant dense<0.000000e+00> : vector<4x32x16xf32>
    %84 = tpu.matmul %83, %82, %cst_38 {dimension_numbers = #tpu.dot_dimension_numbers<[0], [2], [2], [1], [0, 1, 0, 2, 1, 1], [1], [0]>} : vector<16x4x32xf32>, vector<4x16x16xf32>, vector<4x32x16xf32> -> vector<4x32x16xf32>
    %85 = tpu.transpose %84, [2, 0, 1] : vector<4x32x16xf32> -> vector<16x4x32xf32>
    "tpu.trace_stop"() : () -> ()
    %86 = vector.shape_cast %85 : vector<16x4x32xf32> to vector<16x128xf32>
    %87 = vector.extract_strided_slice %51 {offsets = [3, 0], sizes = [1, 128], strides = [1, 1]} : vector<4x128xf32> to vector<1x128xf32>
    %c0_39 = arith.constant 0 : index
    %c0_40 = arith.constant 0 : index
    %88 = vector.load %arg6[%c0_39, %c0_40] : memref<128x128xf32, #tpu.memory_space<vmem>>, vector<128x128xf32>
    %cst_41 = arith.constant dense<0.000000e+00> : vector<16x128xf32>
    %89 = tpu.matmul %86, %88, %cst_41 {dimension_numbers = #tpu.dot_dimension_numbers<[1], [0], [0], [1], [0, 0, 1, 1], [], []>} : vector<16x128xf32>, vector<128x128xf32>, vector<16x128xf32> -> vector<16x128xf32>
    %90 = vector.broadcast %87 : vector<1x128xf32> to vector<16x128xf32>
    %91 = arith.addf %89, %90 : vector<16x128xf32>
    %92 = vector.extract_strided_slice %4 {offsets = [0, 0], sizes = [1, 128], strides = [1, 1]} : vector<8x128xf32> to vector<1x128xf32>
    %93 = vector.extract_strided_slice %4 {offsets = [1, 0], sizes = [1, 128], strides = [1, 1]} : vector<8x128xf32> to vector<1x128xf32>
    %94 = arith.addf %1, %50 : vector<8x128xf32>
    %cst_42 = arith.constant dense<0.000000e+00> : vector<8xf32>
    %95 = vector.multi_reduction <add>, %94, %cst_42 [1] : vector<8x128xf32> to vector<8xf32>
    %96 = vector.shape_cast %95 : vector<8xf32> to vector<8x1xf32>
    %cst_43 = arith.constant 3.125000e-02 : f32
    %97 = vector.broadcast %cst_43 : f32 to vector<8x1xf32>
    %98 = arith.mulf %96, %97 : vector<8x1xf32>
    %99 = vector.broadcast %98 : vector<8x1xf32> to vector<8x128xf32>
    %100 = arith.subf %94, %99 : vector<8x128xf32>
    %101 = vector.broadcast %9 : vector<1x128xf32> to vector<8x128xf32>
    %102 = arith.mulf %100, %101 : vector<8x128xf32>
    %103 = arith.mulf %102, %102 : vector<8x128xf32>
    %cst_44 = arith.constant dense<0.000000e+00> : vector<8xf32>
    %104 = vector.multi_reduction <add>, %103, %cst_44 [1] : vector<8x128xf32> to vector<8xf32>
    %105 = vector.shape_cast %104 : vector<8xf32> to vector<8x1xf32>
    %cst_45 = arith.constant 3.125000e-02 : f32
    %106 = vector.broadcast %cst_45 : f32 to vector<8x1xf32>
    %107 = arith.mulf %105, %106 : vector<8x1xf32>
    %cst_46 = arith.constant 9.99999974E-6 : f32
    %108 = vector.broadcast %cst_46 : f32 to vector<8x1xf32>
    %109 = arith.addf %107, %108 : vector<8x1xf32>
    %110 = math.rsqrt %109 : vector<8x1xf32>
    %111 = vector.broadcast %110 : vector<8x1xf32> to vector<8x128xf32>
    %112 = arith.mulf %102, %111 : vector<8x128xf32>
    %113 = vector.broadcast %92 : vector<1x128xf32> to vector<8x128xf32>
    %114 = arith.mulf %112, %113 : vector<8x128xf32>
    %115 = vector.broadcast %93 : vector<1x128xf32> to vector<8x128xf32>
    %116 = arith.addf %114, %115 : vector<8x128xf32>
    %117 = vector.extract_strided_slice %4 {offsets = [2, 0], sizes = [1, 128], strides = [1, 1]} : vector<8x128xf32> to vector<1x128xf32>
    %118 = vector.extract_strided_slice %4 {offsets = [3, 0], sizes = [1, 128], strides = [1, 1]} : vector<8x128xf32> to vector<1x128xf32>
    %119 = arith.addf %3, %91 : vector<16x128xf32>
    %cst_47 = arith.constant dense<0.000000e+00> : vector<16xf32>
    %120 = vector.multi_reduction <add>, %119, %cst_47 [1] : vector<16x128xf32> to vector<16xf32>
    %121 = vector.shape_cast %120 : vector<16xf32> to vector<16x1xf32>
    %cst_48 = arith.constant 3.125000e-02 : f32
    %122 = vector.broadcast %cst_48 : f32 to vector<16x1xf32>
    %123 = arith.mulf %121, %122 : vector<16x1xf32>
    %124 = vector.broadcast %123 : vector<16x1xf32> to vector<16x128xf32>
    %125 = arith.subf %119, %124 : vector<16x128xf32>
    %126 = vector.broadcast %9 : vector<1x128xf32> to vector<16x128xf32>
    %127 = arith.mulf %125, %126 : vector<16x128xf32>
    %128 = arith.mulf %127, %127 : vector<16x128xf32>
    %cst_49 = arith.constant dense<0.000000e+00> : vector<16xf32>
    %129 = vector.multi_reduction <add>, %128, %cst_49 [1] : vector<16x128xf32> to vector<16xf32>
    %130 = vector.shape_cast %129 : vector<16xf32> to vector<16x1xf32>
    %cst_50 = arith.constant 3.125000e-02 : f32
    %131 = vector.broadcast %cst_50 : f32 to vector<16x1xf32>
    %132 = arith.mulf %130, %131 : vector<16x1xf32>
    %cst_51 = arith.constant 9.99999974E-6 : f32
    %133 = vector.broadcast %cst_51 : f32 to vector<16x1xf32>
    %134 = arith.addf %132, %133 : vector<16x1xf32>
    %135 = math.rsqrt %134 : vector<16x1xf32>
    %136 = vector.broadcast %135 : vector<16x1xf32> to vector<16x128xf32>
    %137 = arith.mulf %127, %136 : vector<16x128xf32>
    %138 = vector.broadcast %117 : vector<1x128xf32> to vector<16x128xf32>
    %139 = arith.mulf %137, %138 : vector<16x128xf32>
    %140 = vector.broadcast %118 : vector<1x128xf32> to vector<16x128xf32>
    %141 = arith.addf %139, %140 : vector<16x128xf32>
    %c0_52 = arith.constant 0 : index
    %c0_53 = arith.constant 0 : index
    %142 = vector.load %arg12[%c0_52, %c0_53] : memref<4x128xf32, #tpu.memory_space<vmem>>, vector<4x128xf32>
    %143 = vector.extract_strided_slice %142 {offsets = [0, 0], sizes = [1, 128], strides = [1, 1]} : vector<4x128xf32> to vector<1x128xf32>
    %c0_54 = arith.constant 0 : index
    %c0_55 = arith.constant 0 : index
    %144 = vector.load %arg8[%c0_54, %c0_55] : memref<128x128xf32, #tpu.memory_space<vmem>>, vector<128x128xf32>
    %cst_56 = arith.constant dense<0.000000e+00> : vector<8x128xf32>
    %145 = tpu.matmul %116, %144, %cst_56 {dimension_numbers = #tpu.dot_dimension_numbers<[1], [0], [0], [1], [0, 0, 1, 1], [], []>} : vector<8x128xf32>, vector<128x128xf32>, vector<8x128xf32> -> vector<8x128xf32>
    %146 = vector.broadcast %143 : vector<1x128xf32> to vector<8x128xf32>
    %147 = arith.addf %145, %146 : vector<8x128xf32>
    %148 = vector.extract_strided_slice %142 {offsets = [1, 0], sizes = [1, 128], strides = [1, 1]} : vector<4x128xf32> to vector<1x128xf32>
    %c0_57 = arith.constant 0 : index
    %c0_58 = arith.constant 0 : index
    %149 = vector.load %arg9[%c0_57, %c0_58] : memref<128x128xf32, #tpu.memory_space<vmem>>, vector<128x128xf32>
    %cst_59 = arith.constant dense<0.000000e+00> : vector<16x128xf32>
    %150 = tpu.matmul %141, %149, %cst_59 {dimension_numbers = #tpu.dot_dimension_numbers<[1], [0], [0], [1], [0, 0, 1, 1], [], []>} : vector<16x128xf32>, vector<128x128xf32>, vector<16x128xf32> -> vector<16x128xf32>
    %151 = vector.broadcast %148 : vector<1x128xf32> to vector<16x128xf32>
    %152 = arith.addf %150, %151 : vector<16x128xf32>
    %153 = vector.extract_strided_slice %142 {offsets = [2, 0], sizes = [1, 128], strides = [1, 1]} : vector<4x128xf32> to vector<1x128xf32>
    %c0_60 = arith.constant 0 : index
    %c0_61 = arith.constant 0 : index
    %154 = vector.load %arg10[%c0_60, %c0_61] : memref<128x128xf32, #tpu.memory_space<vmem>>, vector<128x128xf32>
    %cst_62 = arith.constant dense<0.000000e+00> : vector<16x128xf32>
    %155 = tpu.matmul %141, %154, %cst_62 {dimension_numbers = #tpu.dot_dimension_numbers<[1], [0], [0], [1], [0, 0, 1, 1], [], []>} : vector<16x128xf32>, vector<128x128xf32>, vector<16x128xf32> -> vector<16x128xf32>
    %156 = vector.broadcast %153 : vector<1x128xf32> to vector<16x128xf32>
    %157 = arith.addf %155, %156 : vector<16x128xf32>
    %158 = vector.shape_cast %147 : vector<8x128xf32> to vector<1x8x4x32xf32>
    %159 = vector.shape_cast %152 : vector<16x128xf32> to vector<1x16x4x32xf32>
    %160 = vector.shape_cast %157 : vector<16x128xf32> to vector<1x16x4x32xf32>
    %161 = vector.shape_cast %158 : vector<1x8x4x32xf32> to vector<8x4x32xf32>
    %162 = vector.shape_cast %159 : vector<1x16x4x32xf32> to vector<16x4x32xf32>
    "tpu.trace_start"() <{level = 10 : i32, message = "qhd,khd->hqk"}> : () -> ()
    %cst_63 = arith.constant dense<0.000000e+00> : vector<4x8x16xf32>
    %163 = tpu.matmul %161, %162, %cst_63 {dimension_numbers = #tpu.dot_dimension_numbers<[2], [2], [0], [0], [0, 1, 0, 0, 1, 0], [1], [1]>} : vector<8x4x32xf32>, vector<16x4x32xf32>, vector<4x8x16xf32> -> vector<4x8x16xf32>
    "tpu.trace_stop"() : () -> ()
    %cst_64 = arith.constant dense<0xFF800000> : vector<4x8xf32>
    %164 = vector.multi_reduction <maximumf>, %163, %cst_64 [2] : vector<4x8x16xf32> to vector<4x8xf32>
    %165 = vector.shape_cast %164 : vector<4x8xf32> to vector<4x8x1xf32>
    %166 = vector.broadcast %165 : vector<4x8x1xf32> to vector<4x8x16xf32>
    %167 = arith.subf %163, %166 : vector<4x8x16xf32>
    %168 = math.exp %167 : vector<4x8x16xf32>
    %cst_65 = arith.constant dense<0.000000e+00> : vector<4x8xf32>
    %169 = vector.multi_reduction <add>, %168, %cst_65 [2] : vector<4x8x16xf32> to vector<4x8xf32>
    %170 = vector.shape_cast %169 : vector<4x8xf32> to vector<4x8x1xf32>
    %171 = tpu.reciprocal %170 {approx = true} : vector<4x8x1xf32> -> vector<4x8x1xf32>
    %172 = vector.broadcast %171 : vector<4x8x1xf32> to vector<4x8x16xf32>
    %173 = arith.mulf %168, %172 : vector<4x8x16xf32>
    %174 = vector.shape_cast %160 : vector<1x16x4x32xf32> to vector<16x4x32xf32>
    "tpu.trace_start"() <{level = 10 : i32, message = "hqk,khd->qhd"}> : () -> ()
    %cst_66 = arith.constant dense<0.000000e+00> : vector<4x32x8xf32>
    %175 = tpu.matmul %174, %173, %cst_66 {dimension_numbers = #tpu.dot_dimension_numbers<[0], [2], [2], [1], [0, 1, 0, 2, 1, 1], [1], [0]>} : vector<16x4x32xf32>, vector<4x8x16xf32>, vector<4x32x8xf32> -> vector<4x32x8xf32>
    %176 = tpu.transpose %175, [2, 0, 1] : vector<4x32x8xf32> -> vector<8x4x32xf32>
    "tpu.trace_stop"() : () -> ()
    %177 = vector.shape_cast %176 : vector<8x4x32xf32> to vector<8x128xf32>
    %178 = vector.extract_strided_slice %142 {offsets = [3, 0], sizes = [1, 128], strides = [1, 1]} : vector<4x128xf32> to vector<1x128xf32>
    %c0_67 = arith.constant 0 : index
    %c0_68 = arith.constant 0 : index
    %179 = vector.load %arg11[%c0_67, %c0_68] : memref<128x128xf32, #tpu.memory_space<vmem>>, vector<128x128xf32>
    %cst_69 = arith.constant dense<0.000000e+00> : vector<8x128xf32>
    %180 = tpu.matmul %177, %179, %cst_69 {dimension_numbers = #tpu.dot_dimension_numbers<[1], [0], [0], [1], [0, 0, 1, 1], [], []>} : vector<8x128xf32>, vector<128x128xf32>, vector<8x128xf32> -> vector<8x128xf32>
    %181 = vector.broadcast %178 : vector<1x128xf32> to vector<8x128xf32>
    %182 = arith.addf %180, %181 : vector<8x128xf32>
    %183 = vector.extract_strided_slice %4 {offsets = [4, 0], sizes = [1, 128], strides = [1, 1]} : vector<8x128xf32> to vector<1x128xf32>
    %184 = vector.extract_strided_slice %4 {offsets = [5, 0], sizes = [1, 128], strides = [1, 1]} : vector<8x128xf32> to vector<1x128xf32>
    %185 = arith.addf %116, %182 : vector<8x128xf32>
    %cst_70 = arith.constant dense<0.000000e+00> : vector<8xf32>
    %186 = vector.multi_reduction <add>, %185, %cst_70 [1] : vector<8x128xf32> to vector<8xf32>
    %187 = vector.shape_cast %186 : vector<8xf32> to vector<8x1xf32>
    %cst_71 = arith.constant 3.125000e-02 : f32
    %188 = vector.broadcast %cst_71 : f32 to vector<8x1xf32>
    %189 = arith.mulf %187, %188 : vector<8x1xf32>
    %190 = vector.broadcast %189 : vector<8x1xf32> to vector<8x128xf32>
    %191 = arith.subf %185, %190 : vector<8x128xf32>
    %192 = vector.broadcast %9 : vector<1x128xf32> to vector<8x128xf32>
    %193 = arith.mulf %191, %192 : vector<8x128xf32>
    %194 = arith.mulf %193, %193 : vector<8x128xf32>
    %cst_72 = arith.constant dense<0.000000e+00> : vector<8xf32>
    %195 = vector.multi_reduction <add>, %194, %cst_72 [1] : vector<8x128xf32> to vector<8xf32>
    %196 = vector.shape_cast %195 : vector<8xf32> to vector<8x1xf32>
    %cst_73 = arith.constant 3.125000e-02 : f32
    %197 = vector.broadcast %cst_73 : f32 to vector<8x1xf32>
    %198 = arith.mulf %196, %197 : vector<8x1xf32>
    %cst_74 = arith.constant 9.99999974E-6 : f32
    %199 = vector.broadcast %cst_74 : f32 to vector<8x1xf32>
    %200 = arith.addf %198, %199 : vector<8x1xf32>
    %201 = math.rsqrt %200 : vector<8x1xf32>
    %202 = vector.broadcast %201 : vector<8x1xf32> to vector<8x128xf32>
    %203 = arith.mulf %193, %202 : vector<8x128xf32>
    %204 = vector.broadcast %183 : vector<1x128xf32> to vector<8x128xf32>
    %205 = arith.mulf %203, %204 : vector<8x128xf32>
    %206 = vector.broadcast %184 : vector<1x128xf32> to vector<8x128xf32>
    %207 = arith.addf %205, %206 : vector<8x128xf32>
    %c0_75 = arith.constant 0 : index
    %c0_76 = arith.constant 0 : index
    %208 = vector.load %arg15[%c0_75, %c0_76] : memref<1x128xf32, #tpu.memory_space<vmem>>, vector<1x128xf32>
    %c0_77 = arith.constant 0 : index
    %c0_78 = arith.constant 0 : index
    %209 = vector.load %arg14[%c0_77, %c0_78] : memref<128x128xf32, #tpu.memory_space<vmem>>, vector<128x128xf32>
    %cst_79 = arith.constant dense<0.000000e+00> : vector<8x128xf32>
    %210 = tpu.matmul %207, %209, %cst_79 {dimension_numbers = #tpu.dot_dimension_numbers<[1], [0], [0], [1], [0, 0, 1, 1], [], []>} : vector<8x128xf32>, vector<128x128xf32>, vector<8x128xf32> -> vector<8x128xf32>
    %211 = vector.broadcast %208 : vector<1x128xf32> to vector<8x128xf32>
    %212 = arith.addf %210, %211 : vector<8x128xf32>
    %cst_80 = arith.constant 0.000000e+00 : f32
    %213 = vector.broadcast %cst_80 : f32 to vector<8x128xf32>
    %214 = arith.maximumf %212, %213 : vector<8x128xf32>
    %c0_81 = arith.constant 0 : index
    %c0_82 = arith.constant 0 : index
    %215 = vector.load %arg17[%c0_81, %c0_82] : memref<1x128xf32, #tpu.memory_space<vmem>>, vector<1x128xf32>
    %c0_83 = arith.constant 0 : index
    %c0_84 = arith.constant 0 : index
    %216 = vector.load %arg16[%c0_83, %c0_84] : memref<128x128xf32, #tpu.memory_space<vmem>>, vector<128x128xf32>
    %cst_85 = arith.constant dense<0.000000e+00> : vector<8x128xf32>
    %217 = tpu.matmul %214, %216, %cst_85 {dimension_numbers = #tpu.dot_dimension_numbers<[1], [0], [0], [1], [0, 0, 1, 1], [], []>} : vector<8x128xf32>, vector<128x128xf32>, vector<8x128xf32> -> vector<8x128xf32>
    %218 = vector.broadcast %215 : vector<1x128xf32> to vector<8x128xf32>
    %219 = arith.addf %217, %218 : vector<8x128xf32>
    %220 = vector.extract_strided_slice %4 {offsets = [6, 0], sizes = [1, 128], strides = [1, 1]} : vector<8x128xf32> to vector<1x128xf32>
    %221 = vector.extract_strided_slice %4 {offsets = [7, 0], sizes = [1, 128], strides = [1, 1]} : vector<8x128xf32> to vector<1x128xf32>
    %222 = arith.addf %207, %219 : vector<8x128xf32>
    %cst_86 = arith.constant dense<0.000000e+00> : vector<8xf32>
    %223 = vector.multi_reduction <add>, %222, %cst_86 [1] : vector<8x128xf32> to vector<8xf32>
    %224 = vector.shape_cast %223 : vector<8xf32> to vector<8x1xf32>
    %cst_87 = arith.constant 3.125000e-02 : f32
    %225 = vector.broadcast %cst_87 : f32 to vector<8x1xf32>
    %226 = arith.mulf %224, %225 : vector<8x1xf32>
    %227 = vector.broadcast %226 : vector<8x1xf32> to vector<8x128xf32>
    %228 = arith.subf %222, %227 : vector<8x128xf32>
    %229 = vector.broadcast %9 : vector<1x128xf32> to vector<8x128xf32>
    %230 = arith.mulf %228, %229 : vector<8x128xf32>
    %231 = arith.mulf %230, %230 : vector<8x128xf32>
    %cst_88 = arith.constant dense<0.000000e+00> : vector<8xf32>
    %232 = vector.multi_reduction <add>, %231, %cst_88 [1] : vector<8x128xf32> to vector<8xf32>
    %233 = vector.shape_cast %232 : vector<8xf32> to vector<8x1xf32>
    %cst_89 = arith.constant 3.125000e-02 : f32
    %234 = vector.broadcast %cst_89 : f32 to vector<8x1xf32>
    %235 = arith.mulf %233, %234 : vector<8x1xf32>
    %cst_90 = arith.constant 9.99999974E-6 : f32
    %236 = vector.broadcast %cst_90 : f32 to vector<8x1xf32>
    %237 = arith.addf %235, %236 : vector<8x1xf32>
    %238 = math.rsqrt %237 : vector<8x1xf32>
    %239 = vector.broadcast %238 : vector<8x1xf32> to vector<8x128xf32>
    %240 = arith.mulf %230, %239 : vector<8x128xf32>
    %241 = vector.broadcast %220 : vector<1x128xf32> to vector<8x128xf32>
    %242 = arith.mulf %240, %241 : vector<8x128xf32>
    %243 = vector.broadcast %221 : vector<1x128xf32> to vector<8x128xf32>
    %244 = arith.addf %242, %243 : vector<8x128xf32>
    %245 = vector.shape_cast %244 : vector<8x128xf32> to vector<1x8x128xf32>
    %c0_91 = arith.constant 0 : index
    %c0_92 = arith.constant 0 : index
    %c0_93 = arith.constant 0 : index
    %246 = vector.load %arg18[%c0_91, %c0_92, %c0_93] : memref<1x8x128xf32, #tpu.memory_space<vmem>>, vector<1x8x128xf32>
    tpu.vector_store %arg18[%c0_91, %c0_92, %c0_93], %245 {strides = array<i32>} : memref<1x8x128xf32, #tpu.memory_space<vmem>>, vector<1x8x128xf32>,
    return
  }
  func.func @transform_0(%arg0: i32) -> (i32, i32, i32) {
    %c0_i32 = arith.constant 0 : i32
    %c0_i32_0 = arith.constant 0 : i32
    %c0_i32_1 = arith.constant 0 : i32
    return %arg0, %c0_i32, %c0_i32_0 : i32, i32, i32
  }
  func.func @transform_1(%arg0: i32) -> (i32, i32, i32) {
    %c0_i32 = arith.constant 0 : i32
    %c0_i32_0 = arith.constant 0 : i32
    %c0_i32_1 = arith.constant 0 : i32
    return %arg0, %c0_i32, %c0_i32_0 : i32, i32, i32
  }
  func.func @transform_2(%arg0: i32) -> (i32, i32) {
    %c0_i32 = arith.constant 0 : i32
    %c0_i32_0 = arith.constant 0 : i32
    %c0_i32_1 = arith.constant 0 : i32
    return %c0_i32, %c0_i32_0 : i32, i32
  }
  func.func @transform_3(%arg0: i32) -> (i32, i32) {
    %c0_i32 = arith.constant 0 : i32
    %c0_i32_0 = arith.constant 0 : i32
    %c0_i32_1 = arith.constant 0 : i32
    return %c0_i32, %c0_i32_0 : i32, i32
  }
  func.func @transform_4(%arg0: i32) -> (i32, i32) {
    %c0_i32 = arith.constant 0 : i32
    %c0_i32_0 = arith.constant 0 : i32
    %c0_i32_1 = arith.constant 0 : i32
    return %c0_i32, %c0_i32_0 : i32, i32
  }
  func.func @transform_5(%arg0: i32) -> (i32, i32) {
    %c0_i32 = arith.constant 0 : i32
    %c0_i32_0 = arith.constant 0 : i32
    %c0_i32_1 = arith.constant 0 : i32
    return %c0_i32, %c0_i32_0 : i32, i32
  }
  func.func @transform_6(%arg0: i32) -> (i32, i32) {
    %c0_i32 = arith.constant 0 : i32
    %c0_i32_0 = arith.constant 0 : i32
    %c0_i32_1 = arith.constant 0 : i32
    return %c0_i32, %c0_i32_0 : i32, i32
  }
  func.func @transform_7(%arg0: i32) -> (i32, i32) {
    %c0_i32 = arith.constant 0 : i32
    %c0_i32_0 = arith.constant 0 : i32
    %c0_i32_1 = arith.constant 0 : i32
    return %c0_i32, %c0_i32_0 : i32, i32
  }
  func.func @transform_8(%arg0: i32) -> (i32, i32) {
    %c0_i32 = arith.constant 0 : i32
    %c0_i32_0 = arith.constant 0 : i32
    %c0_i32_1 = arith.constant 0 : i32
    return %c0_i32, %c0_i32_0 : i32, i32
  }
  func.func @transform_9(%arg0: i32) -> (i32, i32) {
    %c0_i32 = arith.constant 0 : i32
    %c0_i32_0 = arith.constant 0 : i32
    %c0_i32_1 = arith.constant 0 : i32
    return %c0_i32, %c0_i32_0 : i32, i32
  }
  func.func @transform_10(%arg0: i32) -> (i32, i32) {
    %c0_i32 = arith.constant 0 : i32
    %c0_i32_0 = arith.constant 0 : i32
    %c0_i32_1 = arith.constant 0 : i32
    return %c0_i32, %c0_i32_0 : i32, i32
  }
  func.func @transform_11(%arg0: i32) -> (i32, i32) {
    %c0_i32 = arith.constant 0 : i32
    %c0_i32_0 = arith.constant 0 : i32
    %c0_i32_1 = arith.constant 0 : i32
    return %c0_i32, %c0_i32_0 : i32, i32
  }
  func.func @transform_12(%arg0: i32) -> (i32, i32) {
    %c0_i32 = arith.constant 0 : i32
    %c0_i32_0 = arith.constant 0 : i32
    %c0_i32_1 = arith.constant 0 : i32
    return %c0_i32, %c0_i32_0 : i32, i32
  }
  func.func @transform_13(%arg0: i32) -> (i32, i32) {
    %c0_i32 = arith.constant 0 : i32
    %c0_i32_0 = arith.constant 0 : i32
    %c0_i32_1 = arith.constant 0 : i32
    return %c0_i32, %c0_i32_0 : i32, i32
  }
  func.func @transform_14(%arg0: i32) -> (i32, i32) {
    %c0_i32 = arith.constant 0 : i32
    %c0_i32_0 = arith.constant 0 : i32
    %c0_i32_1 = arith.constant 0 : i32
    return %c0_i32, %c0_i32_0 : i32, i32
  }
  func.func @transform_15(%arg0: i32) -> (i32, i32) {
    %c0_i32 = arith.constant 0 : i32
    %c0_i32_0 = arith.constant 0 : i32
    %c0_i32_1 = arith.constant 0 : i32
    return %c0_i32, %c0_i32_0 : i32, i32
  }
  func.func @transform_16(%arg0: i32) -> (i32, i32) {
    %c0_i32 = arith.constant 0 : i32
    %c0_i32_0 = arith.constant 0 : i32
    %c0_i32_1 = arith.constant 0 : i32
    return %c0_i32, %c0_i32_0 : i32, i32
  }
  func.func @transform_17(%arg0: i32) -> (i32, i32, i32) {
    %c0_i32 = arith.constant 0 : i32
    %c0_i32_0 = arith.constant 0 : i32
    %c0_i32_1 = arith.constant 0 : i32
    return %arg0, %c0_i32, %c0_i32_0 : i32, i32, i32
  }
}

</mosaic_0001>

<llo_original>
// kernel: tpu_custom_call.1
$region0: #{tpu_custom_call.1}
  #allocation0 [shape = 'u32[]', space=smem, size = 0x4, offset = 0x4, fixed_abs, tag = 'smem constant byte address 0x4 - core index']
  #allocation1 [shape = 'u32[72,128]{1,0:T(1,128)}', space=vmem, size = 0x9000, scoped, tag = 'internal scratch']
  %s0 = inlined_call_operand.hbm [shape: f32[2,8,128], index: 0, kind: input, shape index: {}]
  %s1 = inlined_call_operand.hbm [shape: f32[2,16,128], index: 1, kind: input, shape index: {}]
  %s2 = inlined_call_operand.hbm [shape: f32[128,128], index: 2, kind: input, shape index: {}]
  %s3 = inlined_call_operand.hbm [shape: f32[128,128], index: 3, kind: input, shape index: {}]
  %s4 = inlined_call_operand.hbm [shape: f32[128,128], index: 4, kind: input, shape index: {}]
  %s5 = inlined_call_operand.hbm [shape: f32[128,128], index: 5, kind: input, shape index: {}]
  %s6 = inlined_call_operand.hbm [shape: f32[4,128], index: 6, kind: input, shape index: {}]
  %s7 = inlined_call_operand.hbm [shape: f32[128,128], index: 7, kind: input, shape index: {}]
  %s8 = inlined_call_operand.hbm [shape: f32[128,128], index: 8, kind: input, shape index: {}]
  %s9 = inlined_call_operand.hbm [shape: f32[128,128], index: 9, kind: input, shape index: {}]
  %s10 = inlined_call_operand.hbm [shape: f32[128,128], index: 10, kind: input, shape index: {}]
  %s11 = inlined_call_operand.hbm [shape: f32[4,128], index: 11, kind: input, shape index: {}]
  %s12 = inlined_call_operand.vmem [shape: f32[8,128], index: 12, kind: input, shape index: {}]
  %s13 = inlined_call_operand.hbm [shape: f32[128,128], index: 13, kind: input, shape index: {}]
  %s14 = inlined_call_operand.vmem [shape: f32[1,128], index: 14, kind: input, shape index: {}]
  %s15 = inlined_call_operand.hbm [shape: f32[128,128], index: 15, kind: input, shape index: {}]
  %s16 = inlined_call_operand.vmem [shape: f32[1,128], index: 16, kind: input, shape index: {}]
  %s17 = inlined_call_operand.hbm [shape: f32[2,8,128], index: 17, kind: output, shape index: {}]
  %s18 = sld [smem:[#allocation0]]
  $region157: #{tpu_custom_call.1} parent=0
    _
  %s20 = ssub.s32 1, %s18
  %s21 = scalar_select 0, %s20, %s18
  $region1: #{tpu_custom_call.1} parent=0
    #allocation2 [shape = 'u8[8192]{0}', space=vmem, size = 0x2000, scoped, tag = 'input window, operand 0']
    #allocation3 [shape = 's32[2]{0}', space=sflag, size = 0x8, scoped, tag = 'scoped memory for tpu_custom_call.1']
    #allocation4 [shape = 's32[2]{0}', space=sflag, size = 0x8, scoped, tag = 'scoped memory for tpu_custom_call.1']
    #allocation5 [shape = 'u8[16384]{0}', space=vmem, size = 0x4000, scoped, tag = 'input window, operand 1']
    #allocation6 [shape = 's32[2]{0}', space=sflag, size = 0x8, scoped, tag = 'scoped memory for tpu_custom_call.1']
    #allocation7 [shape = 'u8[65536]{0}', space=vmem, size = 0x10000, scoped, tag = 'input window, operand 2, single buffered']
    #allocation8 [shape = 'u8[65536]{0}', space=vmem, size = 0x10000, scoped, tag = 'input window, operand 3, single buffered']
    #allocation9 [shape = 's32[1]{0}', space=sflag, size = 0x4, scoped, tag = 'scoped memory for tpu_custom_call.1']
    #allocation10 [shape = 'u8[65536]{0}', space=vmem, size = 0x10000, scoped, tag = 'input window, operand 4, single buffered']
    #allocation11 [shape = 'u8[65536]{0}', space=vmem, size = 0x10000, scoped, tag = 'input window, operand 5, single buffered']
    #allocation12 [shape = 's32[1]{0}', space=sflag, size = 0x4, scoped, tag = 'scoped memory for tpu_custom_call.1']
    #allocation13 [shape = 'u8[2048]{0}', space=vmem, size = 0x800, scoped, tag = 'input window, operand 6, single buffered']
    #allocation14 [shape = 'u8[65536]{0}', space=vmem, size = 0x10000, scoped, tag = 'input window, operand 7, single buffered']
    #allocation15 [shape = 's32[1]{0}', space=sflag, size = 0x4, scoped, tag = 'scoped memory for tpu_custom_call.1']
    #allocation16 [shape = 'u8[65536]{0}', space=vmem, size = 0x10000, scoped, tag = 'input window, operand 8, single buffered']
    #allocation17 [shape = 'u8[65536]{0}', space=vmem, size = 0x10000, scoped, tag = 'input window, operand 9, single buffered']
    #allocation18 [shape = 's32[1]{0}', space=sflag, size = 0x4, scoped, tag = 'scoped memory for tpu_custom_call.1']
    #allocation19 [shape = 'u8[65536]{0}', space=vmem, size = 0x10000, scoped, tag = 'input window, operand 10, single buffered']
    #allocation20 [shape = 'u8[2048]{0}', space=vmem, size = 0x800, scoped, tag = 'input window, operand 11, single buffered']
    #allocation21 [shape = 's32[1]{0}', space=sflag, size = 0x4, scoped, tag = 'scoped memory for tpu_custom_call.1']
    #allocation22 [shape = 'u8[65536]{0}', space=vmem, size = 0x10000, scoped, tag = 'input window, operand 13, single buffered']
    #allocation23 [shape = 'u8[65536]{0}', space=vmem, size = 0x10000, scoped, tag = 'input window, operand 15, single buffered']
    #allocation24 [shape = 's32[1]{0}', space=sflag, size = 0x4, scoped, tag = 'scoped memory for tpu_custom_call.1']
    #allocation25 [shape = 'u8[8192]{0}', space=vmem, size = 0x2000, scoped, tag = 'output window, operand 0']
    %22 = vsyncpa [#allocation3], 0
    %s23 = scalar_lea.sflag [#allocation3], 1
    %24 = vsyncpa %s23, 0
    %25 = vsyncpa [#allocation6], 0
    %s26 = scalar_lea.sflag [#allocation6], 1
    %27 = vsyncpa %s26, 0
    %28 = vsyncpa [#allocation9], 0
    %29 = vsyncpa [#allocation12], 0
    %30 = vsyncpa [#allocation15], 0
    %31 = vsyncpa [#allocation18], 0
    %32 = vsyncpa [#allocation21], 0
    %33 = vsyncpa [#allocation24], 0
    %34 = vsyncpa [#allocation4], 0
    %s35 = scalar_lea.sflag [#allocation4], 1
    %36 = vsyncpa %s35, 0
    loop: start=0, step=1, limit=4
    $region2: #{tpu_custom_call.1} parent=1 // loop_pre_header
      _
    $region3: #{tpu_custom_call.1} parent=1 // loop_header
      %s38 = sphi 0, %s42
      %p39 = scmp.ge.s32.totalorder %s38, 4
      %s48 = sphi 0, %s50
      %s51 = sphi 0, %s48
      %s52 = sphi 0, %s51
      %s68 = sphi 0, %s52
      %s74 = sphi 0, %s76
      %s77 = sphi 0, %s74
      %s78 = sphi 0, %s77
      %s94 = sphi 0, %s78
      %s98 = sphi 0, %s98
      %s100 = sphi 0, %s98
      %s101 = sphi 0, %s100
      %s115 = sphi 0, %s101
      %s119 = sphi 0, %s119
      %s121 = sphi 0, %s119
      %s122 = sphi 0, %s121
      %s136 = sphi 0, %s122
      %s140 = sphi 0, %s140
      %s142 = sphi 0, %s140
      %s143 = sphi 0, %s142
      %s157 = sphi 0, %s143
      %s161 = sphi 0, %s161
      %s163 = sphi 0, %s161
      %s164 = sphi 0, %s163
      %s178 = sphi 0, %s164
      %s182 = sphi 0, %s182
      %s184 = sphi 0, %s182
      %s185 = sphi 0, %s184
      %s199 = sphi 0, %s185
      %s203 = sphi 0, %s203
      %s205 = sphi 0, %s203
      %s206 = sphi 0, %s205
      %s220 = sphi 0, %s206
      %s224 = sphi 0, %s224
      %s226 = sphi 0, %s224
      %s227 = sphi 0, %s226
      %s241 = sphi 0, %s227
      %s245 = sphi 0, %s245
      %s247 = sphi 0, %s245
      %s248 = sphi 0, %s247
      %s262 = sphi 0, %s248
      %s266 = sphi 0, %s266
      %s268 = sphi 0, %s266
      %s269 = sphi 0, %s268
      %s283 = sphi 0, %s269
      %s287 = sphi 0, %s287
      %s289 = sphi 0, %s287
      %s290 = sphi 0, %s289
      %s304 = sphi 0, %s290
      %s308 = sphi 0, %s308
      %s310 = sphi 0, %s308
      %s311 = sphi 0, %s310
      %s325 = sphi 0, %s311
      %s329 = sphi 0, %s329
      %s331 = sphi 0, %s329
      %s332 = sphi 0, %s331
      %s346 = sphi 0, %s332
      %s350 = sphi 0, %s350
      %s352 = sphi 0, %s350
      %s353 = sphi 0, %s352
      %s367 = sphi 0, %s353
      %s371 = sphi 0, %s371
      %s373 = sphi 0, %s371
      %s374 = sphi 0, %s373
      %s388 = sphi 0, %s374
      %s392 = sphi 0, %s392
      %s394 = sphi 0, %s392
      %s395 = sphi 0, %s394
      %s409 = sphi 0, %s395
      %s415 = sphi 0, %s417
      %s418 = sphi 0, %s415
      %s419 = sphi 0, %s418
      %s435 = sphi 0, %s419
    $region4: #{tpu_custom_call.1} parent=1 // loop_header_branch
      %41 = sbr.rel (%p39) target = $region8
    $region5: #{tpu_custom_call.1} parent=1 // loop_body
      %s43 = ssub.s32 %s38, 1
      %s44 = ssub.s32 %s38, 2
      %s45 = sadd.s32 %s38, 1
      %s46 = ssub.s32 %s38, %s45
      %p47 = scmp.eq.s32.totalorder %s46, 0
      %s49 = sadd.s32 %s48, 1
      %s50 = scalar_select %p47, %s48, %s49
      %p53 = pneg %p47
      %p54 = scmp.eq.s32.totalorder %s38, 1
      %p55 = por %p53, %p54
      %p56 = scmp.ne.s32.totalorder %s48, %s51
      %p57 = scmp.eq.s32.totalorder %s38, 0
      %p58 = por %p56, %p57
      %p59 = scmp.ne.s32.totalorder %s48, %s51
      %p60 = scmp.eq.s32.totalorder %s43, 1
      %p61 = por %p59, %p60
      %p62 = scmp.ne.s32.totalorder %s51, %s52
      %p63 = scmp.eq.s32.totalorder %s43, 0
      %p64 = por %p62, %p63
      %p65 = scmp.ne.s32.totalorder %s51, %s52
      %p66 = scmp.eq.s32.totalorder %s44, 1
      %p67 = por %p65, %p66
      %p69 = scmp.ne.s32.totalorder %s52, %s68
      %p70 = scmp.eq.s32.totalorder %s44, 0
      %p71 = por %p69, %p70
      %s72 = ssub.s32 %s38, %s45
      %p73 = scmp.eq.s32.totalorder %s72, 0
      %s75 = sadd.s32 %s74, 1
      %s76 = scalar_select %p73, %s74, %s75
      %p79 = pneg %p73
      %p80 = scmp.eq.s32.totalorder %s38, 1
      %p81 = por %p79, %p80
      %p82 = scmp.ne.s32.totalorder %s74, %s77
      %p83 = scmp.eq.s32.totalorder %s38, 0
      %p84 = por %p82, %p83
      %p85 = scmp.ne.s32.totalorder %s74, %s77
      %p86 = scmp.eq.s32.totalorder %s43, 1
      %p87 = por %p85, %p86
      %p88 = scmp.ne.s32.totalorder %s77, %s78
      %p89 = scmp.eq.s32.totalorder %s43, 0
      %p90 = por %p88, %p89
      %p91 = scmp.ne.s32.totalorder %s77, %s78
      %p92 = scmp.eq.s32.totalorder %s44, 1
      %p93 = por %p91, %p92
      %p95 = scmp.ne.s32.totalorder %s78, %s94
      %p96 = scmp.eq.s32.totalorder %s44, 0
      %p97 = por %p95, %p96
      %s99 = sadd.s32 %s98, 1
      %p102 = scmp.eq.s32.totalorder %s38, 1
      %p103 = scmp.ne.s32.totalorder %s98, %s100
      %p104 = scmp.eq.s32.totalorder %s38, 0
      %p105 = por %p103, %p104
      %p106 = scmp.ne.s32.totalorder %s98, %s100
      %p107 = scmp.eq.s32.totalorder %s43, 1
      %p108 = por %p106, %p107
      %p109 = scmp.ne.s32.totalorder %s100, %s101
      %p110 = scmp.eq.s32.totalorder %s43, 0
      %p111 = por %p109, %p110
      %p112 = scmp.ne.s32.totalorder %s100, %s101
      %p113 = scmp.eq.s32.totalorder %s44, 1
      %p114 = por %p112, %p113
      %p116 = scmp.ne.s32.totalorder %s101, %s115
      %p117 = scmp.eq.s32.totalorder %s44, 0
      %p118 = por %p116, %p117
      %s120 = sadd.s32 %s119, 1
      %p123 = scmp.eq.s32.totalorder %s38, 1
      %p124 = scmp.ne.s32.totalorder %s119, %s121
      %p125 = scmp.eq.s32.totalorder %s38, 0
      %p126 = por %p124, %p125
      %p127 = scmp.ne.s32.totalorder %s119, %s121
      %p128 = scmp.eq.s32.totalorder %s43, 1
      %p129 = por %p127, %p128
      %p130 = scmp.ne.s32.totalorder %s121, %s122
      %p131 = scmp.eq.s32.totalorder %s43, 0
      %p132 = por %p130, %p131
      %p133 = scmp.ne.s32.totalorder %s121, %s122
      %p134 = scmp.eq.s32.totalorder %s44, 1
      %p135 = por %p133, %p134
      %p137 = scmp.ne.s32.totalorder %s122, %s136
      %p138 = scmp.eq.s32.totalorder %s44, 0
      %p139 = por %p137, %p138
      %s141 = sadd.s32 %s140, 1
      %p144 = scmp.eq.s32.totalorder %s38, 1
      %p145 = scmp.ne.s32.totalorder %s140, %s142
      %p146 = scmp.eq.s32.totalorder %s38, 0
      %p147 = por %p145, %p146
      %p148 = scmp.ne.s32.totalorder %s140, %s142
      %p149 = scmp.eq.s32.totalorder %s43, 1
      %p150 = por %p148, %p149
      %p151 = scmp.ne.s32.totalorder %s142, %s143
      %p152 = scmp.eq.s32.totalorder %s43, 0
      %p153 = por %p151, %p152
      %p154 = scmp.ne.s32.totalorder %s142, %s143
      %p155 = scmp.eq.s32.totalorder %s44, 1
      %p156 = por %p154, %p155
      %p158 = scmp.ne.s32.totalorder %s143, %s157
      %p159 = scmp.eq.s32.totalorder %s44, 0
      %p160 = por %p158, %p159
      %s162 = sadd.s32 %s161, 1
      %p165 = scmp.eq.s32.totalorder %s38, 1
      %p166 = scmp.ne.s32.totalorder %s161, %s163
      %p167 = scmp.eq.s32.totalorder %s38, 0
      %p168 = por %p166, %p167
      %p169 = scmp.ne.s32.totalorder %s161, %s163
      %p170 = scmp.eq.s32.totalorder %s43, 1
      %p171 = por %p169, %p170
      %p172 = scmp.ne.s32.totalorder %s163, %s164
      %p173 = scmp.eq.s32.totalorder %s43, 0
      %p174 = por %p172, %p173
      %p175 = scmp.ne.s32.totalorder %s163, %s164
      %p176 = scmp.eq.s32.totalorder %s44, 1
      %p177 = por %p175, %p176
      %p179 = scmp.ne.s32.totalorder %s164, %s178
      %p180 = scmp.eq.s32.totalorder %s44, 0
      %p181 = por %p179, %p180
      %s183 = sadd.s32 %s182, 1
      %p186 = scmp.eq.s32.totalorder %s38, 1
      %p187 = scmp.ne.s32.totalorder %s182, %s184
      %p188 = scmp.eq.s32.totalorder %s38, 0
      %p189 = por %p187, %p188
      %p190 = scmp.ne.s32.totalorder %s182, %s184
      %p191 = scmp.eq.s32.totalorder %s43, 1
      %p192 = por %p190, %p191
      %p193 = scmp.ne.s32.totalorder %s184, %s185
      %p194 = scmp.eq.s32.totalorder %s43, 0
      %p195 = por %p193, %p194
      %p196 = scmp.ne.s32.totalorder %s184, %s185
      %p197 = scmp.eq.s32.totalorder %s44, 1
      %p198 = por %p196, %p197
      %p200 = scmp.ne.s32.totalorder %s185, %s199
      %p201 = scmp.eq.s32.totalorder %s44, 0
      %p202 = por %p200, %p201
      %s204 = sadd.s32 %s203, 1
      %p207 = scmp.eq.s32.totalorder %s38, 1
      %p208 = scmp.ne.s32.totalorder %s203, %s205
      %p209 = scmp.eq.s32.totalorder %s38, 0
      %p210 = por %p208, %p209
      %p211 = scmp.ne.s32.totalorder %s203, %s205
      %p212 = scmp.eq.s32.totalorder %s43, 1
      %p213 = por %p211, %p212
      %p214 = scmp.ne.s32.totalorder %s205, %s206
      %p215 = scmp.eq.s32.totalorder %s43, 0
      %p216 = por %p214, %p215
      %p217 = scmp.ne.s32.totalorder %s205, %s206
      %p218 = scmp.eq.s32.totalorder %s44, 1
      %p219 = por %p217, %p218
      %p221 = scmp.ne.s32.totalorder %s206, %s220
      %p222 = scmp.eq.s32.totalorder %s44, 0
      %p223 = por %p221, %p222
      %s225 = sadd.s32 %s224, 1
      %p228 = scmp.eq.s32.totalorder %s38, 1
      %p229 = scmp.ne.s32.totalorder %s224, %s226
      %p230 = scmp.eq.s32.totalorder %s38, 0
      %p231 = por %p229, %p230
      %p232 = scmp.ne.s32.totalorder %s224, %s226
      %p233 = scmp.eq.s32.totalorder %s43, 1
      %p234 = por %p232, %p233
      %p235 = scmp.ne.s32.totalorder %s226, %s227
      %p236 = scmp.eq.s32.totalorder %s43, 0
      %p237 = por %p235, %p236
      %p238 = scmp.ne.s32.totalorder %s226, %s227
      %p239 = scmp.eq.s32.totalorder %s44, 1
      %p240 = por %p238, %p239
      %p242 = scmp.ne.s32.totalorder %s227, %s241
      %p243 = scmp.eq.s32.totalorder %s44, 0
      %p244 = por %p242, %p243
      %s246 = sadd.s32 %s245, 1
      %p249 = scmp.eq.s32.totalorder %s38, 1
      %p250 = scmp.ne.s32.totalorder %s245, %s247
      %p251 = scmp.eq.s32.totalorder %s38, 0
      %p252 = por %p250, %p251
      %p253 = scmp.ne.s32.totalorder %s245, %s247
      %p254 = scmp.eq.s32.totalorder %s43, 1
      %p255 = por %p253, %p254
      %p256 = scmp.ne.s32.totalorder %s247, %s248
      %p257 = scmp.eq.s32.totalorder %s43, 0
      %p258 = por %p256, %p257
      %p259 = scmp.ne.s32.totalorder %s247, %s248
      %p260 = scmp.eq.s32.totalorder %s44, 1
      %p261 = por %p259, %p260
      %p263 = scmp.ne.s32.totalorder %s248, %s262
      %p264 = scmp.eq.s32.totalorder %s44, 0
      %p265 = por %p263, %p264
      %s267 = sadd.s32 %s266, 1
      %p270 = scmp.eq.s32.totalorder %s38, 1
      %p271 = scmp.ne.s32.totalorder %s266, %s268
      %p272 = scmp.eq.s32.totalorder %s38, 0
      %p273 = por %p271, %p272
      %p274 = scmp.ne.s32.totalorder %s266, %s268
      %p275 = scmp.eq.s32.totalorder %s43, 1
      %p276 = por %p274, %p275
      %p277 = scmp.ne.s32.totalorder %s268, %s269
      %p278 = scmp.eq.s32.totalorder %s43, 0
      %p279 = por %p277, %p278
      %p280 = scmp.ne.s32.totalorder %s268, %s269
      %p281 = scmp.eq.s32.totalorder %s44, 1
      %p282 = por %p280, %p281
      %p284 = scmp.ne.s32.totalorder %s269, %s283
      %p285 = scmp.eq.s32.totalorder %s44, 0
      %p286 = por %p284, %p285
      %s288 = sadd.s32 %s287, 1
      %p291 = scmp.eq.s32.totalorder %s38, 1
      %p292 = scmp.ne.s32.totalorder %s287, %s289
      %p293 = scmp.eq.s32.totalorder %s38, 0
      %p294 = por %p292, %p293
      %p295 = scmp.ne.s32.totalorder %s287, %s289
      %p296 = scmp.eq.s32.totalorder %s43, 1
      %p297 = por %p295, %p296
      %p298 = scmp.ne.s32.totalorder %s289, %s290
      %p299 = scmp.eq.s32.totalorder %s43, 0
      %p300 = por %p298, %p299
      %p301 = scmp.ne.s32.totalorder %s289, %s290
      %p302 = scmp.eq.s32.totalorder %s44, 1
      %p303 = por %p301, %p302
      %p305 = scmp.ne.s32.totalorder %s290, %s304
      %p306 = scmp.eq.s32.totalorder %s44, 0
      %p307 = por %p305, %p306
      %s309 = sadd.s32 %s308, 1
      %p312 = scmp.eq.s32.totalorder %s38, 1
      %p313 = scmp.ne.s32.totalorder %s308, %s310
      %p314 = scmp.eq.s32.totalorder %s38, 0
      %p315 = por %p313, %p314
      %p316 = scmp.ne.s32.totalorder %s308, %s310
      %p317 = scmp.eq.s32.totalorder %s43, 1
      %p318 = por %p316, %p317
      %p319 = scmp.ne.s32.totalorder %s310, %s311
      %p320 = scmp.eq.s32.totalorder %s43, 0
      %p321 = por %p319, %p320
      %p322 = scmp.ne.s32.totalorder %s310, %s311
      %p323 = scmp.eq.s32.totalorder %s44, 1
      %p324 = por %p322, %p323
      %p326 = scmp.ne.s32.totalorder %s311, %s325
      %p327 = scmp.eq.s32.totalorder %s44, 0
      %p328 = por %p326, %p327
      %s330 = sadd.s32 %s329, 1
      %p333 = scmp.eq.s32.totalorder %s38, 1
      %p334 = scmp.ne.s32.totalorder %s329, %s331
      %p335 = scmp.eq.s32.totalorder %s38, 0
      %p336 = por %p334, %p335
      %p337 = scmp.ne.s32.totalorder %s329, %s331
      %p338 = scmp.eq.s32.totalorder %s43, 1
      %p339 = por %p337, %p338
      %p340 = scmp.ne.s32.totalorder %s331, %s332
      %p341 = scmp.eq.s32.totalorder %s43, 0
      %p342 = por %p340, %p341
      %p343 = scmp.ne.s32.totalorder %s331, %s332
      %p344 = scmp.eq.s32.totalorder %s44, 1
      %p345 = por %p343, %p344
      %p347 = scmp.ne.s32.totalorder %s332, %s346
      %p348 = scmp.eq.s32.totalorder %s44, 0
      %p349 = por %p347, %p348
      %s351 = sadd.s32 %s350, 1
      %p354 = scmp.eq.s32.totalorder %s38, 1
      %p355 = scmp.ne.s32.totalorder %s350, %s352
      %p356 = scmp.eq.s32.totalorder %s38, 0
      %p357 = por %p355, %p356
      %p358 = scmp.ne.s32.totalorder %s350, %s352
      %p359 = scmp.eq.s32.totalorder %s43, 1
      %p360 = por %p358, %p359
      %p361 = scmp.ne.s32.totalorder %s352, %s353
      %p362 = scmp.eq.s32.totalorder %s43, 0
      %p363 = por %p361, %p362
      %p364 = scmp.ne.s32.totalorder %s352, %s353
      %p365 = scmp.eq.s32.totalorder %s44, 1
      %p366 = por %p364, %p365
      %p368 = scmp.ne.s32.totalorder %s353, %s367
      %p369 = scmp.eq.s32.totalorder %s44, 0
      %p370 = por %p368, %p369
      %s372 = sadd.s32 %s371, 1
      %p375 = scmp.eq.s32.totalorder %s38, 1
      %p376 = scmp.ne.s32.totalorder %s371, %s373
      %p377 = scmp.eq.s32.totalorder %s38, 0
      %p378 = por %p376, %p377
      %p379 = scmp.ne.s32.totalorder %s371, %s373
      %p380 = scmp.eq.s32.totalorder %s43, 1
      %p381 = por %p379, %p380
      %p382 = scmp.ne.s32.totalorder %s373, %s374
      %p383 = scmp.eq.s32.totalorder %s43, 0
      %p384 = por %p382, %p383
      %p385 = scmp.ne.s32.totalorder %s373, %s374
      %p386 = scmp.eq.s32.totalorder %s44, 1
      %p387 = por %p385, %p386
      %p389 = scmp.ne.s32.totalorder %s374, %s388
      %p390 = scmp.eq.s32.totalorder %s44, 0
      %p391 = por %p389, %p390
      %s393 = sadd.s32 %s392, 1
      %p396 = scmp.eq.s32.totalorder %s38, 1
      %p397 = scmp.ne.s32.totalorder %s392, %s394
      %p398 = scmp.eq.s32.totalorder %s38, 0
      %p399 = por %p397, %p398
      %p400 = scmp.ne.s32.totalorder %s392, %s394
      %p401 = scmp.eq.s32.totalorder %s43, 1
      %p402 = por %p400, %p401
      %p403 = scmp.ne.s32.totalorder %s394, %s395
      %p404 = scmp.eq.s32.totalorder %s43, 0
      %p405 = por %p403, %p404
      %p406 = scmp.ne.s32.totalorder %s394, %s395
      %p407 = scmp.eq.s32.totalorder %s44, 1
      %p408 = por %p406, %p407
      %p410 = scmp.ne.s32.totalorder %s395, %s409
      %p411 = scmp.eq.s32.totalorder %s44, 0
      %p412 = por %p410, %p411
      %s413 = ssub.s32 %s38, %s45
      %p414 = scmp.eq.s32.totalorder %s413, 0
      %s416 = sadd.s32 %s415, 1
      %s417 = scalar_select %p414, %s415, %s416
      %p420 = pneg %p414
      %p421 = scmp.eq.s32.totalorder %s38, 1
      %p422 = por %p420, %p421
      %p423 = scmp.ne.s32.totalorder %s415, %s418
      %p424 = scmp.eq.s32.totalorder %s38, 0
      %p425 = por %p423, %p424
      %p426 = scmp.ne.s32.totalorder %s415, %s418
      %p427 = scmp.eq.s32.totalorder %s43, 1
      %p428 = por %p426, %p427
      %p429 = scmp.ne.s32.totalorder %s418, %s419
      %p430 = scmp.eq.s32.totalorder %s43, 0
      %p431 = por %p429, %p430
      %p432 = scmp.ne.s32.totalorder %s418, %s419
      %p433 = scmp.eq.s32.totalorder %s44, 1
      %p434 = por %p432, %p433
      %p436 = scmp.ne.s32.totalorder %s419, %s435
      %p437 = scmp.eq.s32.totalorder %s44, 0
      %p438 = por %p436, %p437
      %p439 = scmp.le.s32.totalorder 1, %s38
      %p440 = scmp.lt.s32.totalorder %s38, 3
      %p441 = pnand %p439, %p440
      %p442 = pneg %p441
      // Predicated region
      $region9: #{tpu_custom_call.1} parent=5 // pred_check
        _
      $region10: #{tpu_custom_call.1} parent=5 // pred_check_branch
        %444 = sbr.rel (%p441) target = $region12
      $region11: #{tpu_custom_call.1} parent=5 // pred_region
        %s445 = ssub.s32 %s38, 1
        // Predicated region
        $region13: #{tpu_custom_call.1} parent=11 // pred_check
          %p446 = pneg %p111
        $region14: #{tpu_custom_call.1} parent=11 // pred_check_branch
          %448 = sbr.rel (%p446) target = $region16
        $region15: #{tpu_custom_call.1} parent=11 // pred_region
          %450 = vsyncadd [#allocation6], 0
          %s451 = sshll.u32 %s2, 4
          %s452 = int_to_ptr.hbm [resolvable:$true] %s451
          %s453 = sshll.u32 [#allocation7], 4
          %s454 = int_to_ptr.vmem [resolvable:$true] %s453
          %459 = dma.hbm_to_vmem [thread:$0]  %s452, 2048, %s454, [#allocation6], 128, 128, 8
        $region16: #{tpu_custom_call.1} parent=11 // pred_fallthru
          _
        // Predicated region
        $region17: #{tpu_custom_call.1} parent=11 // pred_check
          %p460 = pneg %p132
        $region18: #{tpu_custom_call.1} parent=11 // pred_check_branch
          %462 = sbr.rel (%p460) target = $region20
        $region19: #{tpu_custom_call.1} parent=11 // pred_region
          %464 = vsyncadd [#allocation9], 0
          %s465 = sshll.u32 %s3, 4
          %s466 = int_to_ptr.hbm [resolvable:$true] %s465
          %s467 = sshll.u32 [#allocation8], 4
          %s468 = int_to_ptr.vmem [resolvable:$true] %s467
          %473 = dma.hbm_to_vmem [thread:$0]  %s466, 2048, %s468, [#allocation9], 128, 128, 8
        $region20: #{tpu_custom_call.1} parent=11 // pred_fallthru
          _
        // Predicated region
        $region21: #{tpu_custom_call.1} parent=11 // pred_check
          %p474 = pneg %p153
        $region22: #{tpu_custom_call.1} parent=11 // pred_check_branch
          %476 = sbr.rel (%p474) target = $region24
        $region23: #{tpu_custom_call.1} parent=11 // pred_region
          %478 = vsyncadd [#allocation9], 0
          %s479 = sshll.u32 %s4, 4
          %s480 = int_to_ptr.hbm [resolvable:$true] %s479
          %s481 = sshll.u32 [#allocation10], 4
          %s482 = int_to_ptr.vmem [resolvable:$true] %s481
          %487 = dma.hbm_to_vmem [thread:$0]  %s480, 2048, %s482, [#allocation9], 128, 128, 8
        $region24: #{tpu_custom_call.1} parent=11 // pred_fallthru
          _
        // Predicated region
        $region25: #{tpu_custom_call.1} parent=11 // pred_check
          %p488 = pneg %p174
        $region26: #{tpu_custom_call.1} parent=11 // pred_check_branch
          %490 = sbr.rel (%p488) target = $region28
        $region27: #{tpu_custom_call.1} parent=11 // pred_region
          %492 = vsyncadd [#allocation12], 0
          %s493 = sshll.u32 %s5, 4
          %s494 = int_to_ptr.hbm [resolvable:$true] %s493
          %s495 = sshll.u32 [#allocation11], 4
          %s496 = int_to_ptr.vmem [resolvable:$true] %s495
          %501 = dma.hbm_to_vmem [thread:$0]  %s494, 2048, %s496, [#allocation12], 128, 128, 8
        $region28: #{tpu_custom_call.1} parent=11 // pred_fallthru
          _
        // Predicated region
        $region29: #{tpu_custom_call.1} parent=11 // pred_check
          %p502 = pneg %p195
        $region30: #{tpu_custom_call.1} parent=11 // pred_check_branch
          %504 = sbr.rel (%p502) target = $region32
        $region31: #{tpu_custom_call.1} parent=11 // pred_region
          %506 = vsyncadd [#allocation12], 0
          %s508 = sshll.u32 %s6, 4
          %s509 = int_to_ptr.hbm [resolvable:$true] %s508
          %s510 = sshll.u32 [#allocation13], 4
          %s511 = int_to_ptr.vmem [resolvable:$true] %s510
          %513 = dma.hbm_to_vmem [thread:$0]  %s509, 64, %s511, [#allocation12]
        $region32: #{tpu_custom_call.1} parent=11 // pred_fallthru
          _
        // Predicated region
        $region33: #{tpu_custom_call.1} parent=11 // pred_check
          %p514 = pneg %p216
        $region34: #{tpu_custom_call.1} parent=11 // pred_check_branch
          %516 = sbr.rel (%p514) target = $region36
        $region35: #{tpu_custom_call.1} parent=11 // pred_region
          %518 = vsyncadd [#allocation15], 0
          %s519 = sshll.u32 %s7, 4
          %s520 = int_to_ptr.hbm [resolvable:$true] %s519
          %s521 = sshll.u32 [#allocation14], 4
          %s522 = int_to_ptr.vmem [resolvable:$true] %s521
          %527 = dma.hbm_to_vmem [thread:$0]  %s520, 2048, %s522, [#allocation15], 128, 128, 8
        $region36: #{tpu_custom_call.1} parent=11 // pred_fallthru
          _
        // Predicated region
        $region37: #{tpu_custom_call.1} parent=11 // pred_check
          %p528 = pneg %p237
        $region38: #{tpu_custom_call.1} parent=11 // pred_check_branch
          %530 = sbr.rel (%p528) target = $region40
        $region39: #{tpu_custom_call.1} parent=11 // pred_region
          %532 = vsyncadd [#allocation15], 0
          %s533 = sshll.u32 %s8, 4
          %s534 = int_to_ptr.hbm [resolvable:$true] %s533
          %s535 = sshll.u32 [#allocation16], 4
          %s536 = int_to_ptr.vmem [resolvable:$true] %s535
          %541 = dma.hbm_to_vmem [thread:$0]  %s534, 2048, %s536, [#allocation15], 128, 128, 8
        $region40: #{tpu_custom_call.1} parent=11 // pred_fallthru
          _
        // Predicated region
        $region41: #{tpu_custom_call.1} parent=11 // pred_check
          %p542 = pneg %p258
        $region42: #{tpu_custom_call.1} parent=11 // pred_check_branch
          %544 = sbr.rel (%p542) target = $region44
        $region43: #{tpu_custom_call.1} parent=11 // pred_region
          %546 = vsyncadd [#allocation18], 0
          %s547 = sshll.u32 %s9, 4
          %s548 = int_to_ptr.hbm [resolvable:$true] %s547
          %s549 = sshll.u32 [#allocation17], 4
          %s550 = int_to_ptr.vmem [resolvable:$true] %s549
          %555 = dma.hbm_to_vmem [thread:$0]  %s548, 2048, %s550, [#allocation18], 128, 128, 8
        $region44: #{tpu_custom_call.1} parent=11 // pred_fallthru
          _
        // Predicated region
        $region45: #{tpu_custom_call.1} parent=11 // pred_check
          %p556 = pneg %p279
        $region46: #{tpu_custom_call.1} parent=11 // pred_check_branch
          %558 = sbr.rel (%p556) target = $region48
        $region47: #{tpu_custom_call.1} parent=11 // pred_region
          %560 = vsyncadd [#allocation18], 0
          %s561 = sshll.u32 %s10, 4
          %s562 = int_to_ptr.hbm [resolvable:$true] %s561
          %s563 = sshll.u32 [#allocation19], 4
          %s564 = int_to_ptr.vmem [resolvable:$true] %s563
          %569 = dma.hbm_to_vmem [thread:$0]  %s562, 2048, %s564, [#allocation18], 128, 128, 8
        $region48: #{tpu_custom_call.1} parent=11 // pred_fallthru
          _
        // Predicated region
        $region49: #{tpu_custom_call.1} parent=11 // pred_check
          %p570 = pneg %p300
        $region50: #{tpu_custom_call.1} parent=11 // pred_check_branch
          %572 = sbr.rel (%p570) target = $region52
        $region51: #{tpu_custom_call.1} parent=11 // pred_region
          %574 = vsyncadd [#allocation21], 0
          %s576 = sshll.u32 %s11, 4
          %s577 = int_to_ptr.hbm [resolvable:$true] %s576
          %s578 = sshll.u32 [#allocation20], 4
          %s579 = int_to_ptr.vmem [resolvable:$true] %s578
          %581 = dma.hbm_to_vmem [thread:$0]  %s577, 64, %s579, [#allocation21]
        $region52: #{tpu_custom_call.1} parent=11 // pred_fallthru
          _
        // Predicated region
        $region53: #{tpu_custom_call.1} parent=11 // pred_check
          %p582 = pneg %p321
        $region54: #{tpu_custom_call.1} parent=11 // pred_check_branch
          %584 = sbr.rel (%p582) target = $region56
        $region55: #{tpu_custom_call.1} parent=11 // pred_region
          _
        $region56: #{tpu_custom_call.1} parent=11 // pred_fallthru
          _
        // Predicated region
        $region57: #{tpu_custom_call.1} parent=11 // pred_check
          %p585 = pneg %p342
        $region58: #{tpu_custom_call.1} parent=11 // pred_check_branch
          %587 = sbr.rel (%p585) target = $region60
        $region59: #{tpu_custom_call.1} parent=11 // pred_region
          %589 = vsyncadd [#allocation21], 0
          %s590 = sshll.u32 %s13, 4
          %s591 = int_to_ptr.hbm [resolvable:$true] %s590
          %s592 = sshll.u32 [#allocation22], 4
          %s593 = int_to_ptr.vmem [resolvable:$true] %s592
          %598 = dma.hbm_to_vmem [thread:$0]  %s591, 2048, %s593, [#allocation21], 128, 128, 8
        $region60: #{tpu_custom_call.1} parent=11 // pred_fallthru
          _
        // Predicated region
        $region61: #{tpu_custom_call.1} parent=11 // pred_check
          %p599 = pneg %p363
        $region62: #{tpu_custom_call.1} parent=11 // pred_check_branch
          %601 = sbr.rel (%p599) target = $region64
        $region63: #{tpu_custom_call.1} parent=11 // pred_region
          _
        $region64: #{tpu_custom_call.1} parent=11 // pred_fallthru
          _
        // Predicated region
        $region65: #{tpu_custom_call.1} parent=11 // pred_check
          %p602 = pneg %p384
        $region66: #{tpu_custom_call.1} parent=11 // pred_check_branch
          %604 = sbr.rel (%p602) target = $region68
        $region67: #{tpu_custom_call.1} parent=11 // pred_region
          %606 = vsyncadd [#allocation24], 0
          %s607 = sshll.u32 %s15, 4
          %s608 = int_to_ptr.hbm [resolvable:$true] %s607
          %s609 = sshll.u32 [#allocation23], 4
          %s610 = int_to_ptr.vmem [resolvable:$true] %s609
          %615 = dma.hbm_to_vmem [thread:$0]  %s608, 2048, %s610, [#allocation24], 128, 128, 8
        $region68: #{tpu_custom_call.1} parent=11 // pred_fallthru
          _
        // Predicated region
        $region69: #{tpu_custom_call.1} parent=11 // pred_check
          %p616 = pneg %p405
        $region70: #{tpu_custom_call.1} parent=11 // pred_check_branch
          %618 = sbr.rel (%p616) target = $region72
        $region71: #{tpu_custom_call.1} parent=11 // pred_region
          _
        $region72: #{tpu_custom_call.1} parent=11 // pred_fallthru
          _
      $region12: #{tpu_custom_call.1} parent=5 // pred_fallthru
        _
      %p619 = scmp.lt.s32.totalorder %s38, 2
      // Predicated region
      $region73: #{tpu_custom_call.1} parent=5 // pred_check
        %p620 = pneg %p619
      $region74: #{tpu_custom_call.1} parent=5 // pred_check_branch
        %622 = sbr.rel (%p620) target = $region76
      $region75: #{tpu_custom_call.1} parent=5 // pred_region
        // Predicated region
        $region77: #{tpu_custom_call.1} parent=75 // pred_check
          %p623 = pneg %p58
        $region78: #{tpu_custom_call.1} parent=75 // pred_check_branch
          %625 = sbr.rel (%p623) target = $region80
        $region79: #{tpu_custom_call.1} parent=75 // pred_region
          %s626 = sand.u32 %s48, 1
          %s627 = scalar_lea.sflag [#allocation3], %s626
          %s628 = sand.u32 %s48, 1
          %s629 = smul.addr %s628, 8
          %s630 = scalar_lea.vmem [#allocation2], %s629
          %632 = vsyncadd %s627, 0
          %s633 = smul.addr %s38, 8
          %s634 = scalar_lea.hbm %s0, %s633
          %s636 = sshll.u32 %s634, 4
          %s637 = int_to_ptr.hbm [resolvable:$true] %s636
          %s638 = sshll.u32 %s630, 4
          %s639 = int_to_ptr.vmem [resolvable:$true] %s638
          %641 = dma.hbm_to_vmem [thread:$0]  %s637, 128, %s639, %s627
        $region80: #{tpu_custom_call.1} parent=75 // pred_fallthru
          _
        // Predicated region
        $region81: #{tpu_custom_call.1} parent=75 // pred_check
          %p642 = pneg %p84
        $region82: #{tpu_custom_call.1} parent=75 // pred_check_branch
          %644 = sbr.rel (%p642) target = $region84
        $region83: #{tpu_custom_call.1} parent=75 // pred_region
          %s645 = sand.u32 %s38, 1
          %s646 = scalar_lea.sflag [#allocation6], %s645
          %s647 = sand.u32 %s74, 1
          %s648 = smul.addr %s647, 16
          %s649 = scalar_lea.vmem [#allocation5], %s648
          %651 = vsyncadd %s646, 0
          %s652 = smul.addr %s38, 2
          %s653 = smul.addr %s652, 8
          %s654 = scalar_lea.hbm %s1, %s653
          %s655 = sshll.u32 %s654, 4
          %s656 = int_to_ptr.hbm [resolvable:$true] %s655
          %s657 = sshll.u32 %s649, 4
          %s658 = int_to_ptr.vmem [resolvable:$true] %s657
          %663 = dma.hbm_to_vmem [thread:$0]  %s656, 256, %s658, %s646, 128, 128, 8
        $region84: #{tpu_custom_call.1} parent=75 // pred_fallthru
          _
      $region76: #{tpu_custom_call.1} parent=5 // pred_fallthru
        _
      %p664 = scmp.le.s32.totalorder 1, %s38
      %p665 = scmp.lt.s32.totalorder %s38, 3
      %p666 = pnand %p664, %p665
      %p667 = pneg %p666
      // Predicated region
      $region85: #{tpu_custom_call.1} parent=5 // pred_check
        _
      $region86: #{tpu_custom_call.1} parent=5 // pred_check_branch
        %669 = sbr.rel (%p666) target = $region88
      $region87: #{tpu_custom_call.1} parent=5 // pred_region
        %s670 = ssub.s32 %s38, 1
        %s671 = sand.u32 %s51, 1
        %s672 = scalar_lea.sflag [#allocation3], %s671
        %s673 = sand.u32 %s51, 1
        %s674 = smul.addr %s673, 8
        %s675 = scalar_lea.vmem [#allocation2], %s674
        // Predicated region
        $region89: #{tpu_custom_call.1} parent=87 // pred_check
          %p676 = pneg %p64
        $region90: #{tpu_custom_call.1} parent=87 // pred_check_branch
          %678 = sbr.rel (%p676) target = $region92
        $region91: #{tpu_custom_call.1} parent=87 // pred_region
          %680 = dma.done %s672, 128
        $region92: #{tpu_custom_call.1} parent=87 // pred_fallthru
          _
        %s681 = sand.u32 %s43, 1
        %s682 = scalar_lea.sflag [#allocation6], %s681
        %s683 = sand.u32 %s77, 1
        %s684 = smul.addr %s683, 16
        %s685 = scalar_lea.vmem [#allocation5], %s684
        // Predicated region
        $region93: #{tpu_custom_call.1} parent=87 // pred_check
          %p686 = pneg %p90
        $region94: #{tpu_custom_call.1} parent=87 // pred_check_branch
          %688 = sbr.rel (%p686) target = $region96
        $region95: #{tpu_custom_call.1} parent=87 // pred_region
          %690 = dma.done %s682, 256
        $region96: #{tpu_custom_call.1} parent=87 // pred_fallthru
          _
        // Predicated region
        $region97: #{tpu_custom_call.1} parent=87 // pred_check
          %p691 = pneg %p111
        $region98: #{tpu_custom_call.1} parent=87 // pred_check_branch
          %693 = sbr.rel (%p691) target = $region100
        $region99: #{tpu_custom_call.1} parent=87 // pred_region
          %695 = dma.done [#allocation6], 2048
        $region100: #{tpu_custom_call.1} parent=87 // pred_fallthru
          _
        // Predicated region
        $region101: #{tpu_custom_call.1} parent=87 // pred_check
          %p696 = pneg %p132
        $region102: #{tpu_custom_call.1} parent=87 // pred_check_branch
          %698 = sbr.rel (%p696) target = $region104
        $region103: #{tpu_custom_call.1} parent=87 // pred_region
          %700 = dma.done [#allocation9], 2048
        $region104: #{tpu_custom_call.1} parent=87 // pred_fallthru
          _
        // Predicated region
        $region105: #{tpu_custom_call.1} parent=87 // pred_check
          %p701 = pneg %p153
        $region106: #{tpu_custom_call.1} parent=87 // pred_check_branch
          %703 = sbr.rel (%p701) target = $region108
        $region107: #{tpu_custom_call.1} parent=87 // pred_region
          %705 = dma.done [#allocation9], 2048
        $region108: #{tpu_custom_call.1} parent=87 // pred_fallthru
          _
        // Predicated region
        $region109: #{tpu_custom_call.1} parent=87 // pred_check
          %p706 = pneg %p174
        $region110: #{tpu_custom_call.1} parent=87 // pred_check_branch
          %708 = sbr.rel (%p706) target = $region112
        $region111: #{tpu_custom_call.1} parent=87 // pred_region
          %710 = dma.done [#allocation12], 2048
        $region112: #{tpu_custom_call.1} parent=87 // pred_fallthru
          _
        // Predicated region
        $region113: #{tpu_custom_call.1} parent=87 // pred_check
          %p711 = pneg %p195
        $region114: #{tpu_custom_call.1} parent=87 // pred_check_branch
          %713 = sbr.rel (%p711) target = $region116
        $region115: #{tpu_custom_call.1} parent=87 // pred_region
          %715 = dma.done [#allocation12], 64
        $region116: #{tpu_custom_call.1} parent=87 // pred_fallthru
          _
        // Predicated region
        $region117: #{tpu_custom_call.1} parent=87 // pred_check
          %p716 = pneg %p216
        $region118: #{tpu_custom_call.1} parent=87 // pred_check_branch
          %718 = sbr.rel (%p716) target = $region120
        $region119: #{tpu_custom_call.1} parent=87 // pred_region
          %720 = dma.done [#allocation15], 2048
        $region120: #{tpu_custom_call.1} parent=87 // pred_fallthru
          _
        // Predicated region
        $region121: #{tpu_custom_call.1} parent=87 // pred_check
          %p721 = pneg %p237
        $region122: #{tpu_custom_call.1} parent=87 // pred_check_branch
          %723 = sbr.rel (%p721) target = $region124
        $region123: #{tpu_custom_call.1} parent=87 // pred_region
          %725 = dma.done [#allocation15], 2048
        $region124: #{tpu_custom_call.1} parent=87 // pred_fallthru
          _
        // Predicated region
        $region125: #{tpu_custom_call.1} parent=87 // pred_check
          %p726 = pneg %p258
        $region126: #{tpu_custom_call.1} parent=87 // pred_check_branch
          %728 = sbr.rel (%p726) target = $region128
        $region127: #{tpu_custom_call.1} parent=87 // pred_region
          %730 = dma.done [#allocation18], 2048
        $region128: #{tpu_custom_call.1} parent=87 // pred_fallthru
          _
        // Predicated region
        $region129: #{tpu_custom_call.1} parent=87 // pred_check
          %p731 = pneg %p279
        $region130: #{tpu_custom_call.1} parent=87 // pred_check_branch
          %733 = sbr.rel (%p731) target = $region132
        $region131: #{tpu_custom_call.1} parent=87 // pred_region
          %735 = dma.done [#allocation18], 2048
        $region132: #{tpu_custom_call.1} parent=87 // pred_fallthru
          _
        // Predicated region
        $region133: #{tpu_custom_call.1} parent=87 // pred_check
          %p736 = pneg %p300
        $region134: #{tpu_custom_call.1} parent=87 // pred_check_branch
          %738 = sbr.rel (%p736) target = $region136
        $region135: #{tpu_custom_call.1} parent=87 // pred_region
          %740 = dma.done [#allocation21], 64
        $region136: #{tpu_custom_call.1} parent=87 // pred_fallthru
          _
        // Predicated region
        $region137: #{tpu_custom_call.1} parent=87 // pred_check
          %p741 = pneg %p342
        $region138: #{tpu_custom_call.1} parent=87 // pred_check_branch
          %743 = sbr.rel (%p741) target = $region140
        $region139: #{tpu_custom_call.1} parent=87 // pred_region
          %745 = dma.done [#allocation21], 2048
        $region140: #{tpu_custom_call.1} parent=87 // pred_fallthru
          _
        // Predicated region
        $region141: #{tpu_custom_call.1} parent=87 // pred_check
          %p746 = pneg %p384
        $region142: #{tpu_custom_call.1} parent=87 // pred_check_branch
          %748 = sbr.rel (%p746) target = $region144
        $region143: #{tpu_custom_call.1} parent=87 // pred_region
          %750 = dma.done [#allocation24], 2048
        $region144: #{tpu_custom_call.1} parent=87 // pred_fallthru
          _
        %s751 = sand.u32 %s51, 1
        %s752 = scalar_lea.sflag [#allocation3], %s751
        %s753 = sand.u32 %s51, 1
        %s754 = smul.addr %s753, 8
        %s755 = scalar_lea.vmem [#allocation2], %s754
        %p756 = pneg %p64
        %p757 = pneg %p61
        %s758 = sand.u32 %s43, 1
        %s759 = scalar_lea.sflag [#allocation6], %s758
        %s760 = sand.u32 %s77, 1
        %s761 = smul.addr %s760, 16
        %s762 = scalar_lea.vmem [#allocation5], %s761
        %p763 = pneg %p90
        %p764 = pneg %p87
        %p765 = pneg %p111
        %p766 = pneg %p108
        %p767 = pneg %p132
        %p768 = pneg %p129
        %p769 = pneg %p153
        %p770 = pneg %p150
        %p771 = pneg %p174
        %p772 = pneg %p171
        %p773 = pneg %p195
        %p774 = pneg %p192
        %p775 = pneg %p216
        %p776 = pneg %p213
        %p777 = pneg %p237
        %p778 = pneg %p234
        %p779 = pneg %p258
        %p780 = pneg %p255
        %p781 = pneg %p279
        %p782 = pneg %p276
        %p783 = pneg %p300
        %p784 = pneg %p297
        %p785 = pneg %p321
        %p786 = pneg %p318
        %p787 = pneg %p342
        %p788 = pneg %p339
        %p789 = pneg %p363
        %p790 = pneg %p360
        %p791 = pneg %p384
        %p792 = pneg %p381
        %p793 = pneg %p405
        %p794 = pneg %p402
        %p795 = pneg %p431
        %p796 = pneg %p428
        %s797 = sand.u32 %s418, 1
        %s798 = scalar_lea.sflag [#allocation4], %s797
        %s799 = sand.u32 %s418, 1
        %s800 = smul.addr %s799, 8
        %s801 = scalar_lea.vmem [#allocation25], %s800
        %v802 = vld [vmem:[%s675] sm:$0xff]
        %v803 = vld [vmem:[%s685] sm:$0xff]
        %v804 = vld [vmem:[%s685 + $0x8] sm:$0xff]
        %v805 = vld [vmem:[%s12] sm:$0xff]
        %v806 = vlaneseq
        %v807 = vand.u32 %v806, 127
        %vm808 = vcmp.lt.s32.totalorder %v807, 32
        %v809 = vsel %vm808, 1, 0
        %v810 = vcvt.s32.f32 %v809
        %v811 = vld [vmem:[#allocation13] sm:$0xf]
        %v812 = vld [vmem:[#allocation7] sm:$0xff]
        %v813 = vld [vmem:[#allocation7 + $0x8] sm:$0xff]
        %v814 = vld [vmem:[#allocation7 + $0x10] sm:$0xff]
        %v815 = vld [vmem:[#allocation7 + $0x18] sm:$0xff]
        %v816 = vld [vmem:[#allocation7 + $0x20] sm:$0xff]
        %v817 = vld [vmem:[#allocation7 + $0x28] sm:$0xff]
        %v818 = vld [vmem:[#allocation7 + $0x30] sm:$0xff]
        %v819 = vld [vmem:[#allocation7 + $0x38] sm:$0xff]
        %v820 = vld [vmem:[#allocation7 + $0x40] sm:$0xff]
        %v821 = vld [vmem:[#allocation7 + $0x48] sm:$0xff]
        %v822 = vld [vmem:[#allocation7 + $0x50] sm:$0xff]
        %v823 = vld [vmem:[#allocation7 + $0x58] sm:$0xff]
        %v824 = vld [vmem:[#allocation7 + $0x60] sm:$0xff]
        %v825 = vld [vmem:[#allocation7 + $0x68] sm:$0xff]
        %v826 = vld [vmem:[#allocation7 + $0x70] sm:$0xff]
        %v827 = vld [vmem:[#allocation7 + $0x78] sm:$0xff]
        %v828 = vperm.slane %v811, 0
        %829 = vmatpush.msra.mxu0 %v827
        %830 = vmatpush.msra.mxu0 %v826
        %831 = vmatpush.msra.mxu0 %v825
        %832 = vmatpush.msra.mxu0 %v824
        %833 = vmatpush.msra.mxu0 %v823
        %834 = vmatpush.msra.mxu0 %v822
        %835 = vmatpush.msra.mxu0 %v821
        %836 = vmatpush.msra.mxu0 %v820
        %837 = vmatpush.msra.mxu0 %v819
        %838 = vmatpush.msra.mxu0 %v818
        %839 = vmatpush.msra.mxu0 %v817
        %840 = vmatpush.msra.mxu0 %v816
        %841 = vmatpush.msra.mxu0 %v815
        %842 = vmatpush.msra.mxu0 %v814
        %843 = vmatpush.msra.mxu0 %v813
        %844 = vmatpush.msra.mxu0 %v812
        %845 = vmatmul.f32.gmra.mxu0 %v802
        %v846 = vpop.f32.mrf.mxu0
        %v847 = vadd.f32 %v828, %v846
        %848 = vdwg.mxu0
        %v849 = vld [vmem:[#allocation8] sm:$0xff]
        %v850 = vld [vmem:[#allocation8 + $0x8] sm:$0xff]
        %v851 = vld [vmem:[#allocation8 + $0x10] sm:$0xff]
        %v852 = vld [vmem:[#allocation8 + $0x18] sm:$0xff]
        %v853 = vld [vmem:[#allocation8 + $0x20] sm:$0xff]
        %v854 = vld [vmem:[#allocation8 + $0x28] sm:$0xff]
        %v855 = vld [vmem:[#allocation8 + $0x30] sm:$0xff]
        %v856 = vld [vmem:[#allocation8 + $0x38] sm:$0xff]
        %v857 = vld [vmem:[#allocation8 + $0x40] sm:$0xff]
        %v858 = vld [vmem:[#allocation8 + $0x48] sm:$0xff]
        %v859 = vld [vmem:[#allocation8 + $0x50] sm:$0xff]
        %v860 = vld [vmem:[#allocation8 + $0x58] sm:$0xff]
        %v861 = vld [vmem:[#allocation8 + $0x60] sm:$0xff]
        %v862 = vld [vmem:[#allocation8 + $0x68] sm:$0xff]
        %v863 = vld [vmem:[#allocation8 + $0x70] sm:$0xff]
        %v864 = vld [vmem:[#allocation8 + $0x78] sm:$0xff]
        %v865 = vperm.slane %v811, 1
        %866 = vmatpush.msra.mxu0 %v864
        %867 = vmatpush.msra.mxu0 %v863
        %868 = vmatpush.msra.mxu0 %v862
        %869 = vmatpush.msra.mxu0 %v861
        %870 = vmatpush.msra.mxu0 %v860
        %871 = vmatpush.msra.mxu0 %v859
        %872 = vmatpush.msra.mxu0 %v858
        %873 = vmatpush.msra.mxu0 %v857
        %874 = vmatpush.msra.mxu0 %v856
        %875 = vmatpush.msra.mxu0 %v855
        %876 = vmatpush.msra.mxu0 %v854
        %877 = vmatpush.msra.mxu0 %v853
        %878 = vmatpush.msra.mxu0 %v852
        %879 = vmatpush.msra.mxu0 %v851
        %880 = vmatpush.msra.mxu0 %v850
        %881 = vmatpush.msra.mxu0 %v849
        %882 = vmatmul.f32.gmra.mxu0 %v802
        %v883 = vpop.f32.mrf.mxu0
        %v884 = vadd.f32 %v865, %v883
        %885 = vdwg.mxu0
        %v886 = vld [vmem:[#allocation10] sm:$0xff]
        %v887 = vld [vmem:[#allocation10 + $0x8] sm:$0xff]
        %v888 = vld [vmem:[#allocation10 + $0x10] sm:$0xff]
        %v889 = vld [vmem:[#allocation10 + $0x18] sm:$0xff]
        %v890 = vld [vmem:[#allocation10 + $0x20] sm:$0xff]
        %v891 = vld [vmem:[#allocation10 + $0x28] sm:$0xff]
        %v892 = vld [vmem:[#allocation10 + $0x30] sm:$0xff]
        %v893 = vld [vmem:[#allocation10 + $0x38] sm:$0xff]
        %v894 = vld [vmem:[#allocation10 + $0x40] sm:$0xff]
        %v895 = vld [vmem:[#allocation10 + $0x48] sm:$0xff]
        %v896 = vld [vmem:[#allocation10 + $0x50] sm:$0xff]
        %v897 = vld [vmem:[#allocation10 + $0x58] sm:$0xff]
        %v898 = vld [vmem:[#allocation10 + $0x60] sm:$0xff]
        %v899 = vld [vmem:[#allocation10 + $0x68] sm:$0xff]
        %v900 = vld [vmem:[#allocation10 + $0x70] sm:$0xff]
        %v901 = vld [vmem:[#allocation10 + $0x78] sm:$0xff]
        %v902 = vperm.slane %v811, 2
        %903 = vmatpush.msra.mxu0 %v901
        %904 = vmatpush.msra.mxu0 %v900
        %905 = vmatpush.msra.mxu0 %v899
        %906 = vmatpush.msra.mxu0 %v898
        %907 = vmatpush.msra.mxu0 %v897
        %908 = vmatpush.msra.mxu0 %v896
        %909 = vmatpush.msra.mxu0 %v895
        %910 = vmatpush.msra.mxu0 %v894
        %911 = vmatpush.msra.mxu0 %v893
        %912 = vmatpush.msra.mxu0 %v892
        %913 = vmatpush.msra.mxu0 %v891
        %914 = vmatpush.msra.mxu0 %v890
        %915 = vmatpush.msra.mxu0 %v889
        %916 = vmatpush.msra.mxu0 %v888
        %917 = vmatpush.msra.mxu0 %v887
        %918 = vmatpush.msra.mxu0 %v886
        %919 = vmatmul.f32.gmra.mxu0 %v802
        %v920 = vpop.f32.mrf.mxu0
        %v921 = vadd.f32 %v902, %v920
        %922 = vdwg.mxu0
        %924 = vrot.lane.b32.xlu0 %v847, 96
        %v925 = vpop.permute.xlu0 %924
        %926 = vrot.lane.b32.xlu0 %v847, 64
        %v927 = vpop.permute.xlu0 %926
        %928 = vrot.lane.b32.xlu0 %v847, 32
        %v929 = vpop.permute.xlu0 %928
        %931 = vrot.lane.b32.xlu0 %v884, 96
        %v932 = vpop.permute.xlu0 %931
        %934 = vrot.lane.b32.xlu0 %v884, 64
        %v935 = vpop.permute.xlu0 %934
        %937 = vrot.lane.b32.xlu0 %v884, 32
        %v938 = vpop.permute.xlu0 %937
        %940 = vxpose.xlu0.b32.start [1/16] %v884, 128
        %941 = vxpose.xlu0.b32.cont [2/16] 0.0, 128
        %942 = vxpose.xlu0.b32.cont [3/16] 0.0, 128
        %943 = vxpose.xlu0.b32.cont [4/16] 0.0, 128
        %944 = vxpose.xlu0.b32.cont [5/16] 0.0, 128
        %945 = vxpose.xlu0.b32.cont [6/16] 0.0, 128
        %946 = vxpose.xlu0.b32.cont [7/16] 0.0, 128
        %947 = vxpose.xlu0.b32.cont [8/16] 0.0, 128
        %948 = vxpose.xlu0.b32.cont [9/16] 0.0, 128
        %949 = vxpose.xlu0.b32.cont [10/16] 0.0, 128
        %950 = vxpose.xlu0.b32.cont [11/16] 0.0, 128
        %951 = vxpose.xlu0.b32.cont [12/16] 0.0, 128
        %952 = vxpose.xlu0.b32.cont [13/16] 0.0, 128
        %953 = vxpose.xlu0.b32.cont [14/16] 0.0, 128
        %954 = vxpose.xlu0.b32.cont [15/16] 0.0, 128
        %955 = vxpose.xlu0.b32.end [16/16] 0.0, 128
        %v956 = vpop.trf.xlu0
        %v957 = vpop.trf.xlu0
        %v958 = vpop.trf.xlu0
        %v959 = vpop.trf.xlu0
        %v960 = vpop.trf.xlu0
        %v961 = vpop.trf.xlu0
        %v962 = vpop.trf.xlu0
        %v963 = vpop.trf.xlu0
        %v964 = vpop.trf.xlu0
        %v965 = vpop.trf.xlu0
        %v966 = vpop.trf.xlu0
        %v967 = vpop.trf.xlu0
        %v968 = vpop.trf.xlu0
        %v969 = vpop.trf.xlu0
        %v970 = vpop.trf.xlu0
        %v971 = vpop.trf.xlu0
        %972 = vxpose.xlu0.b32.start [1/16] %v932, 128
        %973 = vxpose.xlu0.b32.cont [2/16] 0.0, 128
        %974 = vxpose.xlu0.b32.cont [3/16] 0.0, 128
        %975 = vxpose.xlu0.b32.cont [4/16] 0.0, 128
        %976 = vxpose.xlu0.b32.cont [5/16] 0.0, 128
        %977 = vxpose.xlu0.b32.cont [6/16] 0.0, 128
        %978 = vxpose.xlu0.b32.cont [7/16] 0.0, 128
        %979 = vxpose.xlu0.b32.cont [8/16] 0.0, 128
        %980 = vxpose.xlu0.b32.cont [9/16] 0.0, 128
        %981 = vxpose.xlu0.b32.cont [10/16] 0.0, 128
        %982 = vxpose.xlu0.b32.cont [11/16] 0.0, 128
        %983 = vxpose.xlu0.b32.cont [12/16] 0.0, 128
        %984 = vxpose.xlu0.b32.cont [13/16] 0.0, 128
        %985 = vxpose.xlu0.b32.cont [14/16] 0.0, 128
        %986 = vxpose.xlu0.b32.cont [15/16] 0.0, 128
        %987 = vxpose.xlu0.b32.end [16/16] 0.0, 128
        %v988 = vpop.trf.xlu0
        %v989 = vpop.trf.xlu0
        %v990 = vpop.trf.xlu0
        %v991 = vpop.trf.xlu0
        %v992 = vpop.trf.xlu0
        %v993 = vpop.trf.xlu0
        %v994 = vpop.trf.xlu0
        %v995 = vpop.trf.xlu0
        %v996 = vpop.trf.xlu0
        %v997 = vpop.trf.xlu0
        %v998 = vpop.trf.xlu0
        %v999 = vpop.trf.xlu0
        %v1000 = vpop.trf.xlu0
        %v1001 = vpop.trf.xlu0
        %v1002 = vpop.trf.xlu0
        %v1003 = vpop.trf.xlu0
        %1004 = vxpose.xlu0.b32.start [1/16] %v935, 128
        %1005 = vxpose.xlu0.b32.cont [2/16] 0.0, 128
        %1006 = vxpose.xlu0.b32.cont [3/16] 0.0, 128
        %1007 = vxpose.xlu0.b32.cont [4/16] 0.0, 128
        %1008 = vxpose.xlu0.b32.cont [5/16] 0.0, 128
        %1009 = vxpose.xlu0.b32.cont [6/16] 0.0, 128
        %1010 = vxpose.xlu0.b32.cont [7/16] 0.0, 128
        %1011 = vxpose.xlu0.b32.cont [8/16] 0.0, 128
        %1012 = vxpose.xlu0.b32.cont [9/16] 0.0, 128
        %1013 = vxpose.xlu0.b32.cont [10/16] 0.0, 128
        %1014 = vxpose.xlu0.b32.cont [11/16] 0.0, 128
        %1015 = vxpose.xlu0.b32.cont [12/16] 0.0, 128
        %1016 = vxpose.xlu0.b32.cont [13/16] 0.0, 128
        %1017 = vxpose.xlu0.b32.cont [14/16] 0.0, 128
        %1018 = vxpose.xlu0.b32.cont [15/16] 0.0, 128
        %1019 = vxpose.xlu0.b32.end [16/16] 0.0, 128
        %v1020 = vpop.trf.xlu0
        %v1021 = vpop.trf.xlu0
        %v1022 = vpop.trf.xlu0
        %v1023 = vpop.trf.xlu0
        %v1024 = vpop.trf.xlu0
        %v1025 = vpop.trf.xlu0
        %v1026 = vpop.trf.xlu0
        %v1027 = vpop.trf.xlu0
        %v1028 = vpop.trf.xlu0
        %v1029 = vpop.trf.xlu0
        %v1030 = vpop.trf.xlu0
        %v1031 = vpop.trf.xlu0
        %v1032 = vpop.trf.xlu0
        %v1033 = vpop.trf.xlu0
        %v1034 = vpop.trf.xlu0
        %v1035 = vpop.trf.xlu0
        %1036 = vxpose.xlu0.b32.start [1/16] %v938, 128
        %1037 = vxpose.xlu0.b32.cont [2/16] 0.0, 128
        %1038 = vxpose.xlu0.b32.cont [3/16] 0.0, 128
        %1039 = vxpose.xlu0.b32.cont [4/16] 0.0, 128
        %1040 = vxpose.xlu0.b32.cont [5/16] 0.0, 128
        %1041 = vxpose.xlu0.b32.cont [6/16] 0.0, 128
        %1042 = vxpose.xlu0.b32.cont [7/16] 0.0, 128
        %1043 = vxpose.xlu0.b32.cont [8/16] 0.0, 128
        %1044 = vxpose.xlu0.b32.cont [9/16] 0.0, 128
        %1045 = vxpose.xlu0.b32.cont [10/16] 0.0, 128
        %1046 = vxpose.xlu0.b32.cont [11/16] 0.0, 128
        %1047 = vxpose.xlu0.b32.cont [12/16] 0.0, 128
        %1048 = vxpose.xlu0.b32.cont [13/16] 0.0, 128
        %1049 = vxpose.xlu0.b32.cont [14/16] 0.0, 128
        %1050 = vxpose.xlu0.b32.cont [15/16] 0.0, 128
        %1051 = vxpose.xlu0.b32.end [16/16] 0.0, 128
        %v1052 = vpop.trf.xlu0
        %v1053 = vpop.trf.xlu0
        %v1054 = vpop.trf.xlu0
        %v1055 = vpop.trf.xlu0
        %v1056 = vpop.trf.xlu0
        %v1057 = vpop.trf.xlu0
        %v1058 = vpop.trf.xlu0
        %v1059 = vpop.trf.xlu0
        %v1060 = vpop.trf.xlu0
        %v1061 = vpop.trf.xlu0
        %v1062 = vpop.trf.xlu0
        %v1063 = vpop.trf.xlu0
        %v1064 = vpop.trf.xlu0
        %v1065 = vpop.trf.xlu0
        %v1066 = vpop.trf.xlu0
        %v1067 = vpop.trf.xlu0
        %vm1068 = vcmask 261120
        %v1069 = vsel %vm1068, %v847, 0
        %1071 = vmatpush.msra.mxu0 0.0
        %1072 = vmatpush.msra.mxu0 0.0
        %1073 = vmatpush.msra.mxu0 0.0
        %1074 = vmatpush.msra.mxu0 0.0
        %1075 = vmatpush.msra.mxu0 0.0
        %1076 = vmatpush.msra.mxu0 0.0
        %1077 = vmatpush.msra.mxu0 0.0
        %1078 = vmatpush.msra.mxu0 0.0
        %1079 = vmatpush.msra.mxu0 0.0
        %1080 = vmatpush.msra.mxu0 0.0
        %1081 = vmatpush.msra.mxu0 0.0
        %1082 = vmatpush.msra.mxu0 0.0
        %1083 = vmatpush.msra.mxu0 %v959
        %1084 = vmatpush.msra.mxu0 %v958
        %1085 = vmatpush.msra.mxu0 %v957
        %1086 = vmatpush.msra.mxu0 %v956
        %1087 = vmatmul.f32.gmra.mxu0 %v1069
        %v1088 = vpop.f32.mrf.mxu0
        %v1089 = vadd.f32 0.0, %v1088
        %1090 = vdwg.mxu0
        %v1091 = vsel %vm1068, %v925, 0
        %1093 = vmatpush.msra.mxu0 0.0
        %1094 = vmatpush.msra.mxu0 0.0
        %1095 = vmatpush.msra.mxu0 0.0
        %1096 = vmatpush.msra.mxu0 0.0
        %1097 = vmatpush.msra.mxu0 0.0
        %1098 = vmatpush.msra.mxu0 0.0
        %1099 = vmatpush.msra.mxu0 0.0
        %1100 = vmatpush.msra.mxu0 0.0
        %1101 = vmatpush.msra.mxu0 0.0
        %1102 = vmatpush.msra.mxu0 0.0
        %1103 = vmatpush.msra.mxu0 0.0
        %1104 = vmatpush.msra.mxu0 0.0
        %1105 = vmatpush.msra.mxu0 %v991
        %1106 = vmatpush.msra.mxu0 %v990
        %1107 = vmatpush.msra.mxu0 %v989
        %1108 = vmatpush.msra.mxu0 %v988
        %1109 = vmatmul.f32.gmra.mxu0 %v1091
        %v1110 = vpop.f32.mrf.mxu0
        %v1111 = vadd.f32 0.0, %v1110
        %1112 = vdwg.mxu0
        %v1113 = vsel %vm1068, %v927, 0
        %1115 = vmatpush.msra.mxu0 0.0
        %1116 = vmatpush.msra.mxu0 0.0
        %1117 = vmatpush.msra.mxu0 0.0
        %1118 = vmatpush.msra.mxu0 0.0
        %1119 = vmatpush.msra.mxu0 0.0
        %1120 = vmatpush.msra.mxu0 0.0
        %1121 = vmatpush.msra.mxu0 0.0
        %1122 = vmatpush.msra.mxu0 0.0
        %1123 = vmatpush.msra.mxu0 0.0
        %1124 = vmatpush.msra.mxu0 0.0
        %1125 = vmatpush.msra.mxu0 0.0
        %1126 = vmatpush.msra.mxu0 0.0
        %1127 = vmatpush.msra.mxu0 %v1023
        %1128 = vmatpush.msra.mxu0 %v1022
        %1129 = vmatpush.msra.mxu0 %v1021
        %1130 = vmatpush.msra.mxu0 %v1020
        %1131 = vmatmul.f32.gmra.mxu0 %v1113
        %v1132 = vpop.f32.mrf.mxu0
        %v1133 = vadd.f32 0.0, %v1132
        %1134 = vdwg.mxu0
        %v1135 = vsel %vm1068, %v929, 0
        %1137 = vmatpush.msra.mxu0 0.0
        %1138 = vmatpush.msra.mxu0 0.0
        %1139 = vmatpush.msra.mxu0 0.0
        %1140 = vmatpush.msra.mxu0 0.0
        %1141 = vmatpush.msra.mxu0 0.0
        %1142 = vmatpush.msra.mxu0 0.0
        %1143 = vmatpush.msra.mxu0 0.0
        %1144 = vmatpush.msra.mxu0 0.0
        %1145 = vmatpush.msra.mxu0 0.0
        %1146 = vmatpush.msra.mxu0 0.0
        %1147 = vmatpush.msra.mxu0 0.0
        %1148 = vmatpush.msra.mxu0 0.0
        %1149 = vmatpush.msra.mxu0 %v1055
        %1150 = vmatpush.msra.mxu0 %v1054
        %1151 = vmatpush.msra.mxu0 %v1053
        %1152 = vmatpush.msra.mxu0 %v1052
        %1153 = vmatmul.f32.gmra.mxu0 %v1135
        %v1154 = vpop.f32.mrf.mxu0
        %v1155 = vadd.f32 0.0, %v1154
        %1156 = vdwg.mxu0
        %vm1157 = vcmask 64512
        %v1158 = vsel %vm1157, %v1089, -inf
        %1159 = vmax.xlane.f32.xlu0 %v1158
        %v1160 = vpop.xlane.xlu0 %1159
        %v1161 = vsel %vm1157, %v1111, -inf
        %1162 = vmax.xlane.f32.xlu0 %v1161
        %v1163 = vpop.xlane.xlu0 %1162
        %v1164 = vsel %vm1157, %v1133, -inf
        %1165 = vmax.xlane.f32.xlu0 %v1164
        %v1166 = vpop.xlane.xlu0 %1165
        %v1167 = vsel %vm1157, %v1155, -inf
        %1168 = vmax.xlane.f32.xlu0 %v1167
        %v1169 = vpop.xlane.xlu0 %1168
        %v1170 = vsub.f32 %v1089, %v1160
        %v1171 = vsub.f32 %v1111, %v1163
        %v1172 = vsub.f32 %v1133, %v1166
        %v1173 = vsub.f32 %v1155, %v1169
        %v1174 = vmul.f32 %v1170, 1.442695
        %v1175 = vpow.pop %v1174
        %v1176 = vmul.f32 %v1171, 1.442695
        %v1177 = vpow.pop %v1176
        %v1178 = vmul.f32 %v1172, 1.442695
        %v1179 = vpow.pop %v1178
        %v1180 = vmul.f32 %v1173, 1.442695
        %v1181 = vpow.pop %v1180
        %v1182 = vsel %vm1157, %v1175, 0.0
        %1183 = vadd.xlane.f32.xlu0 %v1182
        %v1184 = vpop.xlane.xlu0 %1183
        %v1185 = vsel %vm1157, %v1177, 0.0
        %1186 = vadd.xlane.f32.xlu0 %v1185
        %v1187 = vpop.xlane.xlu0 %1186
        %v1188 = vsel %vm1157, %v1179, 0.0
        %1189 = vadd.xlane.f32.xlu0 %v1188
        %v1190 = vpop.xlane.xlu0 %1189
        %v1191 = vsel %vm1157, %v1181, 0.0
        %1192 = vadd.xlane.f32.xlu0 %v1191
        %v1193 = vpop.xlane.xlu0 %1192
        %v1194 = vrcp.pop %v1184
        %v1195 = vrcp.pop %v1187
        %v1196 = vrcp.pop %v1190
        %v1197 = vrcp.pop %v1193
        %v1198 = vmul.f32 %v1175, %v1194
        %v1199 = vmul.f32 %v1177, %v1195
        %v1200 = vmul.f32 %v1179, %v1196
        %v1201 = vmul.f32 %v1181, %v1197
        %1203 = vrot.lane.b32.xlu0 %v921, 96
        %v1204 = vpop.permute.xlu0 %1203
        %1206 = vrot.lane.b32.xlu0 %v921, 64
        %v1207 = vpop.permute.xlu0 %1206
        %1209 = vrot.lane.b32.xlu0 %v921, 32
        %v1210 = vpop.permute.xlu0 %1209
        %1212 = vxpose.xlu0.b32.start [1/16] %v921, 128
        %1213 = vxpose.xlu0.b32.cont [2/16] 0.0, 128
        %1214 = vxpose.xlu0.b32.cont [3/16] 0.0, 128
        %1215 = vxpose.xlu0.b32.cont [4/16] 0.0, 128
        %1216 = vxpose.xlu0.b32.cont [5/16] 0.0, 128
        %1217 = vxpose.xlu0.b32.cont [6/16] 0.0, 128
        %1218 = vxpose.xlu0.b32.cont [7/16] 0.0, 128
        %1219 = vxpose.xlu0.b32.cont [8/16] 0.0, 128
        %1220 = vxpose.xlu0.b32.cont [9/16] 0.0, 128
        %1221 = vxpose.xlu0.b32.cont [10/16] 0.0, 128
        %1222 = vxpose.xlu0.b32.cont [11/16] 0.0, 128
        %1223 = vxpose.xlu0.b32.cont [12/16] 0.0, 128
        %1224 = vxpose.xlu0.b32.cont [13/16] 0.0, 128
        %1225 = vxpose.xlu0.b32.cont [14/16] 0.0, 128
        %1226 = vxpose.xlu0.b32.cont [15/16] 0.0, 128
        %1227 = vxpose.xlu0.b32.end [16/16] 0.0, 128
        %v1228 = vpop.trf.xlu0
        %v1229 = vpop.trf.xlu0
        %v1230 = vpop.trf.xlu0
        %v1231 = vpop.trf.xlu0
        %v1232 = vpop.trf.xlu0
        %v1233 = vpop.trf.xlu0
        %v1234 = vpop.trf.xlu0
        %v1235 = vpop.trf.xlu0
        %v1236 = vpop.trf.xlu0
        %v1237 = vpop.trf.xlu0
        %v1238 = vpop.trf.xlu0
        %v1239 = vpop.trf.xlu0
        %v1240 = vpop.trf.xlu0
        %v1241 = vpop.trf.xlu0
        %v1242 = vpop.trf.xlu0
        %v1243 = vpop.trf.xlu0
        %1244 = vxpose.xlu0.b32.start [1/16] %v1204, 128
        %1245 = vxpose.xlu0.b32.cont [2/16] 0.0, 128
        %1246 = vxpose.xlu0.b32.cont [3/16] 0.0, 128
        %1247 = vxpose.xlu0.b32.cont [4/16] 0.0, 128
        %1248 = vxpose.xlu0.b32.cont [5/16] 0.0, 128
        %1249 = vxpose.xlu0.b32.cont [6/16] 0.0, 128
        %1250 = vxpose.xlu0.b32.cont [7/16] 0.0, 128
        %1251 = vxpose.xlu0.b32.cont [8/16] 0.0, 128
        %1252 = vxpose.xlu0.b32.cont [9/16] 0.0, 128
        %1253 = vxpose.xlu0.b32.cont [10/16] 0.0, 128
        %1254 = vxpose.xlu0.b32.cont [11/16] 0.0, 128
        %1255 = vxpose.xlu0.b32.cont [12/16] 0.0, 128
        %1256 = vxpose.xlu0.b32.cont [13/16] 0.0, 128
        %1257 = vxpose.xlu0.b32.cont [14/16] 0.0, 128
        %1258 = vxpose.xlu0.b32.cont [15/16] 0.0, 128
        %1259 = vxpose.xlu0.b32.end [16/16] 0.0, 128
        %v1260 = vpop.trf.xlu0
        %v1261 = vpop.trf.xlu0
        %v1262 = vpop.trf.xlu0
        %v1263 = vpop.trf.xlu0
        %v1264 = vpop.trf.xlu0
        %v1265 = vpop.trf.xlu0
        %v1266 = vpop.trf.xlu0
        %v1267 = vpop.trf.xlu0
        %v1268 = vpop.trf.xlu0
        %v1269 = vpop.trf.xlu0
        %v1270 = vpop.trf.xlu0
        %v1271 = vpop.trf.xlu0
        %v1272 = vpop.trf.xlu0
        %v1273 = vpop.trf.xlu0
        %v1274 = vpop.trf.xlu0
        %v1275 = vpop.trf.xlu0
        %1276 = vxpose.xlu0.b32.start [1/16] %v1207, 128
        %1277 = vxpose.xlu0.b32.cont [2/16] 0.0, 128
        %1278 = vxpose.xlu0.b32.cont [3/16] 0.0, 128
        %1279 = vxpose.xlu0.b32.cont [4/16] 0.0, 128
        %1280 = vxpose.xlu0.b32.cont [5/16] 0.0, 128
        %1281 = vxpose.xlu0.b32.cont [6/16] 0.0, 128
        %1282 = vxpose.xlu0.b32.cont [7/16] 0.0, 128
        %1283 = vxpose.xlu0.b32.cont [8/16] 0.0, 128
        %1284 = vxpose.xlu0.b32.cont [9/16] 0.0, 128
        %1285 = vxpose.xlu0.b32.cont [10/16] 0.0, 128
        %1286 = vxpose.xlu0.b32.cont [11/16] 0.0, 128
        %1287 = vxpose.xlu0.b32.cont [12/16] 0.0, 128
        %1288 = vxpose.xlu0.b32.cont [13/16] 0.0, 128
        %1289 = vxpose.xlu0.b32.cont [14/16] 0.0, 128
        %1290 = vxpose.xlu0.b32.cont [15/16] 0.0, 128
        %1291 = vxpose.xlu0.b32.end [16/16] 0.0, 128
        %v1292 = vpop.trf.xlu0
        %v1293 = vpop.trf.xlu0
        %v1294 = vpop.trf.xlu0
        %v1295 = vpop.trf.xlu0
        %v1296 = vpop.trf.xlu0
        %v1297 = vpop.trf.xlu0
        %v1298 = vpop.trf.xlu0
        %v1299 = vpop.trf.xlu0
        %v1300 = vpop.trf.xlu0
        %v1301 = vpop.trf.xlu0
        %v1302 = vpop.trf.xlu0
        %v1303 = vpop.trf.xlu0
        %v1304 = vpop.trf.xlu0
        %v1305 = vpop.trf.xlu0
        %v1306 = vpop.trf.xlu0
        %v1307 = vpop.trf.xlu0
        %1308 = vxpose.xlu0.b32.start [1/16] %v1210, 128
        %1309 = vxpose.xlu0.b32.cont [2/16] 0.0, 128
        %1310 = vxpose.xlu0.b32.cont [3/16] 0.0, 128
        %1311 = vxpose.xlu0.b32.cont [4/16] 0.0, 128
        %1312 = vxpose.xlu0.b32.cont [5/16] 0.0, 128
        %1313 = vxpose.xlu0.b32.cont [6/16] 0.0, 128
        %1314 = vxpose.xlu0.b32.cont [7/16] 0.0, 128
        %1315 = vxpose.xlu0.b32.cont [8/16] 0.0, 128
        %1316 = vxpose.xlu0.b32.cont [9/16] 0.0, 128
        %1317 = vxpose.xlu0.b32.cont [10/16] 0.0, 128
        %1318 = vxpose.xlu0.b32.cont [11/16] 0.0, 128
        %1319 = vxpose.xlu0.b32.cont [12/16] 0.0, 128
        %1320 = vxpose.xlu0.b32.cont [13/16] 0.0, 128
        %1321 = vxpose.xlu0.b32.cont [14/16] 0.0, 128
        %1322 = vxpose.xlu0.b32.cont [15/16] 0.0, 128
        %1323 = vxpose.xlu0.b32.end [16/16] 0.0, 128
        %v1324 = vpop.trf.xlu0
        %v1325 = vpop.trf.xlu0
        %v1326 = vpop.trf.xlu0
        %v1327 = vpop.trf.xlu0
        %v1328 = vpop.trf.xlu0
        %v1329 = vpop.trf.xlu0
        %v1330 = vpop.trf.xlu0
        %v1331 = vpop.trf.xlu0
        %v1332 = vpop.trf.xlu0
        %v1333 = vpop.trf.xlu0
        %v1334 = vpop.trf.xlu0
        %v1335 = vpop.trf.xlu0
        %v1336 = vpop.trf.xlu0
        %v1337 = vpop.trf.xlu0
        %v1338 = vpop.trf.xlu0
        %v1339 = vpop.trf.xlu0
        %v1341 = vsel %vm1157, %v1228, 0
        %v1344 = vsel %vm1157, %v1229, 0
        %v1347 = vsel %vm1157, %v1230, 0
        %v1350 = vsel %vm1157, %v1231, 0
        %v1353 = vsel %vm1157, %v1198, 0
        %1355 = vmatpush.xpose.msra.mxu0 0.0
        %1356 = vmatpush.xpose.msra.mxu0 0.0
        %1357 = vmatpush.xpose.msra.mxu0 0.0
        %1358 = vmatpush.xpose.msra.mxu0 0.0
        %1359 = vmatpush.xpose.msra.mxu0 0.0
        %1360 = vmatpush.xpose.msra.mxu0 0.0
        %1361 = vmatpush.xpose.msra.mxu0 0.0
        %1362 = vmatpush.xpose.msra.mxu0 0.0
        %1363 = vmatpush.xpose.msra.mxu0 0.0
        %1364 = vmatpush.xpose.msra.mxu0 0.0
        %1365 = vmatpush.xpose.msra.mxu0 0.0
        %1366 = vmatpush.xpose.msra.mxu0 0.0
        %1367 = vmatpush.xpose.msra.mxu0 0.0
        %1368 = vmatpush.xpose.msra.mxu0 0.0
        %1369 = vmatpush.xpose.msra.mxu0 0.0
        %1370 = vmatpush.xpose.msra.mxu0 %v1353
        %1371 = vmatmul.f32.gmra.mxu0 %v1341
        %v1372 = vpop.f32.mrf.mxu0
        %v1373 = vadd.f32 0.0, %v1372
        %1374 = vmatmul.f32.gmra.mxu0 %v1344
        %v1375 = vpop.f32.mrf.mxu0
        %v1376 = vadd.f32 0.0, %v1375
        %1377 = vmatmul.f32.gmra.mxu0 %v1347
        %v1378 = vpop.f32.mrf.mxu0
        %v1379 = vadd.f32 0.0, %v1378
        %1380 = vmatmul.f32.gmra.mxu0 %v1350
        %v1381 = vpop.f32.mrf.mxu0
        %v1382 = vadd.f32 0.0, %v1381
        %1383 = vdwg.mxu0
        %v1385 = vsel %vm1157, %v1260, 0
        %v1388 = vsel %vm1157, %v1261, 0
        %v1391 = vsel %vm1157, %v1262, 0
        %v1394 = vsel %vm1157, %v1263, 0
        %v1397 = vsel %vm1157, %v1199, 0
        %1399 = vmatpush.xpose.msra.mxu0 0.0
        %1400 = vmatpush.xpose.msra.mxu0 0.0
        %1401 = vmatpush.xpose.msra.mxu0 0.0
        %1402 = vmatpush.xpose.msra.mxu0 0.0
        %1403 = vmatpush.xpose.msra.mxu0 0.0
        %1404 = vmatpush.xpose.msra.mxu0 0.0
        %1405 = vmatpush.xpose.msra.mxu0 0.0
        %1406 = vmatpush.xpose.msra.mxu0 0.0
        %1407 = vmatpush.xpose.msra.mxu0 0.0
        %1408 = vmatpush.xpose.msra.mxu0 0.0
        %1409 = vmatpush.xpose.msra.mxu0 0.0
        %1410 = vmatpush.xpose.msra.mxu0 0.0
        %1411 = vmatpush.xpose.msra.mxu0 0.0
        %1412 = vmatpush.xpose.msra.mxu0 0.0
        %1413 = vmatpush.xpose.msra.mxu0 0.0
        %1414 = vmatpush.xpose.msra.mxu0 %v1397
        %1415 = vmatmul.f32.gmra.mxu0 %v1385
        %v1416 = vpop.f32.mrf.mxu0
        %v1417 = vadd.f32 0.0, %v1416
        %1418 = vmatmul.f32.gmra.mxu0 %v1388
        %v1419 = vpop.f32.mrf.mxu0
        %v1420 = vadd.f32 0.0, %v1419
        %1421 = vmatmul.f32.gmra.mxu0 %v1391
        %v1422 = vpop.f32.mrf.mxu0
        %v1423 = vadd.f32 0.0, %v1422
        %1424 = vmatmul.f32.gmra.mxu0 %v1394
        %v1425 = vpop.f32.mrf.mxu0
        %v1426 = vadd.f32 0.0, %v1425
        %1427 = vdwg.mxu0
        %v1429 = vsel %vm1157, %v1292, 0
        %v1432 = vsel %vm1157, %v1293, 0
        %v1435 = vsel %vm1157, %v1294, 0
        %v1438 = vsel %vm1157, %v1295, 0
        %v1441 = vsel %vm1157, %v1200, 0
        %1443 = vmatpush.xpose.msra.mxu0 0.0
        %1444 = vmatpush.xpose.msra.mxu0 0.0
        %1445 = vmatpush.xpose.msra.mxu0 0.0
        %1446 = vmatpush.xpose.msra.mxu0 0.0
        %1447 = vmatpush.xpose.msra.mxu0 0.0
        %1448 = vmatpush.xpose.msra.mxu0 0.0
        %1449 = vmatpush.xpose.msra.mxu0 0.0
        %1450 = vmatpush.xpose.msra.mxu0 0.0
        %1451 = vmatpush.xpose.msra.mxu0 0.0
        %1452 = vmatpush.xpose.msra.mxu0 0.0
        %1453 = vmatpush.xpose.msra.mxu0 0.0
        %1454 = vmatpush.xpose.msra.mxu0 0.0
        %1455 = vmatpush.xpose.msra.mxu0 0.0
        %1456 = vmatpush.xpose.msra.mxu0 0.0
        %1457 = vmatpush.xpose.msra.mxu0 0.0
        %1458 = vmatpush.xpose.msra.mxu0 %v1441
        %1459 = vmatmul.f32.gmra.mxu0 %v1429
        %v1460 = vpop.f32.mrf.mxu0
        %v1461 = vadd.f32 0.0, %v1460
        %1462 = vmatmul.f32.gmra.mxu0 %v1432
        %v1463 = vpop.f32.mrf.mxu0
        %v1464 = vadd.f32 0.0, %v1463
        %1465 = vmatmul.f32.gmra.mxu0 %v1435
        %v1466 = vpop.f32.mrf.mxu0
        %v1467 = vadd.f32 0.0, %v1466
        %1468 = vmatmul.f32.gmra.mxu0 %v1438
        %v1469 = vpop.f32.mrf.mxu0
        %v1470 = vadd.f32 0.0, %v1469
        %1471 = vdwg.mxu0
        %v1473 = vsel %vm1157, %v1324, 0
        %v1476 = vsel %vm1157, %v1325, 0
        %v1479 = vsel %vm1157, %v1326, 0
        %v1482 = vsel %vm1157, %v1327, 0
        %v1485 = vsel %vm1157, %v1201, 0
        %1487 = vmatpush.xpose.msra.mxu0 0.0
        %1488 = vmatpush.xpose.msra.mxu0 0.0
        %1489 = vmatpush.xpose.msra.mxu0 0.0
        %1490 = vmatpush.xpose.msra.mxu0 0.0
        %1491 = vmatpush.xpose.msra.mxu0 0.0
        %1492 = vmatpush.xpose.msra.mxu0 0.0
        %1493 = vmatpush.xpose.msra.mxu0 0.0
        %1494 = vmatpush.xpose.msra.mxu0 0.0
        %1495 = vmatpush.xpose.msra.mxu0 0.0
        %1496 = vmatpush.xpose.msra.mxu0 0.0
        %1497 = vmatpush.xpose.msra.mxu0 0.0
        %1498 = vmatpush.xpose.msra.mxu0 0.0
        %1499 = vmatpush.xpose.msra.mxu0 0.0
        %1500 = vmatpush.xpose.msra.mxu0 0.0
        %1501 = vmatpush.xpose.msra.mxu0 0.0
        %1502 = vmatpush.xpose.msra.mxu0 %v1485
        %1503 = vmatmul.f32.gmra.mxu0 %v1473
        %v1504 = vpop.f32.mrf.mxu0
        %v1505 = vadd.f32 0.0, %v1504
        %1506 = vmatmul.f32.gmra.mxu0 %v1476
        %v1507 = vpop.f32.mrf.mxu0
        %v1508 = vadd.f32 0.0, %v1507
        %1509 = vmatmul.f32.gmra.mxu0 %v1479
        %v1510 = vpop.f32.mrf.mxu0
        %v1511 = vadd.f32 0.0, %v1510
        %1512 = vmatmul.f32.gmra.mxu0 %v1482
        %v1513 = vpop.f32.mrf.mxu0
        %v1514 = vadd.f32 0.0, %v1513
        %1515 = vdwg.mxu0
        %1516 = vxpose.xlu0.b32.start [1/16] %v1373, 128
        %1517 = vxpose.xlu0.b32.cont [2/16] %v1376, 128
        %1518 = vxpose.xlu0.b32.cont [3/16] %v1379, 128
        %1519 = vxpose.xlu0.b32.cont [4/16] %v1382, 128
        %1520 = vxpose.xlu0.b32.cont [5/16] 0.0, 128
        %1521 = vxpose.xlu0.b32.cont [6/16] 0.0, 128
        %1522 = vxpose.xlu0.b32.cont [7/16] 0.0, 128
        %1523 = vxpose.xlu0.b32.cont [8/16] 0.0, 128
        %1524 = vxpose.xlu0.b32.cont [9/16] 0.0, 128
        %1525 = vxpose.xlu0.b32.cont [10/16] 0.0, 128
        %1526 = vxpose.xlu0.b32.cont [11/16] 0.0, 128
        %1527 = vxpose.xlu0.b32.cont [12/16] 0.0, 128
        %1528 = vxpose.xlu0.b32.cont [13/16] 0.0, 128
        %1529 = vxpose.xlu0.b32.cont [14/16] 0.0, 128
        %1530 = vxpose.xlu0.b32.cont [15/16] 0.0, 128
        %1531 = vxpose.xlu0.b32.end [16/16] 0.0, 128
        %v1532 = vpop.trf.xlu0
        %v1533 = vpop.trf.xlu0
        %v1534 = vpop.trf.xlu0
        %v1535 = vpop.trf.xlu0
        %v1536 = vpop.trf.xlu0
        %v1537 = vpop.trf.xlu0
        %v1538 = vpop.trf.xlu0
        %v1539 = vpop.trf.xlu0
        %v1540 = vpop.trf.xlu0
        %v1541 = vpop.trf.xlu0
        %v1542 = vpop.trf.xlu0
        %v1543 = vpop.trf.xlu0
        %v1544 = vpop.trf.xlu0
        %v1545 = vpop.trf.xlu0
        %v1546 = vpop.trf.xlu0
        %v1547 = vpop.trf.xlu0
        %1548 = vxpose.xlu0.b32.start [1/16] %v1417, 128
        %1549 = vxpose.xlu0.b32.cont [2/16] %v1420, 128
        %1550 = vxpose.xlu0.b32.cont [3/16] %v1423, 128
        %1551 = vxpose.xlu0.b32.cont [4/16] %v1426, 128
        %1552 = vxpose.xlu0.b32.cont [5/16] 0.0, 128
        %1553 = vxpose.xlu0.b32.cont [6/16] 0.0, 128
        %1554 = vxpose.xlu0.b32.cont [7/16] 0.0, 128
        %1555 = vxpose.xlu0.b32.cont [8/16] 0.0, 128
        %1556 = vxpose.xlu0.b32.cont [9/16] 0.0, 128
        %1557 = vxpose.xlu0.b32.cont [10/16] 0.0, 128
        %1558 = vxpose.xlu0.b32.cont [11/16] 0.0, 128
        %1559 = vxpose.xlu0.b32.cont [12/16] 0.0, 128
        %1560 = vxpose.xlu0.b32.cont [13/16] 0.0, 128
        %1561 = vxpose.xlu0.b32.cont [14/16] 0.0, 128
        %1562 = vxpose.xlu0.b32.cont [15/16] 0.0, 128
        %1563 = vxpose.xlu0.b32.end [16/16] 0.0, 128
        %v1564 = vpop.trf.xlu0
        %v1565 = vpop.trf.xlu0
        %v1566 = vpop.trf.xlu0
        %v1567 = vpop.trf.xlu0
        %v1568 = vpop.trf.xlu0
        %v1569 = vpop.trf.xlu0
        %v1570 = vpop.trf.xlu0
        %v1571 = vpop.trf.xlu0
        %v1572 = vpop.trf.xlu0
        %v1573 = vpop.trf.xlu0
        %v1574 = vpop.trf.xlu0
        %v1575 = vpop.trf.xlu0
        %v1576 = vpop.trf.xlu0
        %v1577 = vpop.trf.xlu0
        %v1578 = vpop.trf.xlu0
        %v1579 = vpop.trf.xlu0
        %1580 = vxpose.xlu0.b32.start [1/16] %v1461, 128
        %1581 = vxpose.xlu0.b32.cont [2/16] %v1464, 128
        %1582 = vxpose.xlu0.b32.cont [3/16] %v1467, 128
        %1583 = vxpose.xlu0.b32.cont [4/16] %v1470, 128
        %1584 = vxpose.xlu0.b32.cont [5/16] 0.0, 128
        %1585 = vxpose.xlu0.b32.cont [6/16] 0.0, 128
        %1586 = vxpose.xlu0.b32.cont [7/16] 0.0, 128
        %1587 = vxpose.xlu0.b32.cont [8/16] 0.0, 128
        %1588 = vxpose.xlu0.b32.cont [9/16] 0.0, 128
        %1589 = vxpose.xlu0.b32.cont [10/16] 0.0, 128
        %1590 = vxpose.xlu0.b32.cont [11/16] 0.0, 128
        %1591 = vxpose.xlu0.b32.cont [12/16] 0.0, 128
        %1592 = vxpose.xlu0.b32.cont [13/16] 0.0, 128
        %1593 = vxpose.xlu0.b32.cont [14/16] 0.0, 128
        %1594 = vxpose.xlu0.b32.cont [15/16] 0.0, 128
        %1595 = vxpose.xlu0.b32.end [16/16] 0.0, 128
        %v1596 = vpop.trf.xlu0
        %v1597 = vpop.trf.xlu0
        %v1598 = vpop.trf.xlu0
        %v1599 = vpop.trf.xlu0
        %v1600 = vpop.trf.xlu0
        %v1601 = vpop.trf.xlu0
        %v1602 = vpop.trf.xlu0
        %v1603 = vpop.trf.xlu0
        %v1604 = vpop.trf.xlu0
        %v1605 = vpop.trf.xlu0
        %v1606 = vpop.trf.xlu0
        %v1607 = vpop.trf.xlu0
        %v1608 = vpop.trf.xlu0
        %v1609 = vpop.trf.xlu0
        %v1610 = vpop.trf.xlu0
        %v1611 = vpop.trf.xlu0
        %1612 = vxpose.xlu0.b32.start [1/16] %v1505, 128
        %1613 = vxpose.xlu0.b32.cont [2/16] %v1508, 128
        %1614 = vxpose.xlu0.b32.cont [3/16] %v1511, 128
        %1615 = vxpose.xlu0.b32.cont [4/16] %v1514, 128
        %1616 = vxpose.xlu0.b32.cont [5/16] 0.0, 128
        %1617 = vxpose.xlu0.b32.cont [6/16] 0.0, 128
        %1618 = vxpose.xlu0.b32.cont [7/16] 0.0, 128
        %1619 = vxpose.xlu0.b32.cont [8/16] 0.0, 128
        %1620 = vxpose.xlu0.b32.cont [9/16] 0.0, 128
        %1621 = vxpose.xlu0.b32.cont [10/16] 0.0, 128
        %1622 = vxpose.xlu0.b32.cont [11/16] 0.0, 128
        %1623 = vxpose.xlu0.b32.cont [12/16] 0.0, 128
        %1624 = vxpose.xlu0.b32.cont [13/16] 0.0, 128
        %1625 = vxpose.xlu0.b32.cont [14/16] 0.0, 128
        %1626 = vxpose.xlu0.b32.cont [15/16] 0.0, 128
        %1627 = vxpose.xlu0.b32.end [16/16] 0.0, 128
        %v1628 = vpop.trf.xlu0
        %v1629 = vpop.trf.xlu0
        %v1630 = vpop.trf.xlu0
        %v1631 = vpop.trf.xlu0
        %v1632 = vpop.trf.xlu0
        %v1633 = vpop.trf.xlu0
        %v1634 = vpop.trf.xlu0
        %v1635 = vpop.trf.xlu0
        %v1636 = vpop.trf.xlu0
        %v1637 = vpop.trf.xlu0
        %v1638 = vpop.trf.xlu0
        %v1639 = vpop.trf.xlu0
        %v1640 = vpop.trf.xlu0
        %v1641 = vpop.trf.xlu0
        %v1642 = vpop.trf.xlu0
        %v1643 = vpop.trf.xlu0
        %v1644 = vrot.slane %v1596, 4
        %vm1645 = vcmask 1047556
        %v1646 = vsel %vm1645, %v1644, %v1532
        %v1647 = vrot.slane %v1532, 4
        %v1648 = vsel %vm1645, %v1596, %v1647
        %v1650 = vunpack.c.l.s4 1983009808
        %v1651 = vunpack.c.0.s8 %v1650
        %v1652 = vperm.slane %v1646, %v1651
        %v1654 = vunpack.c.l.s4 1983009808
        %v1655 = vunpack.c.0.s8 %v1654
        %v1656 = vperm.slane %v1648, %v1655
        %v1657 = vrot.slane %v1628, 4
        %v1658 = vsel %vm1645, %v1657, %v1564
        %v1659 = vrot.slane %v1564, 4
        %v1660 = vsel %vm1645, %v1628, %v1659
        %v1662 = vunpack.c.l.s4 1983009808
        %v1663 = vunpack.c.0.s8 %v1662
        %v1664 = vperm.slane %v1658, %v1663
        %v1666 = vunpack.c.l.s4 1983009808
        %v1667 = vunpack.c.0.s8 %v1666
        %v1668 = vperm.slane %v1660, %v1667
        %v1669 = vrot.slane %v1664, 4
        %v1670 = vsel %vm1645, %v1669, %v1652
        %v1671 = vrot.slane %v1652, 4
        %v1672 = vsel %vm1645, %v1664, %v1671
        %v1674 = vunpack.c.l.s4 1934713408
        %v1675 = vunpack.c.0.s8 %v1674
        %v1676 = vperm.slane %v1670, %v1675
        %v1678 = vunpack.c.l.s4 1934713408
        %v1679 = vunpack.c.0.s8 %v1678
        %v1680 = vperm.slane %v1672, %v1679
        %v1681 = vrot.slane %v1668, 4
        %v1682 = vsel %vm1645, %v1681, %v1656
        %v1683 = vrot.slane %v1656, 4
        %v1684 = vsel %vm1645, %v1668, %v1683
        %v1686 = vunpack.c.l.s4 1934713408
        %v1687 = vunpack.c.0.s8 %v1686
        %v1688 = vperm.slane %v1682, %v1687
        %v1690 = vunpack.c.l.s4 1934713408
        %v1691 = vunpack.c.0.s8 %v1690
        %v1692 = vperm.slane %v1684, %v1691
        %v1693 = vrot.slane %v1676, 4
        %v1694 = vsel %vm1645, 0.0, %v1693
        %v1695 = vrot.slane %v1680, 4
        %v1696 = vsel %vm1645, 0.0, %v1695
        %v1697 = vrot.slane %v1688, 4
        %v1698 = vsel %vm1645, 0.0, %v1697
        %v1699 = vrot.slane %v1692, 4
        %v1700 = vsel %vm1645, 0.0, %v1699
        %v1701 = vsel %vm1645, %v1695, %v1676
        %v1703 = vunpack.c.l.s4 1983009808
        %v1704 = vunpack.c.0.s8 %v1703
        %v1705 = vperm.slane %v1701, %v1704
        %v1706 = vrot.slane %v1696, 4
        %v1707 = vsel %vm1645, %v1706, %v1694
        %v1709 = vunpack.c.l.s4 1983009808
        %v1710 = vunpack.c.0.s8 %v1709
        %v1711 = vperm.slane %v1707, %v1710
        %v1712 = vsel %vm1645, %v1699, %v1688
        %v1714 = vunpack.c.l.s4 1983009808
        %v1715 = vunpack.c.0.s8 %v1714
        %v1716 = vperm.slane %v1712, %v1715
        %v1717 = vrot.slane %v1700, 4
        %v1718 = vsel %vm1645, %v1717, %v1698
        %v1720 = vunpack.c.l.s4 1983009808
        %v1721 = vunpack.c.0.s8 %v1720
        %v1722 = vperm.slane %v1718, %v1721
        %v1723 = vrot.slane %v1711, 4
        %v1724 = vsel %vm1645, %v1723, %v1705
        %v1725 = vrot.slane %v1705, 4
        %v1726 = vsel %vm1645, %v1711, %v1725
        %v1728 = vunpack.c.l.s4 1934713408
        %v1729 = vunpack.c.0.s8 %v1728
        %v1730 = vperm.slane %v1724, %v1729
        %v1732 = vunpack.c.l.s4 1934713408
        %v1733 = vunpack.c.0.s8 %v1732
        %v1734 = vperm.slane %v1726, %v1733
        %v1735 = vrot.slane %v1722, 4
        %v1736 = vsel %vm1645, %v1735, %v1716
        %v1737 = vrot.slane %v1716, 4
        %v1738 = vsel %vm1645, %v1722, %v1737
        %v1740 = vunpack.c.l.s4 1934713408
        %v1741 = vunpack.c.0.s8 %v1740
        %v1742 = vperm.slane %v1736, %v1741
        %v1744 = vunpack.c.l.s4 1934713408
        %v1745 = vunpack.c.0.s8 %v1744
        %v1746 = vperm.slane %v1738, %v1745
        %v1747 = vrot.slane %v1742, 4
        %v1748 = vsel %vm1645, %v1747, %v1730
        %v1749 = vrot.slane %v1730, 4
        %v1750 = vsel %vm1645, %v1742, %v1749
        %v1751 = vrot.slane %v1746, 4
        %v1752 = vsel %vm1645, %v1751, %v1734
        %v1753 = vrot.slane %v1734, 4
        %v1754 = vsel %vm1645, %v1746, %v1753
        %1756 = vrot.lane.b32.xlu0 %v1750, 32
        %v1757 = vpop.permute.xlu0 %1756
        %1760 = vrot.lane.b32.xlu0 %v1752, 64
        %v1761 = vpop.permute.xlu0 %1760
        %1764 = vrot.lane.b32.xlu0 %v1754, 96
        %v1765 = vpop.permute.xlu0 %1764
        %v1767 = vsel %vm1068, %v1748, %v1757
        %vm1768 = vcmask 523264
        %v1769 = vsel %vm1768, %v1767, %v1761
        %vm1770 = vcmask 785408
        %v1771 = vsel %vm1770, %v1769, %v1765
        %v1772 = vld [vmem:[#allocation11] sm:$0xff]
        %v1773 = vld [vmem:[#allocation11 + $0x8] sm:$0xff]
        %v1774 = vld [vmem:[#allocation11 + $0x10] sm:$0xff]
        %v1775 = vld [vmem:[#allocation11 + $0x18] sm:$0xff]
        %v1776 = vld [vmem:[#allocation11 + $0x20] sm:$0xff]
        %v1777 = vld [vmem:[#allocation11 + $0x28] sm:$0xff]
        %v1778 = vld [vmem:[#allocation11 + $0x30] sm:$0xff]
        %v1779 = vld [vmem:[#allocation11 + $0x38] sm:$0xff]
        %v1780 = vld [vmem:[#allocation11 + $0x40] sm:$0xff]
        %v1781 = vld [vmem:[#allocation11 + $0x48] sm:$0xff]
        %v1782 = vld [vmem:[#allocation11 + $0x50] sm:$0xff]
        %v1783 = vld [vmem:[#allocation11 + $0x58] sm:$0xff]
        %v1784 = vld [vmem:[#allocation11 + $0x60] sm:$0xff]
        %v1785 = vld [vmem:[#allocation11 + $0x68] sm:$0xff]
        %v1786 = vld [vmem:[#allocation11 + $0x70] sm:$0xff]
        %v1787 = vld [vmem:[#allocation11 + $0x78] sm:$0xff]
        %v1788 = vperm.slane %v811, 3
        %1789 = vmatpush.msra.mxu0 %v1787
        %1790 = vmatpush.msra.mxu0 %v1786
        %1791 = vmatpush.msra.mxu0 %v1785
        %1792 = vmatpush.msra.mxu0 %v1784
        %1793 = vmatpush.msra.mxu0 %v1783
        %1794 = vmatpush.msra.mxu0 %v1782
        %1795 = vmatpush.msra.mxu0 %v1781
        %1796 = vmatpush.msra.mxu0 %v1780
        %1797 = vmatpush.msra.mxu0 %v1779
        %1798 = vmatpush.msra.mxu0 %v1778
        %1799 = vmatpush.msra.mxu0 %v1777
        %1800 = vmatpush.msra.mxu0 %v1776
        %1801 = vmatpush.msra.mxu0 %v1775
        %1802 = vmatpush.msra.mxu0 %v1774
        %1803 = vmatpush.msra.mxu0 %v1773
        %1804 = vmatpush.msra.mxu0 %v1772
        %1805 = vmatmul.f32.gmra.mxu0 %v1771
        %v1806 = vpop.f32.mrf.mxu0
        %v1807 = vadd.f32 %v1788, %v1806
        %1808 = vdwg.mxu0
        %v1809 = vld [vmem:[#allocation13] sm:$0xf]
        %v1810 = vld [vmem:[#allocation7] sm:$0xff]
        %v1811 = vld [vmem:[#allocation7 + $0x8] sm:$0xff]
        %v1812 = vld [vmem:[#allocation7 + $0x10] sm:$0xff]
        %v1813 = vld [vmem:[#allocation7 + $0x18] sm:$0xff]
        %v1814 = vld [vmem:[#allocation7 + $0x20] sm:$0xff]
        %v1815 = vld [vmem:[#allocation7 + $0x28] sm:$0xff]
        %v1816 = vld [vmem:[#allocation7 + $0x30] sm:$0xff]
        %v1817 = vld [vmem:[#allocation7 + $0x38] sm:$0xff]
        %v1818 = vld [vmem:[#allocation7 + $0x40] sm:$0xff]
        %v1819 = vld [vmem:[#allocation7 + $0x48] sm:$0xff]
        %v1820 = vld [vmem:[#allocation7 + $0x50] sm:$0xff]
        %v1821 = vld [vmem:[#allocation7 + $0x58] sm:$0xff]
        %v1822 = vld [vmem:[#allocation7 + $0x60] sm:$0xff]
        %v1823 = vld [vmem:[#allocation7 + $0x68] sm:$0xff]
        %v1824 = vld [vmem:[#allocation7 + $0x70] sm:$0xff]
        %v1825 = vld [vmem:[#allocation7 + $0x78] sm:$0xff]
        %v1826 = vperm.slane %v1809, 0
        %1827 = vmatpush.msra.mxu0 %v1825
        %1828 = vmatpush.msra.mxu0 %v1824
        %1829 = vmatpush.msra.mxu0 %v1823
        %1830 = vmatpush.msra.mxu0 %v1822
        %1831 = vmatpush.msra.mxu0 %v1821
        %1832 = vmatpush.msra.mxu0 %v1820
        %1833 = vmatpush.msra.mxu0 %v1819
        %1834 = vmatpush.msra.mxu0 %v1818
        %1835 = vmatpush.msra.mxu0 %v1817
        %1836 = vmatpush.msra.mxu0 %v1816
        %1837 = vmatpush.msra.mxu0 %v1815
        %1838 = vmatpush.msra.mxu0 %v1814
        %1839 = vmatpush.msra.mxu0 %v1813
        %1840 = vmatpush.msra.mxu0 %v1812
        %1841 = vmatpush.msra.mxu0 %v1811
        %1842 = vmatpush.msra.mxu0 %v1810
        %1843 = vmatmul.f32.gmra.mxu0 %v803
        %v1844 = vpop.f32.mrf.mxu0
        %v1845 = vadd.f32 %v1826, %v1844
        %1846 = vmatmul.f32.gmra.mxu0 %v804
        %v1847 = vpop.f32.mrf.mxu0
        %v1848 = vadd.f32 %v1826, %v1847
        %1849 = vdwg.mxu0
        %v1850 = vld [vmem:[#allocation8] sm:$0xff]
        %v1851 = vld [vmem:[#allocation8 + $0x8] sm:$0xff]
        %v1852 = vld [vmem:[#allocation8 + $0x10] sm:$0xff]
        %v1853 = vld [vmem:[#allocation8 + $0x18] sm:$0xff]
        %v1854 = vld [vmem:[#allocation8 + $0x20] sm:$0xff]
        %v1855 = vld [vmem:[#allocation8 + $0x28] sm:$0xff]
        %v1856 = vld [vmem:[#allocation8 + $0x30] sm:$0xff]
        %v1857 = vld [vmem:[#allocation8 + $0x38] sm:$0xff]
        %v1858 = vld [vmem:[#allocation8 + $0x40] sm:$0xff]
        %v1859 = vld [vmem:[#allocation8 + $0x48] sm:$0xff]
        %v1860 = vld [vmem:[#allocation8 + $0x50] sm:$0xff]
        %v1861 = vld [vmem:[#allocation8 + $0x58] sm:$0xff]
        %v1862 = vld [vmem:[#allocation8 + $0x60] sm:$0xff]
        %v1863 = vld [vmem:[#allocation8 + $0x68] sm:$0xff]
        %v1864 = vld [vmem:[#allocation8 + $0x70] sm:$0xff]
        %v1865 = vld [vmem:[#allocation8 + $0x78] sm:$0xff]
        %v1866 = vperm.slane %v1809, 1
        %1867 = vmatpush.msra.mxu0 %v1865
        %1868 = vmatpush.msra.mxu0 %v1864
        %1869 = vmatpush.msra.mxu0 %v1863
        %1870 = vmatpush.msra.mxu0 %v1862
        %1871 = vmatpush.msra.mxu0 %v1861
        %1872 = vmatpush.msra.mxu0 %v1860
        %1873 = vmatpush.msra.mxu0 %v1859
        %1874 = vmatpush.msra.mxu0 %v1858
        %1875 = vmatpush.msra.mxu0 %v1857
        %1876 = vmatpush.msra.mxu0 %v1856
        %1877 = vmatpush.msra.mxu0 %v1855
        %1878 = vmatpush.msra.mxu0 %v1854
        %1879 = vmatpush.msra.mxu0 %v1853
        %1880 = vmatpush.msra.mxu0 %v1852
        %1881 = vmatpush.msra.mxu0 %v1851
        %1882 = vmatpush.msra.mxu0 %v1850
        %1883 = vmatmul.f32.gmra.mxu0 %v803
        %v1884 = vpop.f32.mrf.mxu0
        %v1885 = vadd.f32 %v1866, %v1884
        %1886 = vmatmul.f32.gmra.mxu0 %v804
        %v1887 = vpop.f32.mrf.mxu0
        %v1888 = vadd.f32 %v1866, %v1887
        %1889 = vdwg.mxu0
        %v1890 = vld [vmem:[#allocation10] sm:$0xff]
        %v1891 = vld [vmem:[#allocation10 + $0x8] sm:$0xff]
        %v1892 = vld [vmem:[#allocation10 + $0x10] sm:$0xff]
        %v1893 = vld [vmem:[#allocation10 + $0x18] sm:$0xff]
        %v1894 = vld [vmem:[#allocation10 + $0x20] sm:$0xff]
        %v1895 = vld [vmem:[#allocation10 + $0x28] sm:$0xff]
        %v1896 = vld [vmem:[#allocation10 + $0x30] sm:$0xff]
        %v1897 = vld [vmem:[#allocation10 + $0x38] sm:$0xff]
        %v1898 = vld [vmem:[#allocation10 + $0x40] sm:$0xff]
        %v1899 = vld [vmem:[#allocation10 + $0x48] sm:$0xff]
        %v1900 = vld [vmem:[#allocation10 + $0x50] sm:$0xff]
        %v1901 = vld [vmem:[#allocation10 + $0x58] sm:$0xff]
        %v1902 = vld [vmem:[#allocation10 + $0x60] sm:$0xff]
        %v1903 = vld [vmem:[#allocation10 + $0x68] sm:$0xff]
        %v1904 = vld [vmem:[#allocation10 + $0x70] sm:$0xff]
        %v1905 = vld [vmem:[#allocation10 + $0x78] sm:$0xff]
        %v1906 = vperm.slane %v1809, 2
        %1907 = vmatpush.msra.mxu0 %v1905
        %1908 = vmatpush.msra.mxu0 %v1904
        %1909 = vmatpush.msra.mxu0 %v1903
        %1910 = vmatpush.msra.mxu0 %v1902
        %1911 = vmatpush.msra.mxu0 %v1901
        %1912 = vmatpush.msra.mxu0 %v1900
        %1913 = vmatpush.msra.mxu0 %v1899
        %1914 = vmatpush.msra.mxu0 %v1898
        %1915 = vmatpush.msra.mxu0 %v1897
        %1916 = vmatpush.msra.mxu0 %v1896
        %1917 = vmatpush.msra.mxu0 %v1895
        %1918 = vmatpush.msra.mxu0 %v1894
        %1919 = vmatpush.msra.mxu0 %v1893
        %1920 = vmatpush.msra.mxu0 %v1892
        %1921 = vmatpush.msra.mxu0 %v1891
        %1922 = vmatpush.msra.mxu0 %v1890
        %1923 = vmatmul.f32.gmra.mxu0 %v803
        %v1924 = vpop.f32.mrf.mxu0
        %v1925 = vadd.f32 %v1906, %v1924
        %1926 = vmatmul.f32.gmra.mxu0 %v804
        %v1927 = vpop.f32.mrf.mxu0
        %v1928 = vadd.f32 %v1906, %v1927
        %1929 = vdwg.mxu0
        %1932 = vrot.lane.b32.xlu0 %v1845, 96
        %v1933 = vpop.permute.xlu0 %1932
        %1934 = vrot.lane.b32.xlu0 %v1848, 96
        %v1935 = vpop.permute.xlu0 %1934
        %1936 = vrot.lane.b32.xlu0 %v1845, 64
        %v1937 = vpop.permute.xlu0 %1936
        %1938 = vrot.lane.b32.xlu0 %v1848, 64
        %v1939 = vpop.permute.xlu0 %1938
        %1940 = vrot.lane.b32.xlu0 %v1845, 32
        %v1941 = vpop.permute.xlu0 %1940
        %1942 = vrot.lane.b32.xlu0 %v1848, 32
        %v1943 = vpop.permute.xlu0 %1942
        %1946 = vrot.lane.b32.xlu0 %v1885, 96
        %v1947 = vpop.permute.xlu0 %1946
        %1948 = vrot.lane.b32.xlu0 %v1888, 96
        %v1949 = vpop.permute.xlu0 %1948
        %1952 = vrot.lane.b32.xlu0 %v1885, 64
        %v1953 = vpop.permute.xlu0 %1952
        %1954 = vrot.lane.b32.xlu0 %v1888, 64
        %v1955 = vpop.permute.xlu0 %1954
        %1958 = vrot.lane.b32.xlu0 %v1885, 32
        %v1959 = vpop.permute.xlu0 %1958
        %1960 = vrot.lane.b32.xlu0 %v1888, 32
        %v1961 = vpop.permute.xlu0 %1960
        %1964 = vxpose.xlu0.b32.start [1/16] %v1885, 128
        %1965 = vxpose.xlu0.b32.cont [2/16] %v1888, 128
        %1966 = vxpose.xlu0.b32.cont [3/16] 0.0, 128
        %1967 = vxpose.xlu0.b32.cont [4/16] 0.0, 128
        %1968 = vxpose.xlu0.b32.cont [5/16] 0.0, 128
        %1969 = vxpose.xlu0.b32.cont [6/16] 0.0, 128
        %1970 = vxpose.xlu0.b32.cont [7/16] 0.0, 128
        %1971 = vxpose.xlu0.b32.cont [8/16] 0.0, 128
        %1972 = vxpose.xlu0.b32.cont [9/16] 0.0, 128
        %1973 = vxpose.xlu0.b32.cont [10/16] 0.0, 128
        %1974 = vxpose.xlu0.b32.cont [11/16] 0.0, 128
        %1975 = vxpose.xlu0.b32.cont [12/16] 0.0, 128
        %1976 = vxpose.xlu0.b32.cont [13/16] 0.0, 128
        %1977 = vxpose.xlu0.b32.cont [14/16] 0.0, 128
        %1978 = vxpose.xlu0.b32.cont [15/16] 0.0, 128
        %1979 = vxpose.xlu0.b32.end [16/16] 0.0, 128
        %v1980 = vpop.trf.xlu0
        %v1981 = vpop.trf.xlu0
        %v1982 = vpop.trf.xlu0
        %v1983 = vpop.trf.xlu0
        %v1984 = vpop.trf.xlu0
        %v1985 = vpop.trf.xlu0
        %v1986 = vpop.trf.xlu0
        %v1987 = vpop.trf.xlu0
        %v1988 = vpop.trf.xlu0
        %v1989 = vpop.trf.xlu0
        %v1990 = vpop.trf.xlu0
        %v1991 = vpop.trf.xlu0
        %v1992 = vpop.trf.xlu0
        %v1993 = vpop.trf.xlu0
        %v1994 = vpop.trf.xlu0
        %v1995 = vpop.trf.xlu0
        %1996 = vxpose.xlu0.b32.start [1/16] %v1947, 128
        %1997 = vxpose.xlu0.b32.cont [2/16] %v1949, 128
        %1998 = vxpose.xlu0.b32.cont [3/16] 0.0, 128
        %1999 = vxpose.xlu0.b32.cont [4/16] 0.0, 128
        %2000 = vxpose.xlu0.b32.cont [5/16] 0.0, 128
        %2001 = vxpose.xlu0.b32.cont [6/16] 0.0, 128
        %2002 = vxpose.xlu0.b32.cont [7/16] 0.0, 128
        %2003 = vxpose.xlu0.b32.cont [8/16] 0.0, 128
        %2004 = vxpose.xlu0.b32.cont [9/16] 0.0, 128
        %2005 = vxpose.xlu0.b32.cont [10/16] 0.0, 128
        %2006 = vxpose.xlu0.b32.cont [11/16] 0.0, 128
        %2007 = vxpose.xlu0.b32.cont [12/16] 0.0, 128
        %2008 = vxpose.xlu0.b32.cont [13/16] 0.0, 128
        %2009 = vxpose.xlu0.b32.cont [14/16] 0.0, 128
        %2010 = vxpose.xlu0.b32.cont [15/16] 0.0, 128
        %2011 = vxpose.xlu0.b32.end [16/16] 0.0, 128
        %v2012 = vpop.trf.xlu0
        %v2013 = vpop.trf.xlu0
        %v2014 = vpop.trf.xlu0
        %v2015 = vpop.trf.xlu0
        %v2016 = vpop.trf.xlu0
        %v2017 = vpop.trf.xlu0
        %v2018 = vpop.trf.xlu0
        %v2019 = vpop.trf.xlu0
        %v2020 = vpop.trf.xlu0
        %v2021 = vpop.trf.xlu0
        %v2022 = vpop.trf.xlu0
        %v2023 = vpop.trf.xlu0
        %v2024 = vpop.trf.xlu0
        %v2025 = vpop.trf.xlu0
        %v2026 = vpop.trf.xlu0
        %v2027 = vpop.trf.xlu0
        %2028 = vxpose.xlu0.b32.start [1/16] %v1953, 128
        %2029 = vxpose.xlu0.b32.cont [2/16] %v1955, 128
        %2030 = vxpose.xlu0.b32.cont [3/16] 0.0, 128
        %2031 = vxpose.xlu0.b32.cont [4/16] 0.0, 128
        %2032 = vxpose.xlu0.b32.cont [5/16] 0.0, 128
        %2033 = vxpose.xlu0.b32.cont [6/16] 0.0, 128
        %2034 = vxpose.xlu0.b32.cont [7/16] 0.0, 128
        %2035 = vxpose.xlu0.b32.cont [8/16] 0.0, 128
        %2036 = vxpose.xlu0.b32.cont [9/16] 0.0, 128
        %2037 = vxpose.xlu0.b32.cont [10/16] 0.0, 128
        %2038 = vxpose.xlu0.b32.cont [11/16] 0.0, 128
        %2039 = vxpose.xlu0.b32.cont [12/16] 0.0, 128
        %2040 = vxpose.xlu0.b32.cont [13/16] 0.0, 128
        %2041 = vxpose.xlu0.b32.cont [14/16] 0.0, 128
        %2042 = vxpose.xlu0.b32.cont [15/16] 0.0, 128
        %2043 = vxpose.xlu0.b32.end [16/16] 0.0, 128
        %v2044 = vpop.trf.xlu0
        %v2045 = vpop.trf.xlu0
        %v2046 = vpop.trf.xlu0
        %v2047 = vpop.trf.xlu0
        %v2048 = vpop.trf.xlu0
        %v2049 = vpop.trf.xlu0
        %v2050 = vpop.trf.xlu0
        %v2051 = vpop.trf.xlu0
        %v2052 = vpop.trf.xlu0
        %v2053 = vpop.trf.xlu0
        %v2054 = vpop.trf.xlu0
        %v2055 = vpop.trf.xlu0
        %v2056 = vpop.trf.xlu0
        %v2057 = vpop.trf.xlu0
        %v2058 = vpop.trf.xlu0
        %v2059 = vpop.trf.xlu0
        %2060 = vxpose.xlu0.b32.start [1/16] %v1959, 128
        %2061 = vxpose.xlu0.b32.cont [2/16] %v1961, 128
        %2062 = vxpose.xlu0.b32.cont [3/16] 0.0, 128
        %2063 = vxpose.xlu0.b32.cont [4/16] 0.0, 128
        %2064 = vxpose.xlu0.b32.cont [5/16] 0.0, 128
        %2065 = vxpose.xlu0.b32.cont [6/16] 0.0, 128
        %2066 = vxpose.xlu0.b32.cont [7/16] 0.0, 128
        %2067 = vxpose.xlu0.b32.cont [8/16] 0.0, 128
        %2068 = vxpose.xlu0.b32.cont [9/16] 0.0, 128
        %2069 = vxpose.xlu0.b32.cont [10/16] 0.0, 128
        %2070 = vxpose.xlu0.b32.cont [11/16] 0.0, 128
        %2071 = vxpose.xlu0.b32.cont [12/16] 0.0, 128
        %2072 = vxpose.xlu0.b32.cont [13/16] 0.0, 128
        %2073 = vxpose.xlu0.b32.cont [14/16] 0.0, 128
        %2074 = vxpose.xlu0.b32.cont [15/16] 0.0, 128
        %2075 = vxpose.xlu0.b32.end [16/16] 0.0, 128
        %v2076 = vpop.trf.xlu0
        %v2077 = vpop.trf.xlu0
        %v2078 = vpop.trf.xlu0
        %v2079 = vpop.trf.xlu0
        %v2080 = vpop.trf.xlu0
        %v2081 = vpop.trf.xlu0
        %v2082 = vpop.trf.xlu0
        %v2083 = vpop.trf.xlu0
        %v2084 = vpop.trf.xlu0
        %v2085 = vpop.trf.xlu0
        %v2086 = vpop.trf.xlu0
        %v2087 = vpop.trf.xlu0
        %v2088 = vpop.trf.xlu0
        %v2089 = vpop.trf.xlu0
        %v2090 = vpop.trf.xlu0
        %v2091 = vpop.trf.xlu0
        %v2092 = vsel %vm1068, %v1845, 0
        %v2094 = vsel %vm1068, %v1848, 0
        %2096 = vmatpush.msra.mxu0 0.0
        %2097 = vmatpush.msra.mxu0 0.0
        %2098 = vmatpush.msra.mxu0 0.0
        %2099 = vmatpush.msra.mxu0 0.0
        %2100 = vmatpush.msra.mxu0 0.0
        %2101 = vmatpush.msra.mxu0 0.0
        %2102 = vmatpush.msra.mxu0 0.0
        %2103 = vmatpush.msra.mxu0 0.0
        %2104 = vmatpush.msra.mxu0 0.0
        %2105 = vmatpush.msra.mxu0 0.0
        %2106 = vmatpush.msra.mxu0 0.0
        %2107 = vmatpush.msra.mxu0 0.0
        %2108 = vmatpush.msra.mxu0 %v1983
        %2109 = vmatpush.msra.mxu0 %v1982
        %2110 = vmatpush.msra.mxu0 %v1981
        %2111 = vmatpush.msra.mxu0 %v1980
        %2112 = vmatmul.f32.gmra.mxu0 %v2092
        %v2113 = vpop.f32.mrf.mxu0
        %v2114 = vadd.f32 0.0, %v2113
        %2115 = vmatmul.f32.gmra.mxu0 %v2094
        %v2116 = vpop.f32.mrf.mxu0
        %v2117 = vadd.f32 0.0, %v2116
        %2118 = vdwg.mxu0
        %v2119 = vsel %vm1068, %v1933, 0
        %v2121 = vsel %vm1068, %v1935, 0
        %2123 = vmatpush.msra.mxu0 0.0
        %2124 = vmatpush.msra.mxu0 0.0
        %2125 = vmatpush.msra.mxu0 0.0
        %2126 = vmatpush.msra.mxu0 0.0
        %2127 = vmatpush.msra.mxu0 0.0
        %2128 = vmatpush.msra.mxu0 0.0
        %2129 = vmatpush.msra.mxu0 0.0
        %2130 = vmatpush.msra.mxu0 0.0
        %2131 = vmatpush.msra.mxu0 0.0
        %2132 = vmatpush.msra.mxu0 0.0
        %2133 = vmatpush.msra.mxu0 0.0
        %2134 = vmatpush.msra.mxu0 0.0
        %2135 = vmatpush.msra.mxu0 %v2015
        %2136 = vmatpush.msra.mxu0 %v2014
        %2137 = vmatpush.msra.mxu0 %v2013
        %2138 = vmatpush.msra.mxu0 %v2012
        %2139 = vmatmul.f32.gmra.mxu0 %v2119
        %v2140 = vpop.f32.mrf.mxu0
        %v2141 = vadd.f32 0.0, %v2140
        %2142 = vmatmul.f32.gmra.mxu0 %v2121
        %v2143 = vpop.f32.mrf.mxu0
        %v2144 = vadd.f32 0.0, %v2143
        %2145 = vdwg.mxu0
        %v2146 = vsel %vm1068, %v1937, 0
        %v2148 = vsel %vm1068, %v1939, 0
        %2150 = vmatpush.msra.mxu0 0.0
        %2151 = vmatpush.msra.mxu0 0.0
        %2152 = vmatpush.msra.mxu0 0.0
        %2153 = vmatpush.msra.mxu0 0.0
        %2154 = vmatpush.msra.mxu0 0.0
        %2155 = vmatpush.msra.mxu0 0.0
        %2156 = vmatpush.msra.mxu0 0.0
        %2157 = vmatpush.msra.mxu0 0.0
        %2158 = vmatpush.msra.mxu0 0.0
        %2159 = vmatpush.msra.mxu0 0.0
        %2160 = vmatpush.msra.mxu0 0.0
        %2161 = vmatpush.msra.mxu0 0.0
        %2162 = vmatpush.msra.mxu0 %v2047
        %2163 = vmatpush.msra.mxu0 %v2046
        %2164 = vmatpush.msra.mxu0 %v2045
        %2165 = vmatpush.msra.mxu0 %v2044
        %2166 = vmatmul.f32.gmra.mxu0 %v2146
        %v2167 = vpop.f32.mrf.mxu0
        %v2168 = vadd.f32 0.0, %v2167
        %2169 = vmatmul.f32.gmra.mxu0 %v2148
        %v2170 = vpop.f32.mrf.mxu0
        %v2171 = vadd.f32 0.0, %v2170
        %2172 = vdwg.mxu0
        %v2173 = vsel %vm1068, %v1941, 0
        %v2175 = vsel %vm1068, %v1943, 0
        %2177 = vmatpush.msra.mxu0 0.0
        %2178 = vmatpush.msra.mxu0 0.0
        %2179 = vmatpush.msra.mxu0 0.0
        %2180 = vmatpush.msra.mxu0 0.0
        %2181 = vmatpush.msra.mxu0 0.0
        %2182 = vmatpush.msra.mxu0 0.0
        %2183 = vmatpush.msra.mxu0 0.0
        %2184 = vmatpush.msra.mxu0 0.0
        %2185 = vmatpush.msra.mxu0 0.0
        %2186 = vmatpush.msra.mxu0 0.0
        %2187 = vmatpush.msra.mxu0 0.0
        %2188 = vmatpush.msra.mxu0 0.0
        %2189 = vmatpush.msra.mxu0 %v2079
        %2190 = vmatpush.msra.mxu0 %v2078
        %2191 = vmatpush.msra.mxu0 %v2077
        %2192 = vmatpush.msra.mxu0 %v2076
        %2193 = vmatmul.f32.gmra.mxu0 %v2173
        %v2194 = vpop.f32.mrf.mxu0
        %v2195 = vadd.f32 0.0, %v2194
        %2196 = vmatmul.f32.gmra.mxu0 %v2175
        %v2197 = vpop.f32.mrf.mxu0
        %v2198 = vadd.f32 0.0, %v2197
        %2199 = vdwg.mxu0
        %vm2200 = vcmask 130048
        %v2201 = vsel %vm2200, %v2114, -inf
        %2202 = vmax.xlane.f32.xlu0 %v2201
        %v2203 = vpop.xlane.xlu0 %2202
        %v2204 = vsel %vm2200, %v2117, -inf
        %2205 = vmax.xlane.f32.xlu0 %v2204
        %v2206 = vpop.xlane.xlu0 %2205
        %v2207 = vsel %vm2200, %v2141, -inf
        %2208 = vmax.xlane.f32.xlu0 %v2207
        %v2209 = vpop.xlane.xlu0 %2208
        %v2210 = vsel %vm2200, %v2144, -inf
        %2211 = vmax.xlane.f32.xlu0 %v2210
        %v2212 = vpop.xlane.xlu0 %2211
        %v2213 = vsel %vm2200, %v2168, -inf
        %2214 = vmax.xlane.f32.xlu0 %v2213
        %v2215 = vpop.xlane.xlu0 %2214
        %v2216 = vsel %vm2200, %v2171, -inf
        %2217 = vmax.xlane.f32.xlu0 %v2216
        %v2218 = vpop.xlane.xlu0 %2217
        %v2219 = vsel %vm2200, %v2195, -inf
        %2220 = vmax.xlane.f32.xlu0 %v2219
        %v2221 = vpop.xlane.xlu0 %2220
        %v2222 = vsel %vm2200, %v2198, -inf
        %2223 = vmax.xlane.f32.xlu0 %v2222
        %v2224 = vpop.xlane.xlu0 %2223
        %v2225 = vsub.f32 %v2114, %v2203
        %v2226 = vsub.f32 %v2117, %v2206
        %v2227 = vsub.f32 %v2141, %v2209
        %v2228 = vsub.f32 %v2144, %v2212
        %v2229 = vsub.f32 %v2168, %v2215
        %v2230 = vsub.f32 %v2171, %v2218
        %v2231 = vsub.f32 %v2195, %v2221
        %v2232 = vsub.f32 %v2198, %v2224
        %v2233 = vmul.f32 %v2225, 1.442695
        %v2234 = vpow.pop %v2233
        %v2235 = vmul.f32 %v2226, 1.442695
        %v2236 = vpow.pop %v2235
        %v2237 = vmul.f32 %v2227, 1.442695
        %v2238 = vpow.pop %v2237
        %v2239 = vmul.f32 %v2228, 1.442695
        %v2240 = vpow.pop %v2239
        %v2241 = vmul.f32 %v2229, 1.442695
        %v2242 = vpow.pop %v2241
        %v2243 = vmul.f32 %v2230, 1.442695
        %v2244 = vpow.pop %v2243
        %v2245 = vmul.f32 %v2231, 1.442695
        %v2246 = vpow.pop %v2245
        %v2247 = vmul.f32 %v2232, 1.442695
        %v2248 = vpow.pop %v2247
        %v2249 = vsel %vm2200, %v2234, 0.0
        %2250 = vadd.xlane.f32.xlu0 %v2249
        %v2251 = vpop.xlane.xlu0 %2250
        %v2252 = vsel %vm2200, %v2236, 0.0
        %2253 = vadd.xlane.f32.xlu0 %v2252
        %v2254 = vpop.xlane.xlu0 %2253
        %v2255 = vsel %vm2200, %v2238, 0.0
        %2256 = vadd.xlane.f32.xlu0 %v2255
        %v2257 = vpop.xlane.xlu0 %2256
        %v2258 = vsel %vm2200, %v2240, 0.0
        %2259 = vadd.xlane.f32.xlu0 %v2258
        %v2260 = vpop.xlane.xlu0 %2259
        %v2261 = vsel %vm2200, %v2242, 0.0
        %2262 = vadd.xlane.f32.xlu0 %v2261
        %v2263 = vpop.xlane.xlu0 %2262
        %v2264 = vsel %vm2200, %v2244, 0.0
        %2265 = vadd.xlane.f32.xlu0 %v2264
        %v2266 = vpop.xlane.xlu0 %2265
        %v2267 = vsel %vm2200, %v2246, 0.0
        %2268 = vadd.xlane.f32.xlu0 %v2267
        %v2269 = vpop.xlane.xlu0 %2268
        %v2270 = vsel %vm2200, %v2248, 0.0
        %2271 = vadd.xlane.f32.xlu0 %v2270
        %v2272 = vpop.xlane.xlu0 %2271
        %v2273 = vrcp.pop %v2251
        %v2274 = vrcp.pop %v2254
        %v2275 = vrcp.pop %v2257
        %v2276 = vrcp.pop %v2260
        %v2277 = vrcp.pop %v2263
        %v2278 = vrcp.pop %v2266
        %v2279 = vrcp.pop %v2269
        %v2280 = vrcp.pop %v2272
        %v2281 = vmul.f32 %v2234, %v2273
        %v2282 = vmul.f32 %v2236, %v2274
        %v2283 = vmul.f32 %v2238, %v2275
        %v2284 = vmul.f32 %v2240, %v2276
        %v2285 = vmul.f32 %v2242, %v2277
        %v2286 = vmul.f32 %v2244, %v2278
        %v2287 = vmul.f32 %v2246, %v2279
        %v2288 = vmul.f32 %v2248, %v2280
        %2291 = vrot.lane.b32.xlu0 %v1925, 96
        %v2292 = vpop.permute.xlu0 %2291
        %2293 = vrot.lane.b32.xlu0 %v1928, 96
        %v2294 = vpop.permute.xlu0 %2293
        %2297 = vrot.lane.b32.xlu0 %v1925, 64
        %v2298 = vpop.permute.xlu0 %2297
        %2299 = vrot.lane.b32.xlu0 %v1928, 64
        %v2300 = vpop.permute.xlu0 %2299
        %2303 = vrot.lane.b32.xlu0 %v1925, 32
        %v2304 = vpop.permute.xlu0 %2303
        %2305 = vrot.lane.b32.xlu0 %v1928, 32
        %v2306 = vpop.permute.xlu0 %2305
        %2309 = vxpose.xlu0.b32.start [1/16] %v1925, 128
        %2310 = vxpose.xlu0.b32.cont [2/16] %v1928, 128
        %2311 = vxpose.xlu0.b32.cont [3/16] 0.0, 128
        %2312 = vxpose.xlu0.b32.cont [4/16] 0.0, 128
        %2313 = vxpose.xlu0.b32.cont [5/16] 0.0, 128
        %2314 = vxpose.xlu0.b32.cont [6/16] 0.0, 128
        %2315 = vxpose.xlu0.b32.cont [7/16] 0.0, 128
        %2316 = vxpose.xlu0.b32.cont [8/16] 0.0, 128
        %2317 = vxpose.xlu0.b32.cont [9/16] 0.0, 128
        %2318 = vxpose.xlu0.b32.cont [10/16] 0.0, 128
        %2319 = vxpose.xlu0.b32.cont [11/16] 0.0, 128
        %2320 = vxpose.xlu0.b32.cont [12/16] 0.0, 128
        %2321 = vxpose.xlu0.b32.cont [13/16] 0.0, 128
        %2322 = vxpose.xlu0.b32.cont [14/16] 0.0, 128
        %2323 = vxpose.xlu0.b32.cont [15/16] 0.0, 128
        %2324 = vxpose.xlu0.b32.end [16/16] 0.0, 128
        %v2325 = vpop.trf.xlu0
        %v2326 = vpop.trf.xlu0
        %v2327 = vpop.trf.xlu0
        %v2328 = vpop.trf.xlu0
        %v2329 = vpop.trf.xlu0
        %v2330 = vpop.trf.xlu0
        %v2331 = vpop.trf.xlu0
        %v2332 = vpop.trf.xlu0
        %v2333 = vpop.trf.xlu0
        %v2334 = vpop.trf.xlu0
        %v2335 = vpop.trf.xlu0
        %v2336 = vpop.trf.xlu0
        %v2337 = vpop.trf.xlu0
        %v2338 = vpop.trf.xlu0
        %v2339 = vpop.trf.xlu0
        %v2340 = vpop.trf.xlu0
        %2341 = vxpose.xlu0.b32.start [1/16] %v2292, 128
        %2342 = vxpose.xlu0.b32.cont [2/16] %v2294, 128
        %2343 = vxpose.xlu0.b32.cont [3/16] 0.0, 128
        %2344 = vxpose.xlu0.b32.cont [4/16] 0.0, 128
        %2345 = vxpose.xlu0.b32.cont [5/16] 0.0, 128
        %2346 = vxpose.xlu0.b32.cont [6/16] 0.0, 128
        %2347 = vxpose.xlu0.b32.cont [7/16] 0.0, 128
        %2348 = vxpose.xlu0.b32.cont [8/16] 0.0, 128
        %2349 = vxpose.xlu0.b32.cont [9/16] 0.0, 128
        %2350 = vxpose.xlu0.b32.cont [10/16] 0.0, 128
        %2351 = vxpose.xlu0.b32.cont [11/16] 0.0, 128
        %2352 = vxpose.xlu0.b32.cont [12/16] 0.0, 128
        %2353 = vxpose.xlu0.b32.cont [13/16] 0.0, 128
        %2354 = vxpose.xlu0.b32.cont [14/16] 0.0, 128
        %2355 = vxpose.xlu0.b32.cont [15/16] 0.0, 128
        %2356 = vxpose.xlu0.b32.end [16/16] 0.0, 128
        %v2357 = vpop.trf.xlu0
        %v2358 = vpop.trf.xlu0
        %v2359 = vpop.trf.xlu0
        %v2360 = vpop.trf.xlu0
        %v2361 = vpop.trf.xlu0
        %v2362 = vpop.trf.xlu0
        %v2363 = vpop.trf.xlu0
        %v2364 = vpop.trf.xlu0
        %v2365 = vpop.trf.xlu0
        %v2366 = vpop.trf.xlu0
        %v2367 = vpop.trf.xlu0
        %v2368 = vpop.trf.xlu0
        %v2369 = vpop.trf.xlu0
        %v2370 = vpop.trf.xlu0
        %v2371 = vpop.trf.xlu0
        %v2372 = vpop.trf.xlu0
        %2373 = vxpose.xlu0.b32.start [1/16] %v2298, 128
        %2374 = vxpose.xlu0.b32.cont [2/16] %v2300, 128
        %2375 = vxpose.xlu0.b32.cont [3/16] 0.0, 128
        %2376 = vxpose.xlu0.b32.cont [4/16] 0.0, 128
        %2377 = vxpose.xlu0.b32.cont [5/16] 0.0, 128
        %2378 = vxpose.xlu0.b32.cont [6/16] 0.0, 128
        %2379 = vxpose.xlu0.b32.cont [7/16] 0.0, 128
        %2380 = vxpose.xlu0.b32.cont [8/16] 0.0, 128
        %2381 = vxpose.xlu0.b32.cont [9/16] 0.0, 128
        %2382 = vxpose.xlu0.b32.cont [10/16] 0.0, 128
        %2383 = vxpose.xlu0.b32.cont [11/16] 0.0, 128
        %2384 = vxpose.xlu0.b32.cont [12/16] 0.0, 128
        %2385 = vxpose.xlu0.b32.cont [13/16] 0.0, 128
        %2386 = vxpose.xlu0.b32.cont [14/16] 0.0, 128
        %2387 = vxpose.xlu0.b32.cont [15/16] 0.0, 128
        %2388 = vxpose.xlu0.b32.end [16/16] 0.0, 128
        %v2389 = vpop.trf.xlu0
        %v2390 = vpop.trf.xlu0
        %v2391 = vpop.trf.xlu0
        %v2392 = vpop.trf.xlu0
        %v2393 = vpop.trf.xlu0
        %v2394 = vpop.trf.xlu0
        %v2395 = vpop.trf.xlu0
        %v2396 = vpop.trf.xlu0
        %v2397 = vpop.trf.xlu0
        %v2398 = vpop.trf.xlu0
        %v2399 = vpop.trf.xlu0
        %v2400 = vpop.trf.xlu0
        %v2401 = vpop.trf.xlu0
        %v2402 = vpop.trf.xlu0
        %v2403 = vpop.trf.xlu0
        %v2404 = vpop.trf.xlu0
        %2405 = vxpose.xlu0.b32.start [1/16] %v2304, 128
        %2406 = vxpose.xlu0.b32.cont [2/16] %v2306, 128
        %2407 = vxpose.xlu0.b32.cont [3/16] 0.0, 128
        %2408 = vxpose.xlu0.b32.cont [4/16] 0.0, 128
        %2409 = vxpose.xlu0.b32.cont [5/16] 0.0, 128
        %2410 = vxpose.xlu0.b32.cont [6/16] 0.0, 128
        %2411 = vxpose.xlu0.b32.cont [7/16] 0.0, 128
        %2412 = vxpose.xlu0.b32.cont [8/16] 0.0, 128
        %2413 = vxpose.xlu0.b32.cont [9/16] 0.0, 128
        %2414 = vxpose.xlu0.b32.cont [10/16] 0.0, 128
        %2415 = vxpose.xlu0.b32.cont [11/16] 0.0, 128
        %2416 = vxpose.xlu0.b32.cont [12/16] 0.0, 128
        %2417 = vxpose.xlu0.b32.cont [13/16] 0.0, 128
        %2418 = vxpose.xlu0.b32.cont [14/16] 0.0, 128
        %2419 = vxpose.xlu0.b32.cont [15/16] 0.0, 128
        %2420 = vxpose.xlu0.b32.end [16/16] 0.0, 128
        %v2421 = vpop.trf.xlu0
        %v2422 = vpop.trf.xlu0
        %v2423 = vpop.trf.xlu0
        %v2424 = vpop.trf.xlu0
        %v2425 = vpop.trf.xlu0
        %v2426 = vpop.trf.xlu0
        %v2427 = vpop.trf.xlu0
        %v2428 = vpop.trf.xlu0
        %v2429 = vpop.trf.xlu0
        %v2430 = vpop.trf.xlu0
        %v2431 = vpop.trf.xlu0
        %v2432 = vpop.trf.xlu0
        %v2433 = vpop.trf.xlu0
        %v2434 = vpop.trf.xlu0
        %v2435 = vpop.trf.xlu0
        %v2436 = vpop.trf.xlu0
        %v2438 = vsel %vm2200, %v2325, 0
        %v2441 = vsel %vm2200, %v2326, 0
        %v2444 = vsel %vm2200, %v2327, 0
        %v2447 = vsel %vm2200, %v2328, 0
        %v2450 = vsel %vm2200, %v2281, 0
        %v2453 = vsel %vm2200, %v2282, 0
        %2455 = vmatpush.xpose.msra.mxu0 0.0
        %2456 = vmatpush.xpose.msra.mxu0 0.0
        %2457 = vmatpush.xpose.msra.mxu0 0.0
        %2458 = vmatpush.xpose.msra.mxu0 0.0
        %2459 = vmatpush.xpose.msra.mxu0 0.0
        %2460 = vmatpush.xpose.msra.mxu0 0.0
        %2461 = vmatpush.xpose.msra.mxu0 0.0
        %2462 = vmatpush.xpose.msra.mxu0 0.0
        %2463 = vmatpush.xpose.msra.mxu0 0.0
        %2464 = vmatpush.xpose.msra.mxu0 0.0
        %2465 = vmatpush.xpose.msra.mxu0 0.0
        %2466 = vmatpush.xpose.msra.mxu0 0.0
        %2467 = vmatpush.xpose.msra.mxu0 0.0
        %2468 = vmatpush.xpose.msra.mxu0 0.0
        %2469 = vmatpush.xpose.msra.mxu0 %v2453
        %2470 = vmatpush.xpose.msra.mxu0 %v2450
        %2471 = vmatmul.f32.gmra.mxu0 %v2438
        %v2472 = vpop.f32.mrf.mxu0
        %v2473 = vadd.f32 0.0, %v2472
        %2474 = vmatmul.f32.gmra.mxu0 %v2441
        %v2475 = vpop.f32.mrf.mxu0
        %v2476 = vadd.f32 0.0, %v2475
        %2477 = vmatmul.f32.gmra.mxu0 %v2444
        %v2478 = vpop.f32.mrf.mxu0
        %v2479 = vadd.f32 0.0, %v2478
        %2480 = vmatmul.f32.gmra.mxu0 %v2447
        %v2481 = vpop.f32.mrf.mxu0
        %v2482 = vadd.f32 0.0, %v2481
        %2483 = vdwg.mxu0
        %v2485 = vsel %vm2200, %v2357, 0
        %v2488 = vsel %vm2200, %v2358, 0
        %v2491 = vsel %vm2200, %v2359, 0
        %v2494 = vsel %vm2200, %v2360, 0
        %v2497 = vsel %vm2200, %v2283, 0
        %v2500 = vsel %vm2200, %v2284, 0
        %2502 = vmatpush.xpose.msra.mxu0 0.0
        %2503 = vmatpush.xpose.msra.mxu0 0.0
        %2504 = vmatpush.xpose.msra.mxu0 0.0
        %2505 = vmatpush.xpose.msra.mxu0 0.0
        %2506 = vmatpush.xpose.msra.mxu0 0.0
        %2507 = vmatpush.xpose.msra.mxu0 0.0
        %2508 = vmatpush.xpose.msra.mxu0 0.0
        %2509 = vmatpush.xpose.msra.mxu0 0.0
        %2510 = vmatpush.xpose.msra.mxu0 0.0
        %2511 = vmatpush.xpose.msra.mxu0 0.0
        %2512 = vmatpush.xpose.msra.mxu0 0.0
        %2513 = vmatpush.xpose.msra.mxu0 0.0
        %2514 = vmatpush.xpose.msra.mxu0 0.0
        %2515 = vmatpush.xpose.msra.mxu0 0.0
        %2516 = vmatpush.xpose.msra.mxu0 %v2500
        %2517 = vmatpush.xpose.msra.mxu0 %v2497
        %2518 = vmatmul.f32.gmra.mxu0 %v2485
        %v2519 = vpop.f32.mrf.mxu0
        %v2520 = vadd.f32 0.0, %v2519
        %2521 = vmatmul.f32.gmra.mxu0 %v2488
        %v2522 = vpop.f32.mrf.mxu0
        %v2523 = vadd.f32 0.0, %v2522
        %2524 = vmatmul.f32.gmra.mxu0 %v2491
        %v2525 = vpop.f32.mrf.mxu0
        %v2526 = vadd.f32 0.0, %v2525
        %2527 = vmatmul.f32.gmra.mxu0 %v2494
        %v2528 = vpop.f32.mrf.mxu0
        %v2529 = vadd.f32 0.0, %v2528
        %2530 = vdwg.mxu0
        %v2532 = vsel %vm2200, %v2389, 0
        %v2535 = vsel %vm2200, %v2390, 0
        %v2538 = vsel %vm2200, %v2391, 0
        %v2541 = vsel %vm2200, %v2392, 0
        %v2544 = vsel %vm2200, %v2285, 0
        %v2547 = vsel %vm2200, %v2286, 0
        %2549 = vmatpush.xpose.msra.mxu0 0.0
        %2550 = vmatpush.xpose.msra.mxu0 0.0
        %2551 = vmatpush.xpose.msra.mxu0 0.0
        %2552 = vmatpush.xpose.msra.mxu0 0.0
        %2553 = vmatpush.xpose.msra.mxu0 0.0
        %2554 = vmatpush.xpose.msra.mxu0 0.0
        %2555 = vmatpush.xpose.msra.mxu0 0.0
        %2556 = vmatpush.xpose.msra.mxu0 0.0
        %2557 = vmatpush.xpose.msra.mxu0 0.0
        %2558 = vmatpush.xpose.msra.mxu0 0.0
        %2559 = vmatpush.xpose.msra.mxu0 0.0
        %2560 = vmatpush.xpose.msra.mxu0 0.0
        %2561 = vmatpush.xpose.msra.mxu0 0.0
        %2562 = vmatpush.xpose.msra.mxu0 0.0
        %2563 = vmatpush.xpose.msra.mxu0 %v2547
        %2564 = vmatpush.xpose.msra.mxu0 %v2544
        %2565 = vmatmul.f32.gmra.mxu0 %v2532
        %v2566 = vpop.f32.mrf.mxu0
        %v2567 = vadd.f32 0.0, %v2566
        %2568 = vmatmul.f32.gmra.mxu0 %v2535
        %v2569 = vpop.f32.mrf.mxu0
        %v2570 = vadd.f32 0.0, %v2569
        %2571 = vmatmul.f32.gmra.mxu0 %v2538
        %v2572 = vpop.f32.mrf.mxu0
        %v2573 = vadd.f32 0.0, %v2572
        %2574 = vmatmul.f32.gmra.mxu0 %v2541
        %v2575 = vpop.f32.mrf.mxu0
        %v2576 = vadd.f32 0.0, %v2575
        %2577 = vdwg.mxu0
        %v2579 = vsel %vm2200, %v2421, 0
        %v2582 = vsel %vm2200, %v2422, 0
        %v2585 = vsel %vm2200, %v2423, 0
        %v2588 = vsel %vm2200, %v2424, 0
        %v2591 = vsel %vm2200, %v2287, 0
        %v2594 = vsel %vm2200, %v2288, 0
        %2596 = vmatpush.xpose.msra.mxu0 0.0
        %2597 = vmatpush.xpose.msra.mxu0 0.0
        %2598 = vmatpush.xpose.msra.mxu0 0.0
        %2599 = vmatpush.xpose.msra.mxu0 0.0
        %2600 = vmatpush.xpose.msra.mxu0 0.0
        %2601 = vmatpush.xpose.msra.mxu0 0.0
        %2602 = vmatpush.xpose.msra.mxu0 0.0
        %2603 = vmatpush.xpose.msra.mxu0 0.0
        %2604 = vmatpush.xpose.msra.mxu0 0.0
        %2605 = vmatpush.xpose.msra.mxu0 0.0
        %2606 = vmatpush.xpose.msra.mxu0 0.0
        %2607 = vmatpush.xpose.msra.mxu0 0.0
        %2608 = vmatpush.xpose.msra.mxu0 0.0
        %2609 = vmatpush.xpose.msra.mxu0 0.0
        %2610 = vmatpush.xpose.msra.mxu0 %v2594
        %2611 = vmatpush.xpose.msra.mxu0 %v2591
        %2612 = vmatmul.f32.gmra.mxu0 %v2579
        %v2613 = vpop.f32.mrf.mxu0
        %v2614 = vadd.f32 0.0, %v2613
        %2615 = vmatmul.f32.gmra.mxu0 %v2582
        %v2616 = vpop.f32.mrf.mxu0
        %v2617 = vadd.f32 0.0, %v2616
        %2618 = vmatmul.f32.gmra.mxu0 %v2585
        %v2619 = vpop.f32.mrf.mxu0
        %v2620 = vadd.f32 0.0, %v2619
        %2621 = vmatmul.f32.gmra.mxu0 %v2588
        %v2622 = vpop.f32.mrf.mxu0
        %v2623 = vadd.f32 0.0, %v2622
        %2624 = vdwg.mxu0
        %2625 = vxpose.xlu0.b32.start [1/16] %v2473, 128
        %2626 = vxpose.xlu0.b32.cont [2/16] %v2476, 128
        %2627 = vxpose.xlu0.b32.cont [3/16] %v2479, 128
        %2628 = vxpose.xlu0.b32.cont [4/16] %v2482, 128
        %2629 = vxpose.xlu0.b32.cont [5/16] 0.0, 128
        %2630 = vxpose.xlu0.b32.cont [6/16] 0.0, 128
        %2631 = vxpose.xlu0.b32.cont [7/16] 0.0, 128
        %2632 = vxpose.xlu0.b32.cont [8/16] 0.0, 128
        %2633 = vxpose.xlu0.b32.cont [9/16] 0.0, 128
        %2634 = vxpose.xlu0.b32.cont [10/16] 0.0, 128
        %2635 = vxpose.xlu0.b32.cont [11/16] 0.0, 128
        %2636 = vxpose.xlu0.b32.cont [12/16] 0.0, 128
        %2637 = vxpose.xlu0.b32.cont [13/16] 0.0, 128
        %2638 = vxpose.xlu0.b32.cont [14/16] 0.0, 128
        %2639 = vxpose.xlu0.b32.cont [15/16] 0.0, 128
        %2640 = vxpose.xlu0.b32.end [16/16] 0.0, 128
        %v2641 = vpop.trf.xlu0
        %v2642 = vpop.trf.xlu0
        %v2643 = vpop.trf.xlu0
        %v2644 = vpop.trf.xlu0
        %v2645 = vpop.trf.xlu0
        %v2646 = vpop.trf.xlu0
        %v2647 = vpop.trf.xlu0
        %v2648 = vpop.trf.xlu0
        %v2649 = vpop.trf.xlu0
        %v2650 = vpop.trf.xlu0
        %v2651 = vpop.trf.xlu0
        %v2652 = vpop.trf.xlu0
        %v2653 = vpop.trf.xlu0
        %v2654 = vpop.trf.xlu0
        %v2655 = vpop.trf.xlu0
        %v2656 = vpop.trf.xlu0
        %2657 = vxpose.xlu0.b32.start [1/16] %v2520, 128
        %2658 = vxpose.xlu0.b32.cont [2/16] %v2523, 128
        %2659 = vxpose.xlu0.b32.cont [3/16] %v2526, 128
        %2660 = vxpose.xlu0.b32.cont [4/16] %v2529, 128
        %2661 = vxpose.xlu0.b32.cont [5/16] 0.0, 128
        %2662 = vxpose.xlu0.b32.cont [6/16] 0.0, 128
        %2663 = vxpose.xlu0.b32.cont [7/16] 0.0, 128
        %2664 = vxpose.xlu0.b32.cont [8/16] 0.0, 128
        %2665 = vxpose.xlu0.b32.cont [9/16] 0.0, 128
        %2666 = vxpose.xlu0.b32.cont [10/16] 0.0, 128
        %2667 = vxpose.xlu0.b32.cont [11/16] 0.0, 128
        %2668 = vxpose.xlu0.b32.cont [12/16] 0.0, 128
        %2669 = vxpose.xlu0.b32.cont [13/16] 0.0, 128
        %2670 = vxpose.xlu0.b32.cont [14/16] 0.0, 128
        %2671 = vxpose.xlu0.b32.cont [15/16] 0.0, 128
        %2672 = vxpose.xlu0.b32.end [16/16] 0.0, 128
        %v2673 = vpop.trf.xlu0
        %v2674 = vpop.trf.xlu0
        %v2675 = vpop.trf.xlu0
        %v2676 = vpop.trf.xlu0
        %v2677 = vpop.trf.xlu0
        %v2678 = vpop.trf.xlu0
        %v2679 = vpop.trf.xlu0
        %v2680 = vpop.trf.xlu0
        %v2681 = vpop.trf.xlu0
        %v2682 = vpop.trf.xlu0
        %v2683 = vpop.trf.xlu0
        %v2684 = vpop.trf.xlu0
        %v2685 = vpop.trf.xlu0
        %v2686 = vpop.trf.xlu0
        %v2687 = vpop.trf.xlu0
        %v2688 = vpop.trf.xlu0
        %2689 = vxpose.xlu0.b32.start [1/16] %v2567, 128
        %2690 = vxpose.xlu0.b32.cont [2/16] %v2570, 128
        %2691 = vxpose.xlu0.b32.cont [3/16] %v2573, 128
        %2692 = vxpose.xlu0.b32.cont [4/16] %v2576, 128
        %2693 = vxpose.xlu0.b32.cont [5/16] 0.0, 128
        %2694 = vxpose.xlu0.b32.cont [6/16] 0.0, 128
        %2695 = vxpose.xlu0.b32.cont [7/16] 0.0, 128
        %2696 = vxpose.xlu0.b32.cont [8/16] 0.0, 128
        %2697 = vxpose.xlu0.b32.cont [9/16] 0.0, 128
        %2698 = vxpose.xlu0.b32.cont [10/16] 0.0, 128
        %2699 = vxpose.xlu0.b32.cont [11/16] 0.0, 128
        %2700 = vxpose.xlu0.b32.cont [12/16] 0.0, 128
        %2701 = vxpose.xlu0.b32.cont [13/16] 0.0, 128
        %2702 = vxpose.xlu0.b32.cont [14/16] 0.0, 128
        %2703 = vxpose.xlu0.b32.cont [15/16] 0.0, 128
        %2704 = vxpose.xlu0.b32.end [16/16] 0.0, 128
        %v2705 = vpop.trf.xlu0
        %v2706 = vpop.trf.xlu0
        %v2707 = vpop.trf.xlu0
        %v2708 = vpop.trf.xlu0
        %v2709 = vpop.trf.xlu0
        %v2710 = vpop.trf.xlu0
        %v2711 = vpop.trf.xlu0
        %v2712 = vpop.trf.xlu0
        %v2713 = vpop.trf.xlu0
        %v2714 = vpop.trf.xlu0
        %v2715 = vpop.trf.xlu0
        %v2716 = vpop.trf.xlu0
        %v2717 = vpop.trf.xlu0
        %v2718 = vpop.trf.xlu0
        %v2719 = vpop.trf.xlu0
        %v2720 = vpop.trf.xlu0
        %2721 = vxpose.xlu0.b32.start [1/16] %v2614, 128
        %2722 = vxpose.xlu0.b32.cont [2/16] %v2617, 128
        %2723 = vxpose.xlu0.b32.cont [3/16] %v2620, 128
        %2724 = vxpose.xlu0.b32.cont [4/16] %v2623, 128
        %2725 = vxpose.xlu0.b32.cont [5/16] 0.0, 128
        %2726 = vxpose.xlu0.b32.cont [6/16] 0.0, 128
        %2727 = vxpose.xlu0.b32.cont [7/16] 0.0, 128
        %2728 = vxpose.xlu0.b32.cont [8/16] 0.0, 128
        %2729 = vxpose.xlu0.b32.cont [9/16] 0.0, 128
        %2730 = vxpose.xlu0.b32.cont [10/16] 0.0, 128
        %2731 = vxpose.xlu0.b32.cont [11/16] 0.0, 128
        %2732 = vxpose.xlu0.b32.cont [12/16] 0.0, 128
        %2733 = vxpose.xlu0.b32.cont [13/16] 0.0, 128
        %2734 = vxpose.xlu0.b32.cont [14/16] 0.0, 128
        %2735 = vxpose.xlu0.b32.cont [15/16] 0.0, 128
        %2736 = vxpose.xlu0.b32.end [16/16] 0.0, 128
        %v2737 = vpop.trf.xlu0
        %v2738 = vpop.trf.xlu0
        %v2739 = vpop.trf.xlu0
        %v2740 = vpop.trf.xlu0
        %v2741 = vpop.trf.xlu0
        %v2742 = vpop.trf.xlu0
        %v2743 = vpop.trf.xlu0
        %v2744 = vpop.trf.xlu0
        %v2745 = vpop.trf.xlu0
        %v2746 = vpop.trf.xlu0
        %v2747 = vpop.trf.xlu0
        %v2748 = vpop.trf.xlu0
        %v2749 = vpop.trf.xlu0
        %v2750 = vpop.trf.xlu0
        %v2751 = vpop.trf.xlu0
        %v2752 = vpop.trf.xlu0
        %v2753 = vrot.slane %v2705, 4
        %v2754 = vsel %vm1645, %v2753, %v2641
        %v2755 = vrot.slane %v2641, 4
        %v2756 = vsel %vm1645, %v2705, %v2755
        %v2758 = vunpack.c.l.s4 1983009808
        %v2759 = vunpack.c.0.s8 %v2758
        %v2760 = vperm.slane %v2754, %v2759
        %v2762 = vunpack.c.l.s4 1983009808
        %v2763 = vunpack.c.0.s8 %v2762
        %v2764 = vperm.slane %v2756, %v2763
        %v2765 = vrot.slane %v2737, 4
        %v2766 = vsel %vm1645, %v2765, %v2673
        %v2767 = vrot.slane %v2673, 4
        %v2768 = vsel %vm1645, %v2737, %v2767
        %v2770 = vunpack.c.l.s4 1983009808
        %v2771 = vunpack.c.0.s8 %v2770
        %v2772 = vperm.slane %v2766, %v2771
        %v2774 = vunpack.c.l.s4 1983009808
        %v2775 = vunpack.c.0.s8 %v2774
        %v2776 = vperm.slane %v2768, %v2775
        %v2777 = vrot.slane %v2772, 4
        %v2778 = vsel %vm1645, %v2777, %v2760
        %v2779 = vrot.slane %v2760, 4
        %v2780 = vsel %vm1645, %v2772, %v2779
        %v2782 = vunpack.c.l.s4 1934713408
        %v2783 = vunpack.c.0.s8 %v2782
        %v2784 = vperm.slane %v2778, %v2783
        %v2786 = vunpack.c.l.s4 1934713408
        %v2787 = vunpack.c.0.s8 %v2786
        %v2788 = vperm.slane %v2780, %v2787
        %v2789 = vrot.slane %v2776, 4
        %v2790 = vsel %vm1645, %v2789, %v2764
        %v2791 = vrot.slane %v2764, 4
        %v2792 = vsel %vm1645, %v2776, %v2791
        %v2794 = vunpack.c.l.s4 1934713408
        %v2795 = vunpack.c.0.s8 %v2794
        %v2796 = vperm.slane %v2790, %v2795
        %v2798 = vunpack.c.l.s4 1934713408
        %v2799 = vunpack.c.0.s8 %v2798
        %v2800 = vperm.slane %v2792, %v2799
        %v2801 = vrot.slane %v2784, 4
        %v2802 = vsel %vm1645, 0.0, %v2801
        %v2803 = vrot.slane %v2788, 4
        %v2804 = vsel %vm1645, 0.0, %v2803
        %v2805 = vrot.slane %v2796, 4
        %v2806 = vsel %vm1645, 0.0, %v2805
        %v2807 = vrot.slane %v2800, 4
        %v2808 = vsel %vm1645, 0.0, %v2807
        %v2809 = vrot.slane %v2706, 4
        %v2810 = vsel %vm1645, %v2809, %v2642
        %v2811 = vrot.slane %v2642, 4
        %v2812 = vsel %vm1645, %v2706, %v2811
        %v2814 = vunpack.c.l.s4 1983009808
        %v2815 = vunpack.c.0.s8 %v2814
        %v2816 = vperm.slane %v2810, %v2815
        %v2818 = vunpack.c.l.s4 1983009808
        %v2819 = vunpack.c.0.s8 %v2818
        %v2820 = vperm.slane %v2812, %v2819
        %v2821 = vrot.slane %v2738, 4
        %v2822 = vsel %vm1645, %v2821, %v2674
        %v2823 = vrot.slane %v2674, 4
        %v2824 = vsel %vm1645, %v2738, %v2823
        %v2826 = vunpack.c.l.s4 1983009808
        %v2827 = vunpack.c.0.s8 %v2826
        %v2828 = vperm.slane %v2822, %v2827
        %v2830 = vunpack.c.l.s4 1983009808
        %v2831 = vunpack.c.0.s8 %v2830
        %v2832 = vperm.slane %v2824, %v2831
        %v2833 = vrot.slane %v2828, 4
        %v2834 = vsel %vm1645, %v2833, %v2816
        %v2835 = vrot.slane %v2816, 4
        %v2836 = vsel %vm1645, %v2828, %v2835
        %v2838 = vunpack.c.l.s4 1934713408
        %v2839 = vunpack.c.0.s8 %v2838
        %v2840 = vperm.slane %v2834, %v2839
        %v2842 = vunpack.c.l.s4 1934713408
        %v2843 = vunpack.c.0.s8 %v2842
        %v2844 = vperm.slane %v2836, %v2843
        %v2845 = vrot.slane %v2832, 4
        %v2846 = vsel %vm1645, %v2845, %v2820
        %v2847 = vrot.slane %v2820, 4
        %v2848 = vsel %vm1645, %v2832, %v2847
        %v2850 = vunpack.c.l.s4 1934713408
        %v2851 = vunpack.c.0.s8 %v2850
        %v2852 = vperm.slane %v2846, %v2851
        %v2854 = vunpack.c.l.s4 1934713408
        %v2855 = vunpack.c.0.s8 %v2854
        %v2856 = vperm.slane %v2848, %v2855
        %v2857 = vrot.slane %v2840, 4
        %v2858 = vsel %vm1645, 0.0, %v2857
        %v2859 = vrot.slane %v2844, 4
        %v2860 = vsel %vm1645, 0.0, %v2859
        %v2861 = vrot.slane %v2852, 4
        %v2862 = vsel %vm1645, 0.0, %v2861
        %v2863 = vrot.slane %v2856, 4
        %v2864 = vsel %vm1645, 0.0, %v2863
        %v2865 = vsel %vm1645, %v2803, %v2784
        %v2867 = vunpack.c.l.s4 1983009808
        %v2868 = vunpack.c.0.s8 %v2867
        %v2869 = vperm.slane %v2865, %v2868
        %v2870 = vrot.slane %v2804, 4
        %v2871 = vsel %vm1645, %v2870, %v2802
        %v2873 = vunpack.c.l.s4 1983009808
        %v2874 = vunpack.c.0.s8 %v2873
        %v2875 = vperm.slane %v2871, %v2874
        %v2876 = vsel %vm1645, %v2807, %v2796
        %v2878 = vunpack.c.l.s4 1983009808
        %v2879 = vunpack.c.0.s8 %v2878
        %v2880 = vperm.slane %v2876, %v2879
        %v2881 = vrot.slane %v2808, 4
        %v2882 = vsel %vm1645, %v2881, %v2806
        %v2884 = vunpack.c.l.s4 1983009808
        %v2885 = vunpack.c.0.s8 %v2884
        %v2886 = vperm.slane %v2882, %v2885
        %v2887 = vrot.slane %v2875, 4
        %v2888 = vsel %vm1645, %v2887, %v2869
        %v2889 = vrot.slane %v2869, 4
        %v2890 = vsel %vm1645, %v2875, %v2889
        %v2892 = vunpack.c.l.s4 1934713408
        %v2893 = vunpack.c.0.s8 %v2892
        %v2894 = vperm.slane %v2888, %v2893
        %v2896 = vunpack.c.l.s4 1934713408
        %v2897 = vunpack.c.0.s8 %v2896
        %v2898 = vperm.slane %v2890, %v2897
        %v2899 = vrot.slane %v2886, 4
        %v2900 = vsel %vm1645, %v2899, %v2880
        %v2901 = vrot.slane %v2880, 4
        %v2902 = vsel %vm1645, %v2886, %v2901
        %v2904 = vunpack.c.l.s4 1934713408
        %v2905 = vunpack.c.0.s8 %v2904
        %v2906 = vperm.slane %v2900, %v2905
        %v2908 = vunpack.c.l.s4 1934713408
        %v2909 = vunpack.c.0.s8 %v2908
        %v2910 = vperm.slane %v2902, %v2909
        %v2911 = vrot.slane %v2906, 4
        %v2912 = vsel %vm1645, %v2911, %v2894
        %v2913 = vrot.slane %v2894, 4
        %v2914 = vsel %vm1645, %v2906, %v2913
        %v2915 = vrot.slane %v2910, 4
        %v2916 = vsel %vm1645, %v2915, %v2898
        %v2917 = vrot.slane %v2898, 4
        %v2918 = vsel %vm1645, %v2910, %v2917
        %v2919 = vsel %vm1645, %v2859, %v2840
        %v2921 = vunpack.c.l.s4 1983009808
        %v2922 = vunpack.c.0.s8 %v2921
        %v2923 = vperm.slane %v2919, %v2922
        %v2924 = vrot.slane %v2860, 4
        %v2925 = vsel %vm1645, %v2924, %v2858
        %v2927 = vunpack.c.l.s4 1983009808
        %v2928 = vunpack.c.0.s8 %v2927
        %v2929 = vperm.slane %v2925, %v2928
        %v2930 = vsel %vm1645, %v2863, %v2852
        %v2932 = vunpack.c.l.s4 1983009808
        %v2933 = vunpack.c.0.s8 %v2932
        %v2934 = vperm.slane %v2930, %v2933
        %v2935 = vrot.slane %v2864, 4
        %v2936 = vsel %vm1645, %v2935, %v2862
        %v2938 = vunpack.c.l.s4 1983009808
        %v2939 = vunpack.c.0.s8 %v2938
        %v2940 = vperm.slane %v2936, %v2939
        %v2941 = vrot.slane %v2929, 4
        %v2942 = vsel %vm1645, %v2941, %v2923
        %v2943 = vrot.slane %v2923, 4
        %v2944 = vsel %vm1645, %v2929, %v2943
        %v2946 = vunpack.c.l.s4 1934713408
        %v2947 = vunpack.c.0.s8 %v2946
        %v2948 = vperm.slane %v2942, %v2947
        %v2950 = vunpack.c.l.s4 1934713408
        %v2951 = vunpack.c.0.s8 %v2950
        %v2952 = vperm.slane %v2944, %v2951
        %v2953 = vrot.slane %v2940, 4
        %v2954 = vsel %vm1645, %v2953, %v2934
        %v2955 = vrot.slane %v2934, 4
        %v2956 = vsel %vm1645, %v2940, %v2955
        %v2958 = vunpack.c.l.s4 1934713408
        %v2959 = vunpack.c.0.s8 %v2958
        %v2960 = vperm.slane %v2954, %v2959
        %v2962 = vunpack.c.l.s4 1934713408
        %v2963 = vunpack.c.0.s8 %v2962
        %v2964 = vperm.slane %v2956, %v2963
        %v2965 = vrot.slane %v2960, 4
        %v2966 = vsel %vm1645, %v2965, %v2948
        %v2967 = vrot.slane %v2948, 4
        %v2968 = vsel %vm1645, %v2960, %v2967
        %v2969 = vrot.slane %v2964, 4
        %v2970 = vsel %vm1645, %v2969, %v2952
        %v2971 = vrot.slane %v2952, 4
        %v2972 = vsel %vm1645, %v2964, %v2971
        %2975 = vrot.lane.b32.xlu0 %v2914, 32
        %v2976 = vpop.permute.xlu0 %2975
        %2977 = vrot.lane.b32.xlu0 %v2968, 32
        %v2978 = vpop.permute.xlu0 %2977
        %2983 = vrot.lane.b32.xlu0 %v2916, 64
        %v2984 = vpop.permute.xlu0 %2983
        %2985 = vrot.lane.b32.xlu0 %v2970, 64
        %v2986 = vpop.permute.xlu0 %2985
        %2991 = vrot.lane.b32.xlu0 %v2918, 96
        %v2992 = vpop.permute.xlu0 %2991
        %2993 = vrot.lane.b32.xlu0 %v2972, 96
        %v2994 = vpop.permute.xlu0 %2993
        %v2997 = vsel %vm1068, %v2912, %v2976
        %v2998 = vsel %vm1068, %v2966, %v2978
        %v2999 = vsel %vm1768, %v2997, %v2984
        %v3000 = vsel %vm1768, %v2998, %v2986
        %v3001 = vsel %vm1770, %v2999, %v2992
        %v3002 = vsel %vm1770, %v3000, %v2994
        %v3003 = vld [vmem:[#allocation11] sm:$0xff]
        %v3004 = vld [vmem:[#allocation11 + $0x8] sm:$0xff]
        %v3005 = vld [vmem:[#allocation11 + $0x10] sm:$0xff]
        %v3006 = vld [vmem:[#allocation11 + $0x18] sm:$0xff]
        %v3007 = vld [vmem:[#allocation11 + $0x20] sm:$0xff]
        %v3008 = vld [vmem:[#allocation11 + $0x28] sm:$0xff]
        %v3009 = vld [vmem:[#allocation11 + $0x30] sm:$0xff]
        %v3010 = vld [vmem:[#allocation11 + $0x38] sm:$0xff]
        %v3011 = vld [vmem:[#allocation11 + $0x40] sm:$0xff]
        %v3012 = vld [vmem:[#allocation11 + $0x48] sm:$0xff]
        %v3013 = vld [vmem:[#allocation11 + $0x50] sm:$0xff]
        %v3014 = vld [vmem:[#allocation11 + $0x58] sm:$0xff]
        %v3015 = vld [vmem:[#allocation11 + $0x60] sm:$0xff]
        %v3016 = vld [vmem:[#allocation11 + $0x68] sm:$0xff]
        %v3017 = vld [vmem:[#allocation11 + $0x70] sm:$0xff]
        %v3018 = vld [vmem:[#allocation11 + $0x78] sm:$0xff]
        %v3019 = vperm.slane %v1809, 3
        %3020 = vmatpush.msra.mxu0 %v3018
        %3021 = vmatpush.msra.mxu0 %v3017
        %3022 = vmatpush.msra.mxu0 %v3016
        %3023 = vmatpush.msra.mxu0 %v3015
        %3024 = vmatpush.msra.mxu0 %v3014
        %3025 = vmatpush.msra.mxu0 %v3013
        %3026 = vmatpush.msra.mxu0 %v3012
        %3027 = vmatpush.msra.mxu0 %v3011
        %3028 = vmatpush.msra.mxu0 %v3010
        %3029 = vmatpush.msra.mxu0 %v3009
        %3030 = vmatpush.msra.mxu0 %v3008
        %3031 = vmatpush.msra.mxu0 %v3007
        %3032 = vmatpush.msra.mxu0 %v3006
        %3033 = vmatpush.msra.mxu0 %v3005
        %3034 = vmatpush.msra.mxu0 %v3004
        %3035 = vmatpush.msra.mxu0 %v3003
        %3036 = vmatmul.f32.gmra.mxu0 %v3001
        %v3037 = vpop.f32.mrf.mxu0
        %v3038 = vadd.f32 %v3019, %v3037
        %3039 = vmatmul.f32.gmra.mxu0 %v3002
        %v3040 = vpop.f32.mrf.mxu0
        %v3041 = vadd.f32 %v3019, %v3040
        %3042 = vdwg.mxu0
        %v3043 = vadd.f32 %v802, %v1807
        %3044 = vadd.xlane.f32.xlu0 %v3043
        %v3045 = vpop.xlane.xlu0 %3044
        %v3046 = vmul.f32 %v3045, 0.03125
        %v3047 = vsub.f32 %v3043, %v3046
        %v3048 = vmul.f32 %v3047, %v810
        %v3049 = vmul.f32 %v3048, %v3048
        %3050 = vadd.xlane.f32.xlu0 %v3049
        %v3051 = vpop.xlane.xlu0 %3050
        %v3052 = vmul.f32 %v3051, 0.03125
        %v3053 = vadd.f32 %v3052, 1e-05
        %v3054 = vrsqrt.pop %v3053
        %v3055 = vmul.f32 %v3054, %v3053
        %v3056 = vmul.f32 %v3055, %v3054
        %v3057 = vmul.f32 0.5, %v3056
        %v3058 = vsub.f32 1.5, %v3057
        %v3059 = vmul.f32 %v3054, %v3058
        %vm3060 = vweird.f32 %v3053
        %vm3061 = vweird.f32 %v3054
        %vm3062 = vmor %vm3060, %vm3061
        %v3063 = vsel %vm3062, %v3054, %v3059
        %v3064 = vmul.f32 %v3048, %v3063
        %v3065 = vperm.slane %v805, 0
        %v3066 = vmul.f32 %v3064, %v3065
        %v3067 = vperm.slane %v805, 1
        %v3068 = vadd.f32 %v3066, %v3067
        %v3069 = vadd.f32 %v803, %v3038
        %v3070 = vadd.f32 %v804, %v3041
        %3071 = vadd.xlane.f32.xlu0 %v3069
        %v3072 = vpop.xlane.xlu0 %3071
        %3073 = vadd.xlane.f32.xlu0 %v3070
        %v3074 = vpop.xlane.xlu0 %3073
        %v3075 = vmul.f32 %v3072, 0.03125
        %v3076 = vmul.f32 %v3074, 0.03125
        %v3077 = vsub.f32 %v3069, %v3075
        %v3078 = vsub.f32 %v3070, %v3076
        %v3079 = vmul.f32 %v3077, %v810
        %v3080 = vmul.f32 %v3078, %v810
        %v3081 = vmul.f32 %v3079, %v3079
        %v3082 = vmul.f32 %v3080, %v3080
        %3083 = vadd.xlane.f32.xlu0 %v3081
        %v3084 = vpop.xlane.xlu0 %3083
        %3085 = vadd.xlane.f32.xlu0 %v3082
        %v3086 = vpop.xlane.xlu0 %3085
        %v3087 = vmul.f32 %v3084, 0.03125
        %v3088 = vmul.f32 %v3086, 0.03125
        %v3089 = vadd.f32 %v3087, 1e-05
        %v3090 = vadd.f32 %v3088, 1e-05
        %v3091 = vrsqrt.pop %v3089
        %v3092 = vmul.f32 %v3091, %v3089
        %v3093 = vmul.f32 %v3092, %v3091
        %v3094 = vmul.f32 0.5, %v3093
        %v3095 = vsub.f32 1.5, %v3094
        %v3096 = vmul.f32 %v3091, %v3095
        %vm3097 = vweird.f32 %v3089
        %vm3098 = vweird.f32 %v3091
        %vm3099 = vmor %vm3097, %vm3098
        %v3100 = vsel %vm3099, %v3091, %v3096
        %v3101 = vrsqrt.pop %v3090
        %v3102 = vmul.f32 %v3101, %v3090
        %v3103 = vmul.f32 %v3102, %v3101
        %v3104 = vmul.f32 0.5, %v3103
        %v3105 = vsub.f32 1.5, %v3104
        %v3106 = vmul.f32 %v3101, %v3105
        %vm3107 = vweird.f32 %v3090
        %vm3108 = vweird.f32 %v3101
        %vm3109 = vmor %vm3107, %vm3108
        %v3110 = vsel %vm3109, %v3101, %v3106
        %v3111 = vmul.f32 %v3079, %v3100
        %v3112 = vmul.f32 %v3080, %v3110
        %v3113 = vperm.slane %v805, 2
        %v3114 = vmul.f32 %v3111, %v3113
        %v3115 = vmul.f32 %v3112, %v3113
        %v3116 = vperm.slane %v805, 3
        %v3117 = vadd.f32 %v3114, %v3116
        %v3118 = vadd.f32 %v3115, %v3116
        %v3119 = vld [vmem:[#allocation20] sm:$0xf]
        %v3120 = vld [vmem:[#allocation14] sm:$0xff]
        %v3121 = vld [vmem:[#allocation14 + $0x8] sm:$0xff]
        %v3122 = vld [vmem:[#allocation14 + $0x10] sm:$0xff]
        %v3123 = vld [vmem:[#allocation14 + $0x18] sm:$0xff]
        %v3124 = vld [vmem:[#allocation14 + $0x20] sm:$0xff]
        %v3125 = vld [vmem:[#allocation14 + $0x28] sm:$0xff]
        %v3126 = vld [vmem:[#allocation14 + $0x30] sm:$0xff]
        %v3127 = vld [vmem:[#allocation14 + $0x38] sm:$0xff]
        %v3128 = vld [vmem:[#allocation14 + $0x40] sm:$0xff]
        %v3129 = vld [vmem:[#allocation14 + $0x48] sm:$0xff]
        %v3130 = vld [vmem:[#allocation14 + $0x50] sm:$0xff]
        %v3131 = vld [vmem:[#allocation14 + $0x58] sm:$0xff]
        %v3132 = vld [vmem:[#allocation14 + $0x60] sm:$0xff]
        %v3133 = vld [vmem:[#allocation14 + $0x68] sm:$0xff]
        %v3134 = vld [vmem:[#allocation14 + $0x70] sm:$0xff]
        %v3135 = vld [vmem:[#allocation14 + $0x78] sm:$0xff]
        %v3136 = vperm.slane %v3119, 0
        %3137 = vmatpush.msra.mxu0 %v3135
        %3138 = vmatpush.msra.mxu0 %v3134
        %3139 = vmatpush.msra.mxu0 %v3133
        %3140 = vmatpush.msra.mxu0 %v3132
        %3141 = vmatpush.msra.mxu0 %v3131
        %3142 = vmatpush.msra.mxu0 %v3130
        %3143 = vmatpush.msra.mxu0 %v3129
        %3144 = vmatpush.msra.mxu0 %v3128
        %3145 = vmatpush.msra.mxu0 %v3127
        %3146 = vmatpush.msra.mxu0 %v3126
        %3147 = vmatpush.msra.mxu0 %v3125
        %3148 = vmatpush.msra.mxu0 %v3124
        %3149 = vmatpush.msra.mxu0 %v3123
        %3150 = vmatpush.msra.mxu0 %v3122
        %3151 = vmatpush.msra.mxu0 %v3121
        %3152 = vmatpush.msra.mxu0 %v3120
        %3153 = vmatmul.f32.gmra.mxu0 %v3068
        %v3154 = vpop.f32.mrf.mxu0
        %v3155 = vadd.f32 %v3136, %v3154
        %3156 = vdwg.mxu0
        %v3157 = vld [vmem:[#allocation16] sm:$0xff]
        %v3158 = vld [vmem:[#allocation16 + $0x8] sm:$0xff]
        %v3159 = vld [vmem:[#allocation16 + $0x10] sm:$0xff]
        %v3160 = vld [vmem:[#allocation16 + $0x18] sm:$0xff]
        %v3161 = vld [vmem:[#allocation16 + $0x20] sm:$0xff]
        %v3162 = vld [vmem:[#allocation16 + $0x28] sm:$0xff]
        %v3163 = vld [vmem:[#allocation16 + $0x30] sm:$0xff]
        %v3164 = vld [vmem:[#allocation16 + $0x38] sm:$0xff]
        %v3165 = vld [vmem:[#allocation16 + $0x40] sm:$0xff]
        %v3166 = vld [vmem:[#allocation16 + $0x48] sm:$0xff]
        %v3167 = vld [vmem:[#allocation16 + $0x50] sm:$0xff]
        %v3168 = vld [vmem:[#allocation16 + $0x58] sm:$0xff]
        %v3169 = vld [vmem:[#allocation16 + $0x60] sm:$0xff]
        %v3170 = vld [vmem:[#allocation16 + $0x68] sm:$0xff]
        %v3171 = vld [vmem:[#allocation16 + $0x70] sm:$0xff]
        %v3172 = vld [vmem:[#allocation16 + $0x78] sm:$0xff]
        %v3173 = vperm.slane %v3119, 1
        %3174 = vmatpush.msra.mxu0 %v3172
        %3175 = vmatpush.msra.mxu0 %v3171
        %3176 = vmatpush.msra.mxu0 %v3170
        %3177 = vmatpush.msra.mxu0 %v3169
        %3178 = vmatpush.msra.mxu0 %v3168
        %3179 = vmatpush.msra.mxu0 %v3167
        %3180 = vmatpush.msra.mxu0 %v3166
        %3181 = vmatpush.msra.mxu0 %v3165
        %3182 = vmatpush.msra.mxu0 %v3164
        %3183 = vmatpush.msra.mxu0 %v3163
        %3184 = vmatpush.msra.mxu0 %v3162
        %3185 = vmatpush.msra.mxu0 %v3161
        %3186 = vmatpush.msra.mxu0 %v3160
        %3187 = vmatpush.msra.mxu0 %v3159
        %3188 = vmatpush.msra.mxu0 %v3158
        %3189 = vmatpush.msra.mxu0 %v3157
        %3190 = vmatmul.f32.gmra.mxu0 %v3117
        %v3191 = vpop.f32.mrf.mxu0
        %v3192 = vadd.f32 %v3173, %v3191
        %3193 = vmatmul.f32.gmra.mxu0 %v3118
        %v3194 = vpop.f32.mrf.mxu0
        %v3195 = vadd.f32 %v3173, %v3194
        %3196 = vdwg.mxu0
        %v3197 = vld [vmem:[#allocation17] sm:$0xff]
        %v3198 = vld [vmem:[#allocation17 + $0x8] sm:$0xff]
        %v3199 = vld [vmem:[#allocation17 + $0x10] sm:$0xff]
        %v3200 = vld [vmem:[#allocation17 + $0x18] sm:$0xff]
        %v3201 = vld [vmem:[#allocation17 + $0x20] sm:$0xff]
        %v3202 = vld [vmem:[#allocation17 + $0x28] sm:$0xff]
        %v3203 = vld [vmem:[#allocation17 + $0x30] sm:$0xff]
        %v3204 = vld [vmem:[#allocation17 + $0x38] sm:$0xff]
        %v3205 = vld [vmem:[#allocation17 + $0x40] sm:$0xff]
        %v3206 = vld [vmem:[#allocation17 + $0x48] sm:$0xff]
        %v3207 = vld [vmem:[#allocation17 + $0x50] sm:$0xff]
        %v3208 = vld [vmem:[#allocation17 + $0x58] sm:$0xff]
        %v3209 = vld [vmem:[#allocation17 + $0x60] sm:$0xff]
        %v3210 = vld [vmem:[#allocation17 + $0x68] sm:$0xff]
        %v3211 = vld [vmem:[#allocation17 + $0x70] sm:$0xff]
        %v3212 = vld [vmem:[#allocation17 + $0x78] sm:$0xff]
        %v3213 = vperm.slane %v3119, 2
        %3214 = vmatpush.msra.mxu0 %v3212
        %3215 = vmatpush.msra.mxu0 %v3211
        %3216 = vmatpush.msra.mxu0 %v3210
        %3217 = vmatpush.msra.mxu0 %v3209
        %3218 = vmatpush.msra.mxu0 %v3208
        %3219 = vmatpush.msra.mxu0 %v3207
        %3220 = vmatpush.msra.mxu0 %v3206
        %3221 = vmatpush.msra.mxu0 %v3205
        %3222 = vmatpush.msra.mxu0 %v3204
        %3223 = vmatpush.msra.mxu0 %v3203
        %3224 = vmatpush.msra.mxu0 %v3202
        %3225 = vmatpush.msra.mxu0 %v3201
        %3226 = vmatpush.msra.mxu0 %v3200
        %3227 = vmatpush.msra.mxu0 %v3199
        %3228 = vmatpush.msra.mxu0 %v3198
        %3229 = vmatpush.msra.mxu0 %v3197
        %3230 = vmatmul.f32.gmra.mxu0 %v3117
        %v3231 = vpop.f32.mrf.mxu0
        %v3232 = vadd.f32 %v3213, %v3231
        %3233 = vmatmul.f32.gmra.mxu0 %v3118
        %v3234 = vpop.f32.mrf.mxu0
        %v3235 = vadd.f32 %v3213, %v3234
        %3236 = vdwg.mxu0
        %3238 = vrot.lane.b32.xlu0 %v3155, 96
        %v3239 = vpop.permute.xlu0 %3238
        %3240 = vrot.lane.b32.xlu0 %v3155, 64
        %v3241 = vpop.permute.xlu0 %3240
        %3242 = vrot.lane.b32.xlu0 %v3155, 32
        %v3243 = vpop.permute.xlu0 %3242
        %3246 = vrot.lane.b32.xlu0 %v3192, 96
        %v3247 = vpop.permute.xlu0 %3246
        %3248 = vrot.lane.b32.xlu0 %v3195, 96
        %v3249 = vpop.permute.xlu0 %3248
        %3252 = vrot.lane.b32.xlu0 %v3192, 64
        %v3253 = vpop.permute.xlu0 %3252
        %3254 = vrot.lane.b32.xlu0 %v3195, 64
        %v3255 = vpop.permute.xlu0 %3254
        %3258 = vrot.lane.b32.xlu0 %v3192, 32
        %v3259 = vpop.permute.xlu0 %3258
        %3260 = vrot.lane.b32.xlu0 %v3195, 32
        %v3261 = vpop.permute.xlu0 %3260
        %3264 = vxpose.xlu0.b32.start [1/16] %v3192, 128
        %3265 = vxpose.xlu0.b32.cont [2/16] %v3195, 128
        %3266 = vxpose.xlu0.b32.cont [3/16] 0.0, 128
        %3267 = vxpose.xlu0.b32.cont [4/16] 0.0, 128
        %3268 = vxpose.xlu0.b32.cont [5/16] 0.0, 128
        %3269 = vxpose.xlu0.b32.cont [6/16] 0.0, 128
        %3270 = vxpose.xlu0.b32.cont [7/16] 0.0, 128
        %3271 = vxpose.xlu0.b32.cont [8/16] 0.0, 128
        %3272 = vxpose.xlu0.b32.cont [9/16] 0.0, 128
        %3273 = vxpose.xlu0.b32.cont [10/16] 0.0, 128
        %3274 = vxpose.xlu0.b32.cont [11/16] 0.0, 128
        %3275 = vxpose.xlu0.b32.cont [12/16] 0.0, 128
        %3276 = vxpose.xlu0.b32.cont [13/16] 0.0, 128
        %3277 = vxpose.xlu0.b32.cont [14/16] 0.0, 128
        %3278 = vxpose.xlu0.b32.cont [15/16] 0.0, 128
        %3279 = vxpose.xlu0.b32.end [16/16] 0.0, 128
        %v3280 = vpop.trf.xlu0
        %v3281 = vpop.trf.xlu0
        %v3282 = vpop.trf.xlu0
        %v3283 = vpop.trf.xlu0
        %v3284 = vpop.trf.xlu0
        %v3285 = vpop.trf.xlu0
        %v3286 = vpop.trf.xlu0
        %v3287 = vpop.trf.xlu0
        %v3288 = vpop.trf.xlu0
        %v3289 = vpop.trf.xlu0
        %v3290 = vpop.trf.xlu0
        %v3291 = vpop.trf.xlu0
        %v3292 = vpop.trf.xlu0
        %v3293 = vpop.trf.xlu0
        %v3294 = vpop.trf.xlu0
        %v3295 = vpop.trf.xlu0
        %3296 = vxpose.xlu0.b32.start [1/16] %v3247, 128
        %3297 = vxpose.xlu0.b32.cont [2/16] %v3249, 128
        %3298 = vxpose.xlu0.b32.cont [3/16] 0.0, 128
        %3299 = vxpose.xlu0.b32.cont [4/16] 0.0, 128
        %3300 = vxpose.xlu0.b32.cont [5/16] 0.0, 128
        %3301 = vxpose.xlu0.b32.cont [6/16] 0.0, 128
        %3302 = vxpose.xlu0.b32.cont [7/16] 0.0, 128
        %3303 = vxpose.xlu0.b32.cont [8/16] 0.0, 128
        %3304 = vxpose.xlu0.b32.cont [9/16] 0.0, 128
        %3305 = vxpose.xlu0.b32.cont [10/16] 0.0, 128
        %3306 = vxpose.xlu0.b32.cont [11/16] 0.0, 128
        %3307 = vxpose.xlu0.b32.cont [12/16] 0.0, 128
        %3308 = vxpose.xlu0.b32.cont [13/16] 0.0, 128
        %3309 = vxpose.xlu0.b32.cont [14/16] 0.0, 128
        %3310 = vxpose.xlu0.b32.cont [15/16] 0.0, 128
        %3311 = vxpose.xlu0.b32.end [16/16] 0.0, 128
        %v3312 = vpop.trf.xlu0
        %v3313 = vpop.trf.xlu0
        %v3314 = vpop.trf.xlu0
        %v3315 = vpop.trf.xlu0
        %v3316 = vpop.trf.xlu0
        %v3317 = vpop.trf.xlu0
        %v3318 = vpop.trf.xlu0
        %v3319 = vpop.trf.xlu0
        %v3320 = vpop.trf.xlu0
        %v3321 = vpop.trf.xlu0
        %v3322 = vpop.trf.xlu0
        %v3323 = vpop.trf.xlu0
        %v3324 = vpop.trf.xlu0
        %v3325 = vpop.trf.xlu0
        %v3326 = vpop.trf.xlu0
        %v3327 = vpop.trf.xlu0
        %3328 = vxpose.xlu0.b32.start [1/16] %v3253, 128
        %3329 = vxpose.xlu0.b32.cont [2/16] %v3255, 128
        %3330 = vxpose.xlu0.b32.cont [3/16] 0.0, 128
        %3331 = vxpose.xlu0.b32.cont [4/16] 0.0, 128
        %3332 = vxpose.xlu0.b32.cont [5/16] 0.0, 128
        %3333 = vxpose.xlu0.b32.cont [6/16] 0.0, 128
        %3334 = vxpose.xlu0.b32.cont [7/16] 0.0, 128
        %3335 = vxpose.xlu0.b32.cont [8/16] 0.0, 128
        %3336 = vxpose.xlu0.b32.cont [9/16] 0.0, 128
        %3337 = vxpose.xlu0.b32.cont [10/16] 0.0, 128
        %3338 = vxpose.xlu0.b32.cont [11/16] 0.0, 128
        %3339 = vxpose.xlu0.b32.cont [12/16] 0.0, 128
        %3340 = vxpose.xlu0.b32.cont [13/16] 0.0, 128
        %3341 = vxpose.xlu0.b32.cont [14/16] 0.0, 128
        %3342 = vxpose.xlu0.b32.cont [15/16] 0.0, 128
        %3343 = vxpose.xlu0.b32.end [16/16] 0.0, 128
        %v3344 = vpop.trf.xlu0
        %v3345 = vpop.trf.xlu0
        %v3346 = vpop.trf.xlu0
        %v3347 = vpop.trf.xlu0
        %v3348 = vpop.trf.xlu0
        %v3349 = vpop.trf.xlu0
        %v3350 = vpop.trf.xlu0
        %v3351 = vpop.trf.xlu0
        %v3352 = vpop.trf.xlu0
        %v3353 = vpop.trf.xlu0
        %v3354 = vpop.trf.xlu0
        %v3355 = vpop.trf.xlu0
        %v3356 = vpop.trf.xlu0
        %v3357 = vpop.trf.xlu0
        %v3358 = vpop.trf.xlu0
        %v3359 = vpop.trf.xlu0
        %3360 = vxpose.xlu0.b32.start [1/16] %v3259, 128
        %3361 = vxpose.xlu0.b32.cont [2/16] %v3261, 128
        %3362 = vxpose.xlu0.b32.cont [3/16] 0.0, 128
        %3363 = vxpose.xlu0.b32.cont [4/16] 0.0, 128
        %3364 = vxpose.xlu0.b32.cont [5/16] 0.0, 128
        %3365 = vxpose.xlu0.b32.cont [6/16] 0.0, 128
        %3366 = vxpose.xlu0.b32.cont [7/16] 0.0, 128
        %3367 = vxpose.xlu0.b32.cont [8/16] 0.0, 128
        %3368 = vxpose.xlu0.b32.cont [9/16] 0.0, 128
        %3369 = vxpose.xlu0.b32.cont [10/16] 0.0, 128
        %3370 = vxpose.xlu0.b32.cont [11/16] 0.0, 128
        %3371 = vxpose.xlu0.b32.cont [12/16] 0.0, 128
        %3372 = vxpose.xlu0.b32.cont [13/16] 0.0, 128
        %3373 = vxpose.xlu0.b32.cont [14/16] 0.0, 128
        %3374 = vxpose.xlu0.b32.cont [15/16] 0.0, 128
        %3375 = vxpose.xlu0.b32.end [16/16] 0.0, 128
        %v3376 = vpop.trf.xlu0
        %v3377 = vpop.trf.xlu0
        %v3378 = vpop.trf.xlu0
        %v3379 = vpop.trf.xlu0
        %v3380 = vpop.trf.xlu0
        %v3381 = vpop.trf.xlu0
        %v3382 = vpop.trf.xlu0
        %v3383 = vpop.trf.xlu0
        %v3384 = vpop.trf.xlu0
        %v3385 = vpop.trf.xlu0
        %v3386 = vpop.trf.xlu0
        %v3387 = vpop.trf.xlu0
        %v3388 = vpop.trf.xlu0
        %v3389 = vpop.trf.xlu0
        %v3390 = vpop.trf.xlu0
        %v3391 = vpop.trf.xlu0
        %v3392 = vsel %vm1068, %v3155, 0
        %3394 = vmatpush.msra.mxu0 0.0
        %3395 = vmatpush.msra.mxu0 0.0
        %3396 = vmatpush.msra.mxu0 0.0
        %3397 = vmatpush.msra.mxu0 0.0
        %3398 = vmatpush.msra.mxu0 0.0
        %3399 = vmatpush.msra.mxu0 0.0
        %3400 = vmatpush.msra.mxu0 0.0
        %3401 = vmatpush.msra.mxu0 0.0
        %3402 = vmatpush.msra.mxu0 0.0
        %3403 = vmatpush.msra.mxu0 0.0
        %3404 = vmatpush.msra.mxu0 0.0
        %3405 = vmatpush.msra.mxu0 0.0
        %3406 = vmatpush.msra.mxu0 %v3283
        %3407 = vmatpush.msra.mxu0 %v3282
        %3408 = vmatpush.msra.mxu0 %v3281
        %3409 = vmatpush.msra.mxu0 %v3280
        %3410 = vmatmul.f32.gmra.mxu0 %v3392
        %v3411 = vpop.f32.mrf.mxu0
        %v3412 = vadd.f32 0.0, %v3411
        %3413 = vdwg.mxu0
        %v3414 = vsel %vm1068, %v3239, 0
        %3416 = vmatpush.msra.mxu0 0.0
        %3417 = vmatpush.msra.mxu0 0.0
        %3418 = vmatpush.msra.mxu0 0.0
        %3419 = vmatpush.msra.mxu0 0.0
        %3420 = vmatpush.msra.mxu0 0.0
        %3421 = vmatpush.msra.mxu0 0.0
        %3422 = vmatpush.msra.mxu0 0.0
        %3423 = vmatpush.msra.mxu0 0.0
        %3424 = vmatpush.msra.mxu0 0.0
        %3425 = vmatpush.msra.mxu0 0.0
        %3426 = vmatpush.msra.mxu0 0.0
        %3427 = vmatpush.msra.mxu0 0.0
        %3428 = vmatpush.msra.mxu0 %v3315
        %3429 = vmatpush.msra.mxu0 %v3314
        %3430 = vmatpush.msra.mxu0 %v3313
        %3431 = vmatpush.msra.mxu0 %v3312
        %3432 = vmatmul.f32.gmra.mxu0 %v3414
        %v3433 = vpop.f32.mrf.mxu0
        %v3434 = vadd.f32 0.0, %v3433
        %3435 = vdwg.mxu0
        %v3436 = vsel %vm1068, %v3241, 0
        %3438 = vmatpush.msra.mxu0 0.0
        %3439 = vmatpush.msra.mxu0 0.0
        %3440 = vmatpush.msra.mxu0 0.0
        %3441 = vmatpush.msra.mxu0 0.0
        %3442 = vmatpush.msra.mxu0 0.0
        %3443 = vmatpush.msra.mxu0 0.0
        %3444 = vmatpush.msra.mxu0 0.0
        %3445 = vmatpush.msra.mxu0 0.0
        %3446 = vmatpush.msra.mxu0 0.0
        %3447 = vmatpush.msra.mxu0 0.0
        %3448 = vmatpush.msra.mxu0 0.0
        %3449 = vmatpush.msra.mxu0 0.0
        %3450 = vmatpush.msra.mxu0 %v3347
        %3451 = vmatpush.msra.mxu0 %v3346
        %3452 = vmatpush.msra.mxu0 %v3345
        %3453 = vmatpush.msra.mxu0 %v3344
        %3454 = vmatmul.f32.gmra.mxu0 %v3436
        %v3455 = vpop.f32.mrf.mxu0
        %v3456 = vadd.f32 0.0, %v3455
        %3457 = vdwg.mxu0
        %v3458 = vsel %vm1068, %v3243, 0
        %3460 = vmatpush.msra.mxu0 0.0
        %3461 = vmatpush.msra.mxu0 0.0
        %3462 = vmatpush.msra.mxu0 0.0
        %3463 = vmatpush.msra.mxu0 0.0
        %3464 = vmatpush.msra.mxu0 0.0
        %3465 = vmatpush.msra.mxu0 0.0
        %3466 = vmatpush.msra.mxu0 0.0
        %3467 = vmatpush.msra.mxu0 0.0
        %3468 = vmatpush.msra.mxu0 0.0
        %3469 = vmatpush.msra.mxu0 0.0
        %3470 = vmatpush.msra.mxu0 0.0
        %3471 = vmatpush.msra.mxu0 0.0
        %3472 = vmatpush.msra.mxu0 %v3379
        %3473 = vmatpush.msra.mxu0 %v3378
        %3474 = vmatpush.msra.mxu0 %v3377
        %3475 = vmatpush.msra.mxu0 %v3376
        %3476 = vmatmul.f32.gmra.mxu0 %v3458
        %v3477 = vpop.f32.mrf.mxu0
        %v3478 = vadd.f32 0.0, %v3477
        %3479 = vdwg.mxu0
        %v3480 = vsel %vm2200, %v3412, -inf
        %3481 = vmax.xlane.f32.xlu0 %v3480
        %v3482 = vpop.xlane.xlu0 %3481
        %v3483 = vsel %vm2200, %v3434, -inf
        %3484 = vmax.xlane.f32.xlu0 %v3483
        %v3485 = vpop.xlane.xlu0 %3484
        %v3486 = vsel %vm2200, %v3456, -inf
        %3487 = vmax.xlane.f32.xlu0 %v3486
        %v3488 = vpop.xlane.xlu0 %3487
        %v3489 = vsel %vm2200, %v3478, -inf
        %3490 = vmax.xlane.f32.xlu0 %v3489
        %v3491 = vpop.xlane.xlu0 %3490
        %v3492 = vsub.f32 %v3412, %v3482
        %v3493 = vsub.f32 %v3434, %v3485
        %v3494 = vsub.f32 %v3456, %v3488
        %v3495 = vsub.f32 %v3478, %v3491
        %v3496 = vmul.f32 %v3492, 1.442695
        %v3497 = vpow.pop %v3496
        %v3498 = vmul.f32 %v3493, 1.442695
        %v3499 = vpow.pop %v3498
        %v3500 = vmul.f32 %v3494, 1.442695
        %v3501 = vpow.pop %v3500
        %v3502 = vmul.f32 %v3495, 1.442695
        %v3503 = vpow.pop %v3502
        %v3504 = vsel %vm2200, %v3497, 0.0
        %3505 = vadd.xlane.f32.xlu0 %v3504
        %v3506 = vpop.xlane.xlu0 %3505
        %v3507 = vsel %vm2200, %v3499, 0.0
        %3508 = vadd.xlane.f32.xlu0 %v3507
        %v3509 = vpop.xlane.xlu0 %3508
        %v3510 = vsel %vm2200, %v3501, 0.0
        %3511 = vadd.xlane.f32.xlu0 %v3510
        %v3512 = vpop.xlane.xlu0 %3511
        %v3513 = vsel %vm2200, %v3503, 0.0
        %3514 = vadd.xlane.f32.xlu0 %v3513
        %v3515 = vpop.xlane.xlu0 %3514
        %v3516 = vrcp.pop %v3506
        %v3517 = vrcp.pop %v3509
        %v3518 = vrcp.pop %v3512
        %v3519 = vrcp.pop %v3515
        %v3520 = vmul.f32 %v3497, %v3516
        %v3521 = vmul.f32 %v3499, %v3517
        %v3522 = vmul.f32 %v3501, %v3518
        %v3523 = vmul.f32 %v3503, %v3519
        %3526 = vrot.lane.b32.xlu0 %v3232, 96
        %v3527 = vpop.permute.xlu0 %3526
        %3528 = vrot.lane.b32.xlu0 %v3235, 96
        %v3529 = vpop.permute.xlu0 %3528
        %3532 = vrot.lane.b32.xlu0 %v3232, 64
        %v3533 = vpop.permute.xlu0 %3532
        %3534 = vrot.lane.b32.xlu0 %v3235, 64
        %v3535 = vpop.permute.xlu0 %3534
        %3538 = vrot.lane.b32.xlu0 %v3232, 32
        %v3539 = vpop.permute.xlu0 %3538
        %3540 = vrot.lane.b32.xlu0 %v3235, 32
        %v3541 = vpop.permute.xlu0 %3540
        %3544 = vxpose.xlu0.b32.start [1/16] %v3232, 128
        %3545 = vxpose.xlu0.b32.cont [2/16] %v3235, 128
        %3546 = vxpose.xlu0.b32.cont [3/16] 0.0, 128
        %3547 = vxpose.xlu0.b32.cont [4/16] 0.0, 128
        %3548 = vxpose.xlu0.b32.cont [5/16] 0.0, 128
        %3549 = vxpose.xlu0.b32.cont [6/16] 0.0, 128
        %3550 = vxpose.xlu0.b32.cont [7/16] 0.0, 128
        %3551 = vxpose.xlu0.b32.cont [8/16] 0.0, 128
        %3552 = vxpose.xlu0.b32.cont [9/16] 0.0, 128
        %3553 = vxpose.xlu0.b32.cont [10/16] 0.0, 128
        %3554 = vxpose.xlu0.b32.cont [11/16] 0.0, 128
        %3555 = vxpose.xlu0.b32.cont [12/16] 0.0, 128
        %3556 = vxpose.xlu0.b32.cont [13/16] 0.0, 128
        %3557 = vxpose.xlu0.b32.cont [14/16] 0.0, 128
        %3558 = vxpose.xlu0.b32.cont [15/16] 0.0, 128
        %3559 = vxpose.xlu0.b32.end [16/16] 0.0, 128
        %v3560 = vpop.trf.xlu0
        %v3561 = vpop.trf.xlu0
        %v3562 = vpop.trf.xlu0
        %v3563 = vpop.trf.xlu0
        %v3564 = vpop.trf.xlu0
        %v3565 = vpop.trf.xlu0
        %v3566 = vpop.trf.xlu0
        %v3567 = vpop.trf.xlu0
        %v3568 = vpop.trf.xlu0
        %v3569 = vpop.trf.xlu0
        %v3570 = vpop.trf.xlu0
        %v3571 = vpop.trf.xlu0
        %v3572 = vpop.trf.xlu0
        %v3573 = vpop.trf.xlu0
        %v3574 = vpop.trf.xlu0
        %v3575 = vpop.trf.xlu0
        %3576 = vxpose.xlu0.b32.start [1/16] %v3527, 128
        %3577 = vxpose.xlu0.b32.cont [2/16] %v3529, 128
        %3578 = vxpose.xlu0.b32.cont [3/16] 0.0, 128
        %3579 = vxpose.xlu0.b32.cont [4/16] 0.0, 128
        %3580 = vxpose.xlu0.b32.cont [5/16] 0.0, 128
        %3581 = vxpose.xlu0.b32.cont [6/16] 0.0, 128
        %3582 = vxpose.xlu0.b32.cont [7/16] 0.0, 128
        %3583 = vxpose.xlu0.b32.cont [8/16] 0.0, 128
        %3584 = vxpose.xlu0.b32.cont [9/16] 0.0, 128
        %3585 = vxpose.xlu0.b32.cont [10/16] 0.0, 128
        %3586 = vxpose.xlu0.b32.cont [11/16] 0.0, 128
        %3587 = vxpose.xlu0.b32.cont [12/16] 0.0, 128
        %3588 = vxpose.xlu0.b32.cont [13/16] 0.0, 128
        %3589 = vxpose.xlu0.b32.cont [14/16] 0.0, 128
        %3590 = vxpose.xlu0.b32.cont [15/16] 0.0, 128
        %3591 = vxpose.xlu0.b32.end [16/16] 0.0, 128
        %v3592 = vpop.trf.xlu0
        %v3593 = vpop.trf.xlu0
        %v3594 = vpop.trf.xlu0
        %v3595 = vpop.trf.xlu0
        %v3596 = vpop.trf.xlu0
        %v3597 = vpop.trf.xlu0
        %v3598 = vpop.trf.xlu0
        %v3599 = vpop.trf.xlu0
        %v3600 = vpop.trf.xlu0
        %v3601 = vpop.trf.xlu0
        %v3602 = vpop.trf.xlu0
        %v3603 = vpop.trf.xlu0
        %v3604 = vpop.trf.xlu0
        %v3605 = vpop.trf.xlu0
        %v3606 = vpop.trf.xlu0
        %v3607 = vpop.trf.xlu0
        %3608 = vxpose.xlu0.b32.start [1/16] %v3533, 128
        %3609 = vxpose.xlu0.b32.cont [2/16] %v3535, 128
        %3610 = vxpose.xlu0.b32.cont [3/16] 0.0, 128
        %3611 = vxpose.xlu0.b32.cont [4/16] 0.0, 128
        %3612 = vxpose.xlu0.b32.cont [5/16] 0.0, 128
        %3613 = vxpose.xlu0.b32.cont [6/16] 0.0, 128
        %3614 = vxpose.xlu0.b32.cont [7/16] 0.0, 128
        %3615 = vxpose.xlu0.b32.cont [8/16] 0.0, 128
        %3616 = vxpose.xlu0.b32.cont [9/16] 0.0, 128
        %3617 = vxpose.xlu0.b32.cont [10/16] 0.0, 128
        %3618 = vxpose.xlu0.b32.cont [11/16] 0.0, 128
        %3619 = vxpose.xlu0.b32.cont [12/16] 0.0, 128
        %3620 = vxpose.xlu0.b32.cont [13/16] 0.0, 128
        %3621 = vxpose.xlu0.b32.cont [14/16] 0.0, 128
        %3622 = vxpose.xlu0.b32.cont [15/16] 0.0, 128
        %3623 = vxpose.xlu0.b32.end [16/16] 0.0, 128
        %v3624 = vpop.trf.xlu0
        %v3625 = vpop.trf.xlu0
        %v3626 = vpop.trf.xlu0
        %v3627 = vpop.trf.xlu0
        %v3628 = vpop.trf.xlu0
        %v3629 = vpop.trf.xlu0
        %v3630 = vpop.trf.xlu0
        %v3631 = vpop.trf.xlu0
        %v3632 = vpop.trf.xlu0
        %v3633 = vpop.trf.xlu0
        %v3634 = vpop.trf.xlu0
        %v3635 = vpop.trf.xlu0
        %v3636 = vpop.trf.xlu0
        %v3637 = vpop.trf.xlu0
        %v3638 = vpop.trf.xlu0
        %v3639 = vpop.trf.xlu0
        %3640 = vxpose.xlu0.b32.start [1/16] %v3539, 128
        %3641 = vxpose.xlu0.b32.cont [2/16] %v3541, 128
        %3642 = vxpose.xlu0.b32.cont [3/16] 0.0, 128
        %3643 = vxpose.xlu0.b32.cont [4/16] 0.0, 128
        %3644 = vxpose.xlu0.b32.cont [5/16] 0.0, 128
        %3645 = vxpose.xlu0.b32.cont [6/16] 0.0, 128
        %3646 = vxpose.xlu0.b32.cont [7/16] 0.0, 128
        %3647 = vxpose.xlu0.b32.cont [8/16] 0.0, 128
        %3648 = vxpose.xlu0.b32.cont [9/16] 0.0, 128
        %3649 = vxpose.xlu0.b32.cont [10/16] 0.0, 128
        %3650 = vxpose.xlu0.b32.cont [11/16] 0.0, 128
        %3651 = vxpose.xlu0.b32.cont [12/16] 0.0, 128
        %3652 = vxpose.xlu0.b32.cont [13/16] 0.0, 128
        %3653 = vxpose.xlu0.b32.cont [14/16] 0.0, 128
        %3654 = vxpose.xlu0.b32.cont [15/16] 0.0, 128
        %3655 = vxpose.xlu0.b32.end [16/16] 0.0, 128
        %v3656 = vpop.trf.xlu0
        %v3657 = vpop.trf.xlu0
        %v3658 = vpop.trf.xlu0
        %v3659 = vpop.trf.xlu0
        %v3660 = vpop.trf.xlu0
        %v3661 = vpop.trf.xlu0
        %v3662 = vpop.trf.xlu0
        %v3663 = vpop.trf.xlu0
        %v3664 = vpop.trf.xlu0
        %v3665 = vpop.trf.xlu0
        %v3666 = vpop.trf.xlu0
        %v3667 = vpop.trf.xlu0
        %v3668 = vpop.trf.xlu0
        %v3669 = vpop.trf.xlu0
        %v3670 = vpop.trf.xlu0
        %v3671 = vpop.trf.xlu0
        %v3673 = vsel %vm2200, %v3560, 0
        %v3676 = vsel %vm2200, %v3561, 0
        %v3679 = vsel %vm2200, %v3562, 0
        %v3682 = vsel %vm2200, %v3563, 0
        %v3685 = vsel %vm2200, %v3520, 0
        %3687 = vmatpush.xpose.msra.mxu0 0.0
        %3688 = vmatpush.xpose.msra.mxu0 0.0
        %3689 = vmatpush.xpose.msra.mxu0 0.0
        %3690 = vmatpush.xpose.msra.mxu0 0.0
        %3691 = vmatpush.xpose.msra.mxu0 0.0
        %3692 = vmatpush.xpose.msra.mxu0 0.0
        %3693 = vmatpush.xpose.msra.mxu0 0.0
        %3694 = vmatpush.xpose.msra.mxu0 0.0
        %3695 = vmatpush.xpose.msra.mxu0 0.0
        %3696 = vmatpush.xpose.msra.mxu0 0.0
        %3697 = vmatpush.xpose.msra.mxu0 0.0
        %3698 = vmatpush.xpose.msra.mxu0 0.0
        %3699 = vmatpush.xpose.msra.mxu0 0.0
        %3700 = vmatpush.xpose.msra.mxu0 0.0
        %3701 = vmatpush.xpose.msra.mxu0 0.0
        %3702 = vmatpush.xpose.msra.mxu0 %v3685
        %3703 = vmatmul.f32.gmra.mxu0 %v3673
        %v3704 = vpop.f32.mrf.mxu0
        %v3705 = vadd.f32 0.0, %v3704
        %3706 = vmatmul.f32.gmra.mxu0 %v3676
        %v3707 = vpop.f32.mrf.mxu0
        %v3708 = vadd.f32 0.0, %v3707
        %3709 = vmatmul.f32.gmra.mxu0 %v3679
        %v3710 = vpop.f32.mrf.mxu0
        %v3711 = vadd.f32 0.0, %v3710
        %3712 = vmatmul.f32.gmra.mxu0 %v3682
        %v3713 = vpop.f32.mrf.mxu0
        %v3714 = vadd.f32 0.0, %v3713
        %3715 = vdwg.mxu0
        %v3717 = vsel %vm2200, %v3592, 0
        %v3720 = vsel %vm2200, %v3593, 0
        %v3723 = vsel %vm2200, %v3594, 0
        %v3726 = vsel %vm2200, %v3595, 0
        %v3729 = vsel %vm2200, %v3521, 0
        %3731 = vmatpush.xpose.msra.mxu0 0.0
        %3732 = vmatpush.xpose.msra.mxu0 0.0
        %3733 = vmatpush.xpose.msra.mxu0 0.0
        %3734 = vmatpush.xpose.msra.mxu0 0.0
        %3735 = vmatpush.xpose.msra.mxu0 0.0
        %3736 = vmatpush.xpose.msra.mxu0 0.0
        %3737 = vmatpush.xpose.msra.mxu0 0.0
        %3738 = vmatpush.xpose.msra.mxu0 0.0
        %3739 = vmatpush.xpose.msra.mxu0 0.0
        %3740 = vmatpush.xpose.msra.mxu0 0.0
        %3741 = vmatpush.xpose.msra.mxu0 0.0
        %3742 = vmatpush.xpose.msra.mxu0 0.0
        %3743 = vmatpush.xpose.msra.mxu0 0.0
        %3744 = vmatpush.xpose.msra.mxu0 0.0
        %3745 = vmatpush.xpose.msra.mxu0 0.0
        %3746 = vmatpush.xpose.msra.mxu0 %v3729
        %3747 = vmatmul.f32.gmra.mxu0 %v3717
        %v3748 = vpop.f32.mrf.mxu0
        %v3749 = vadd.f32 0.0, %v3748
        %3750 = vmatmul.f32.gmra.mxu0 %v3720
        %v3751 = vpop.f32.mrf.mxu0
        %v3752 = vadd.f32 0.0, %v3751
        %3753 = vmatmul.f32.gmra.mxu0 %v3723
        %v3754 = vpop.f32.mrf.mxu0
        %v3755 = vadd.f32 0.0, %v3754
        %3756 = vmatmul.f32.gmra.mxu0 %v3726
        %v3757 = vpop.f32.mrf.mxu0
        %v3758 = vadd.f32 0.0, %v3757
        %3759 = vdwg.mxu0
        %v3761 = vsel %vm2200, %v3624, 0
        %v3764 = vsel %vm2200, %v3625, 0
        %v3767 = vsel %vm2200, %v3626, 0
        %v3770 = vsel %vm2200, %v3627, 0
        %v3773 = vsel %vm2200, %v3522, 0
        %3775 = vmatpush.xpose.msra.mxu0 0.0
        %3776 = vmatpush.xpose.msra.mxu0 0.0
        %3777 = vmatpush.xpose.msra.mxu0 0.0
        %3778 = vmatpush.xpose.msra.mxu0 0.0
        %3779 = vmatpush.xpose.msra.mxu0 0.0
        %3780 = vmatpush.xpose.msra.mxu0 0.0
        %3781 = vmatpush.xpose.msra.mxu0 0.0
        %3782 = vmatpush.xpose.msra.mxu0 0.0
        %3783 = vmatpush.xpose.msra.mxu0 0.0
        %3784 = vmatpush.xpose.msra.mxu0 0.0
        %3785 = vmatpush.xpose.msra.mxu0 0.0
        %3786 = vmatpush.xpose.msra.mxu0 0.0
        %3787 = vmatpush.xpose.msra.mxu0 0.0
        %3788 = vmatpush.xpose.msra.mxu0 0.0
        %3789 = vmatpush.xpose.msra.mxu0 0.0
        %3790 = vmatpush.xpose.msra.mxu0 %v3773
        %3791 = vmatmul.f32.gmra.mxu0 %v3761
        %v3792 = vpop.f32.mrf.mxu0
        %v3793 = vadd.f32 0.0, %v3792
        %3794 = vmatmul.f32.gmra.mxu0 %v3764
        %v3795 = vpop.f32.mrf.mxu0
        %v3796 = vadd.f32 0.0, %v3795
        %3797 = vmatmul.f32.gmra.mxu0 %v3767
        %v3798 = vpop.f32.mrf.mxu0
        %v3799 = vadd.f32 0.0, %v3798
        %3800 = vmatmul.f32.gmra.mxu0 %v3770
        %v3801 = vpop.f32.mrf.mxu0
        %v3802 = vadd.f32 0.0, %v3801
        %3803 = vdwg.mxu0
        %v3805 = vsel %vm2200, %v3656, 0
        %v3808 = vsel %vm2200, %v3657, 0
        %v3811 = vsel %vm2200, %v3658, 0
        %v3814 = vsel %vm2200, %v3659, 0
        %v3817 = vsel %vm2200, %v3523, 0
        %3819 = vmatpush.xpose.msra.mxu0 0.0
        %3820 = vmatpush.xpose.msra.mxu0 0.0
        %3821 = vmatpush.xpose.msra.mxu0 0.0
        %3822 = vmatpush.xpose.msra.mxu0 0.0
        %3823 = vmatpush.xpose.msra.mxu0 0.0
        %3824 = vmatpush.xpose.msra.mxu0 0.0
        %3825 = vmatpush.xpose.msra.mxu0 0.0
        %3826 = vmatpush.xpose.msra.mxu0 0.0
        %3827 = vmatpush.xpose.msra.mxu0 0.0
        %3828 = vmatpush.xpose.msra.mxu0 0.0
        %3829 = vmatpush.xpose.msra.mxu0 0.0
        %3830 = vmatpush.xpose.msra.mxu0 0.0
        %3831 = vmatpush.xpose.msra.mxu0 0.0
        %3832 = vmatpush.xpose.msra.mxu0 0.0
        %3833 = vmatpush.xpose.msra.mxu0 0.0
        %3834 = vmatpush.xpose.msra.mxu0 %v3817
        %3835 = vmatmul.f32.gmra.mxu0 %v3805
        %v3836 = vpop.f32.mrf.mxu0
        %v3837 = vadd.f32 0.0, %v3836
        %3838 = vmatmul.f32.gmra.mxu0 %v3808
        %v3839 = vpop.f32.mrf.mxu0
        %v3840 = vadd.f32 0.0, %v3839
        %3841 = vmatmul.f32.gmra.mxu0 %v3811
        %v3842 = vpop.f32.mrf.mxu0
        %v3843 = vadd.f32 0.0, %v3842
        %3844 = vmatmul.f32.gmra.mxu0 %v3814
        %v3845 = vpop.f32.mrf.mxu0
        %v3846 = vadd.f32 0.0, %v3845
        %3847 = vdwg.mxu0
        %3848 = vxpose.xlu0.b32.start [1/16] %v3705, 128
        %3849 = vxpose.xlu0.b32.cont [2/16] %v3708, 128
        %3850 = vxpose.xlu0.b32.cont [3/16] %v3711, 128
        %3851 = vxpose.xlu0.b32.cont [4/16] %v3714, 128
        %3852 = vxpose.xlu0.b32.cont [5/16] 0.0, 128
        %3853 = vxpose.xlu0.b32.cont [6/16] 0.0, 128
        %3854 = vxpose.xlu0.b32.cont [7/16] 0.0, 128
        %3855 = vxpose.xlu0.b32.cont [8/16] 0.0, 128
        %3856 = vxpose.xlu0.b32.cont [9/16] 0.0, 128
        %3857 = vxpose.xlu0.b32.cont [10/16] 0.0, 128
        %3858 = vxpose.xlu0.b32.cont [11/16] 0.0, 128
        %3859 = vxpose.xlu0.b32.cont [12/16] 0.0, 128
        %3860 = vxpose.xlu0.b32.cont [13/16] 0.0, 128
        %3861 = vxpose.xlu0.b32.cont [14/16] 0.0, 128
        %3862 = vxpose.xlu0.b32.cont [15/16] 0.0, 128
        %3863 = vxpose.xlu0.b32.end [16/16] 0.0, 128
        %v3864 = vpop.trf.xlu0
        %v3865 = vpop.trf.xlu0
        %v3866 = vpop.trf.xlu0
        %v3867 = vpop.trf.xlu0
        %v3868 = vpop.trf.xlu0
        %v3869 = vpop.trf.xlu0
        %v3870 = vpop.trf.xlu0
        %v3871 = vpop.trf.xlu0
        %v3872 = vpop.trf.xlu0
        %v3873 = vpop.trf.xlu0
        %v3874 = vpop.trf.xlu0
        %v3875 = vpop.trf.xlu0
        %v3876 = vpop.trf.xlu0
        %v3877 = vpop.trf.xlu0
        %v3878 = vpop.trf.xlu0
        %v3879 = vpop.trf.xlu0
        %3880 = vxpose.xlu0.b32.start [1/16] %v3749, 128
        %3881 = vxpose.xlu0.b32.cont [2/16] %v3752, 128
        %3882 = vxpose.xlu0.b32.cont [3/16] %v3755, 128
        %3883 = vxpose.xlu0.b32.cont [4/16] %v3758, 128
        %3884 = vxpose.xlu0.b32.cont [5/16] 0.0, 128
        %3885 = vxpose.xlu0.b32.cont [6/16] 0.0, 128
        %3886 = vxpose.xlu0.b32.cont [7/16] 0.0, 128
        %3887 = vxpose.xlu0.b32.cont [8/16] 0.0, 128
        %3888 = vxpose.xlu0.b32.cont [9/16] 0.0, 128
        %3889 = vxpose.xlu0.b32.cont [10/16] 0.0, 128
        %3890 = vxpose.xlu0.b32.cont [11/16] 0.0, 128
        %3891 = vxpose.xlu0.b32.cont [12/16] 0.0, 128
        %3892 = vxpose.xlu0.b32.cont [13/16] 0.0, 128
        %3893 = vxpose.xlu0.b32.cont [14/16] 0.0, 128
        %3894 = vxpose.xlu0.b32.cont [15/16] 0.0, 128
        %3895 = vxpose.xlu0.b32.end [16/16] 0.0, 128
        %v3896 = vpop.trf.xlu0
        %v3897 = vpop.trf.xlu0
        %v3898 = vpop.trf.xlu0
        %v3899 = vpop.trf.xlu0
        %v3900 = vpop.trf.xlu0
        %v3901 = vpop.trf.xlu0
        %v3902 = vpop.trf.xlu0
        %v3903 = vpop.trf.xlu0
        %v3904 = vpop.trf.xlu0
        %v3905 = vpop.trf.xlu0
        %v3906 = vpop.trf.xlu0
        %v3907 = vpop.trf.xlu0
        %v3908 = vpop.trf.xlu0
        %v3909 = vpop.trf.xlu0
        %v3910 = vpop.trf.xlu0
        %v3911 = vpop.trf.xlu0
        %3912 = vxpose.xlu0.b32.start [1/16] %v3793, 128
        %3913 = vxpose.xlu0.b32.cont [2/16] %v3796, 128
        %3914 = vxpose.xlu0.b32.cont [3/16] %v3799, 128
        %3915 = vxpose.xlu0.b32.cont [4/16] %v3802, 128
        %3916 = vxpose.xlu0.b32.cont [5/16] 0.0, 128
        %3917 = vxpose.xlu0.b32.cont [6/16] 0.0, 128
        %3918 = vxpose.xlu0.b32.cont [7/16] 0.0, 128
        %3919 = vxpose.xlu0.b32.cont [8/16] 0.0, 128
        %3920 = vxpose.xlu0.b32.cont [9/16] 0.0, 128
        %3921 = vxpose.xlu0.b32.cont [10/16] 0.0, 128
        %3922 = vxpose.xlu0.b32.cont [11/16] 0.0, 128
        %3923 = vxpose.xlu0.b32.cont [12/16] 0.0, 128
        %3924 = vxpose.xlu0.b32.cont [13/16] 0.0, 128
        %3925 = vxpose.xlu0.b32.cont [14/16] 0.0, 128
        %3926 = vxpose.xlu0.b32.cont [15/16] 0.0, 128
        %3927 = vxpose.xlu0.b32.end [16/16] 0.0, 128
        %v3928 = vpop.trf.xlu0
        %v3929 = vpop.trf.xlu0
        %v3930 = vpop.trf.xlu0
        %v3931 = vpop.trf.xlu0
        %v3932 = vpop.trf.xlu0
        %v3933 = vpop.trf.xlu0
        %v3934 = vpop.trf.xlu0
        %v3935 = vpop.trf.xlu0
        %v3936 = vpop.trf.xlu0
        %v3937 = vpop.trf.xlu0
        %v3938 = vpop.trf.xlu0
        %v3939 = vpop.trf.xlu0
        %v3940 = vpop.trf.xlu0
        %v3941 = vpop.trf.xlu0
        %v3942 = vpop.trf.xlu0
        %v3943 = vpop.trf.xlu0
        %3944 = vxpose.xlu0.b32.start [1/16] %v3837, 128
        %3945 = vxpose.xlu0.b32.cont [2/16] %v3840, 128
        %3946 = vxpose.xlu0.b32.cont [3/16] %v3843, 128
        %3947 = vxpose.xlu0.b32.cont [4/16] %v3846, 128
        %3948 = vxpose.xlu0.b32.cont [5/16] 0.0, 128
        %3949 = vxpose.xlu0.b32.cont [6/16] 0.0, 128
        %3950 = vxpose.xlu0.b32.cont [7/16] 0.0, 128
        %3951 = vxpose.xlu0.b32.cont [8/16] 0.0, 128
        %3952 = vxpose.xlu0.b32.cont [9/16] 0.0, 128
        %3953 = vxpose.xlu0.b32.cont [10/16] 0.0, 128
        %3954 = vxpose.xlu0.b32.cont [11/16] 0.0, 128
        %3955 = vxpose.xlu0.b32.cont [12/16] 0.0, 128
        %3956 = vxpose.xlu0.b32.cont [13/16] 0.0, 128
        %3957 = vxpose.xlu0.b32.cont [14/16] 0.0, 128
        %3958 = vxpose.xlu0.b32.cont [15/16] 0.0, 128
        %3959 = vxpose.xlu0.b32.end [16/16] 0.0, 128
        %v3960 = vpop.trf.xlu0
        %v3961 = vpop.trf.xlu0
        %v3962 = vpop.trf.xlu0
        %v3963 = vpop.trf.xlu0
        %v3964 = vpop.trf.xlu0
        %v3965 = vpop.trf.xlu0
        %v3966 = vpop.trf.xlu0
        %v3967 = vpop.trf.xlu0
        %v3968 = vpop.trf.xlu0
        %v3969 = vpop.trf.xlu0
        %v3970 = vpop.trf.xlu0
        %v3971 = vpop.trf.xlu0
        %v3972 = vpop.trf.xlu0
        %v3973 = vpop.trf.xlu0
        %v3974 = vpop.trf.xlu0
        %v3975 = vpop.trf.xlu0
        %v3976 = vrot.slane %v3928, 4
        %v3977 = vsel %vm1645, %v3976, %v3864
        %v3978 = vrot.slane %v3864, 4
        %v3979 = vsel %vm1645, %v3928, %v3978
        %v3981 = vunpack.c.l.s4 1983009808
        %v3982 = vunpack.c.0.s8 %v3981
        %v3983 = vperm.slane %v3977, %v3982
        %v3985 = vunpack.c.l.s4 1983009808
        %v3986 = vunpack.c.0.s8 %v3985
        %v3987 = vperm.slane %v3979, %v3986
        %v3988 = vrot.slane %v3960, 4
        %v3989 = vsel %vm1645, %v3988, %v3896
        %v3990 = vrot.slane %v3896, 4
        %v3991 = vsel %vm1645, %v3960, %v3990
        %v3993 = vunpack.c.l.s4 1983009808
        %v3994 = vunpack.c.0.s8 %v3993
        %v3995 = vperm.slane %v3989, %v3994
        %v3997 = vunpack.c.l.s4 1983009808
        %v3998 = vunpack.c.0.s8 %v3997
        %v3999 = vperm.slane %v3991, %v3998
        %v4000 = vrot.slane %v3995, 4
        %v4001 = vsel %vm1645, %v4000, %v3983
        %v4002 = vrot.slane %v3983, 4
        %v4003 = vsel %vm1645, %v3995, %v4002
        %v4005 = vunpack.c.l.s4 1934713408
        %v4006 = vunpack.c.0.s8 %v4005
        %v4007 = vperm.slane %v4001, %v4006
        %v4009 = vunpack.c.l.s4 1934713408
        %v4010 = vunpack.c.0.s8 %v4009
        %v4011 = vperm.slane %v4003, %v4010
        %v4012 = vrot.slane %v3999, 4
        %v4013 = vsel %vm1645, %v4012, %v3987
        %v4014 = vrot.slane %v3987, 4
        %v4015 = vsel %vm1645, %v3999, %v4014
        %v4017 = vunpack.c.l.s4 1934713408
        %v4018 = vunpack.c.0.s8 %v4017
        %v4019 = vperm.slane %v4013, %v4018
        %v4021 = vunpack.c.l.s4 1934713408
        %v4022 = vunpack.c.0.s8 %v4021
        %v4023 = vperm.slane %v4015, %v4022
        %v4024 = vrot.slane %v4007, 4
        %v4025 = vsel %vm1645, 0.0, %v4024
        %v4026 = vrot.slane %v4011, 4
        %v4027 = vsel %vm1645, 0.0, %v4026
        %v4028 = vrot.slane %v4019, 4
        %v4029 = vsel %vm1645, 0.0, %v4028
        %v4030 = vrot.slane %v4023, 4
        %v4031 = vsel %vm1645, 0.0, %v4030
        %v4032 = vsel %vm1645, %v4026, %v4007
        %v4034 = vunpack.c.l.s4 1983009808
        %v4035 = vunpack.c.0.s8 %v4034
        %v4036 = vperm.slane %v4032, %v4035
        %v4037 = vrot.slane %v4027, 4
        %v4038 = vsel %vm1645, %v4037, %v4025
        %v4040 = vunpack.c.l.s4 1983009808
        %v4041 = vunpack.c.0.s8 %v4040
        %v4042 = vperm.slane %v4038, %v4041
        %v4043 = vsel %vm1645, %v4030, %v4019
        %v4045 = vunpack.c.l.s4 1983009808
        %v4046 = vunpack.c.0.s8 %v4045
        %v4047 = vperm.slane %v4043, %v4046
        %v4048 = vrot.slane %v4031, 4
        %v4049 = vsel %vm1645, %v4048, %v4029
        %v4051 = vunpack.c.l.s4 1983009808
        %v4052 = vunpack.c.0.s8 %v4051
        %v4053 = vperm.slane %v4049, %v4052
        %v4054 = vrot.slane %v4042, 4
        %v4055 = vsel %vm1645, %v4054, %v4036
        %v4056 = vrot.slane %v4036, 4
        %v4057 = vsel %vm1645, %v4042, %v4056
        %v4059 = vunpack.c.l.s4 1934713408
        %v4060 = vunpack.c.0.s8 %v4059
        %v4061 = vperm.slane %v4055, %v4060
        %v4063 = vunpack.c.l.s4 1934713408
        %v4064 = vunpack.c.0.s8 %v4063
        %v4065 = vperm.slane %v4057, %v4064
        %v4066 = vrot.slane %v4053, 4
        %v4067 = vsel %vm1645, %v4066, %v4047
        %v4068 = vrot.slane %v4047, 4
        %v4069 = vsel %vm1645, %v4053, %v4068
        %v4071 = vunpack.c.l.s4 1934713408
        %v4072 = vunpack.c.0.s8 %v4071
        %v4073 = vperm.slane %v4067, %v4072
        %v4075 = vunpack.c.l.s4 1934713408
        %v4076 = vunpack.c.0.s8 %v4075
        %v4077 = vperm.slane %v4069, %v4076
        %v4078 = vrot.slane %v4073, 4
        %v4079 = vsel %vm1645, %v4078, %v4061
        %v4080 = vrot.slane %v4061, 4
        %v4081 = vsel %vm1645, %v4073, %v4080
        %v4082 = vrot.slane %v4077, 4
        %v4083 = vsel %vm1645, %v4082, %v4065
        %v4084 = vrot.slane %v4065, 4
        %v4085 = vsel %vm1645, %v4077, %v4084
        %4087 = vrot.lane.b32.xlu0 %v4081, 32
        %v4088 = vpop.permute.xlu0 %4087
        %4091 = vrot.lane.b32.xlu0 %v4083, 64
        %v4092 = vpop.permute.xlu0 %4091
        %4095 = vrot.lane.b32.xlu0 %v4085, 96
        %v4096 = vpop.permute.xlu0 %4095
        %v4098 = vsel %vm1068, %v4079, %v4088
        %v4099 = vsel %vm1768, %v4098, %v4092
        %v4100 = vsel %vm1770, %v4099, %v4096
        %v4101 = vld [vmem:[#allocation19] sm:$0xff]
        %v4102 = vld [vmem:[#allocation19 + $0x8] sm:$0xff]
        %v4103 = vld [vmem:[#allocation19 + $0x10] sm:$0xff]
        %v4104 = vld [vmem:[#allocation19 + $0x18] sm:$0xff]
        %v4105 = vld [vmem:[#allocation19 + $0x20] sm:$0xff]
        %v4106 = vld [vmem:[#allocation19 + $0x28] sm:$0xff]
        %v4107 = vld [vmem:[#allocation19 + $0x30] sm:$0xff]
        %v4108 = vld [vmem:[#allocation19 + $0x38] sm:$0xff]
        %v4109 = vld [vmem:[#allocation19 + $0x40] sm:$0xff]
        %v4110 = vld [vmem:[#allocation19 + $0x48] sm:$0xff]
        %v4111 = vld [vmem:[#allocation19 + $0x50] sm:$0xff]
        %v4112 = vld [vmem:[#allocation19 + $0x58] sm:$0xff]
        %v4113 = vld [vmem:[#allocation19 + $0x60] sm:$0xff]
        %v4114 = vld [vmem:[#allocation19 + $0x68] sm:$0xff]
        %v4115 = vld [vmem:[#allocation19 + $0x70] sm:$0xff]
        %v4116 = vld [vmem:[#allocation19 + $0x78] sm:$0xff]
        %v4117 = vperm.slane %v3119, 3
        %4118 = vmatpush.msra.mxu0 %v4116
        %4119 = vmatpush.msra.mxu0 %v4115
        %4120 = vmatpush.msra.mxu0 %v4114
        %4121 = vmatpush.msra.mxu0 %v4113
        %4122 = vmatpush.msra.mxu0 %v4112
        %4123 = vmatpush.msra.mxu0 %v4111
        %4124 = vmatpush.msra.mxu0 %v4110
        %4125 = vmatpush.msra.mxu0 %v4109
        %4126 = vmatpush.msra.mxu0 %v4108
        %4127 = vmatpush.msra.mxu0 %v4107
        %4128 = vmatpush.msra.mxu0 %v4106
        %4129 = vmatpush.msra.mxu0 %v4105
        %4130 = vmatpush.msra.mxu0 %v4104
        %4131 = vmatpush.msra.mxu0 %v4103
        %4132 = vmatpush.msra.mxu0 %v4102
        %4133 = vmatpush.msra.mxu0 %v4101
        %4134 = vmatmul.f32.gmra.mxu0 %v4100
        %v4135 = vpop.f32.mrf.mxu0
        %v4136 = vadd.f32 %v4117, %v4135
        %4137 = vdwg.mxu0
        %v4138 = vadd.f32 %v3068, %v4136
        %4139 = vadd.xlane.f32.xlu0 %v4138
        %v4140 = vpop.xlane.xlu0 %4139
        %v4141 = vmul.f32 %v4140, 0.03125
        %v4142 = vsub.f32 %v4138, %v4141
        %v4143 = vmul.f32 %v4142, %v810
        %v4144 = vmul.f32 %v4143, %v4143
        %4145 = vadd.xlane.f32.xlu0 %v4144
        %v4146 = vpop.xlane.xlu0 %4145
        %v4147 = vmul.f32 %v4146, 0.03125
        %v4148 = vadd.f32 %v4147, 1e-05
        %v4149 = vrsqrt.pop %v4148
        %v4150 = vmul.f32 %v4149, %v4148
        %v4151 = vmul.f32 %v4150, %v4149
        %v4152 = vmul.f32 0.5, %v4151
        %v4153 = vsub.f32 1.5, %v4152
        %v4154 = vmul.f32 %v4149, %v4153
        %vm4155 = vweird.f32 %v4148
        %vm4156 = vweird.f32 %v4149
        %vm4157 = vmor %vm4155, %vm4156
        %v4158 = vsel %vm4157, %v4149, %v4154
        %v4159 = vmul.f32 %v4143, %v4158
        %v4160 = vperm.slane %v805, 4
        %v4161 = vmul.f32 %v4159, %v4160
        %v4162 = vperm.slane %v805, 5
        %v4163 = vadd.f32 %v4161, %v4162
        %v4164 = vld [vmem:[%s14] sm:$0x1]
        %v4165 = vld [vmem:[#allocation22] sm:$0xff]
        %v4166 = vld [vmem:[#allocation22 + $0x8] sm:$0xff]
        %v4167 = vld [vmem:[#allocation22 + $0x10] sm:$0xff]
        %v4168 = vld [vmem:[#allocation22 + $0x18] sm:$0xff]
        %v4169 = vld [vmem:[#allocation22 + $0x20] sm:$0xff]
        %v4170 = vld [vmem:[#allocation22 + $0x28] sm:$0xff]
        %v4171 = vld [vmem:[#allocation22 + $0x30] sm:$0xff]
        %v4172 = vld [vmem:[#allocation22 + $0x38] sm:$0xff]
        %v4173 = vld [vmem:[#allocation22 + $0x40] sm:$0xff]
        %v4174 = vld [vmem:[#allocation22 + $0x48] sm:$0xff]
        %v4175 = vld [vmem:[#allocation22 + $0x50] sm:$0xff]
        %v4176 = vld [vmem:[#allocation22 + $0x58] sm:$0xff]
        %v4177 = vld [vmem:[#allocation22 + $0x60] sm:$0xff]
        %v4178 = vld [vmem:[#allocation22 + $0x68] sm:$0xff]
        %v4179 = vld [vmem:[#allocation22 + $0x70] sm:$0xff]
        %v4180 = vld [vmem:[#allocation22 + $0x78] sm:$0xff]
        %v4182 = vperm.slane %v4164, 0
        %4184 = vmatpush.msra.mxu0 %v4180
        %4185 = vmatpush.msra.mxu0 %v4179
        %4186 = vmatpush.msra.mxu0 %v4178
        %4187 = vmatpush.msra.mxu0 %v4177
        %4188 = vmatpush.msra.mxu0 %v4176
        %4189 = vmatpush.msra.mxu0 %v4175
        %4190 = vmatpush.msra.mxu0 %v4174
        %4191 = vmatpush.msra.mxu0 %v4173
        %4192 = vmatpush.msra.mxu0 %v4172
        %4193 = vmatpush.msra.mxu0 %v4171
        %4194 = vmatpush.msra.mxu0 %v4170
        %4195 = vmatpush.msra.mxu0 %v4169
        %4196 = vmatpush.msra.mxu0 %v4168
        %4197 = vmatpush.msra.mxu0 %v4167
        %4198 = vmatpush.msra.mxu0 %v4166
        %4199 = vmatpush.msra.mxu0 %v4165
        %4200 = vmatmul.f32.gmra.mxu0 %v4163
        %v4201 = vpop.f32.mrf.mxu0
        %v4202 = vadd.f32 %v4182, %v4201
        %4203 = vdwg.mxu0
        %v4204 = vmax.f32 %v4202, 0.0
        %v4205 = vld [vmem:[%s16] sm:$0x1]
        %v4206 = vld [vmem:[#allocation23] sm:$0xff]
        %v4207 = vld [vmem:[#allocation23 + $0x8] sm:$0xff]
        %v4208 = vld [vmem:[#allocation23 + $0x10] sm:$0xff]
        %v4209 = vld [vmem:[#allocation23 + $0x18] sm:$0xff]
        %v4210 = vld [vmem:[#allocation23 + $0x20] sm:$0xff]
        %v4211 = vld [vmem:[#allocation23 + $0x28] sm:$0xff]
        %v4212 = vld [vmem:[#allocation23 + $0x30] sm:$0xff]
        %v4213 = vld [vmem:[#allocation23 + $0x38] sm:$0xff]
        %v4214 = vld [vmem:[#allocation23 + $0x40] sm:$0xff]
        %v4215 = vld [vmem:[#allocation23 + $0x48] sm:$0xff]
        %v4216 = vld [vmem:[#allocation23 + $0x50] sm:$0xff]
        %v4217 = vld [vmem:[#allocation23 + $0x58] sm:$0xff]
        %v4218 = vld [vmem:[#allocation23 + $0x60] sm:$0xff]
        %v4219 = vld [vmem:[#allocation23 + $0x68] sm:$0xff]
        %v4220 = vld [vmem:[#allocation23 + $0x70] sm:$0xff]
        %v4221 = vld [vmem:[#allocation23 + $0x78] sm:$0xff]
        %v4223 = vperm.slane %v4205, 0
        %4225 = vmatpush.msra.mxu0 %v4221
        %4226 = vmatpush.msra.mxu0 %v4220
        %4227 = vmatpush.msra.mxu0 %v4219
        %4228 = vmatpush.msra.mxu0 %v4218
        %4229 = vmatpush.msra.mxu0 %v4217
        %4230 = vmatpush.msra.mxu0 %v4216
        %4231 = vmatpush.msra.mxu0 %v4215
        %4232 = vmatpush.msra.mxu0 %v4214
        %4233 = vmatpush.msra.mxu0 %v4213
        %4234 = vmatpush.msra.mxu0 %v4212
        %4235 = vmatpush.msra.mxu0 %v4211
        %4236 = vmatpush.msra.mxu0 %v4210
        %4237 = vmatpush.msra.mxu0 %v4209
        %4238 = vmatpush.msra.mxu0 %v4208
        %4239 = vmatpush.msra.mxu0 %v4207
        %4240 = vmatpush.msra.mxu0 %v4206
        %4241 = vmatmul.f32.gmra.mxu0 %v4204
        %v4242 = vpop.f32.mrf.mxu0
        %v4243 = vadd.f32 %v4223, %v4242
        %4244 = vdwg.mxu0
        %v4245 = vadd.f32 %v4163, %v4243
        %4246 = vadd.xlane.f32.xlu0 %v4245
        %v4247 = vpop.xlane.xlu0 %4246
        %v4248 = vmul.f32 %v4247, 0.03125
        %v4249 = vsub.f32 %v4245, %v4248
        %v4250 = vmul.f32 %v4249, %v810
        %v4251 = vmul.f32 %v4250, %v4250
        %4252 = vadd.xlane.f32.xlu0 %v4251
        %v4253 = vpop.xlane.xlu0 %4252
        %v4254 = vmul.f32 %v4253, 0.03125
        %v4255 = vadd.f32 %v4254, 1e-05
        %v4256 = vrsqrt.pop %v4255
        %v4257 = vmul.f32 %v4256, %v4255
        %v4258 = vmul.f32 %v4257, %v4256
        %v4259 = vmul.f32 0.5, %v4258
        %v4260 = vsub.f32 1.5, %v4259
        %v4261 = vmul.f32 %v4256, %v4260
        %vm4262 = vweird.f32 %v4255
        %vm4263 = vweird.f32 %v4256
        %vm4264 = vmor %vm4262, %vm4263
        %v4265 = vsel %vm4264, %v4256, %v4261
        %v4266 = vmul.f32 %v4250, %v4265
        %v4267 = vperm.slane %v805, 6
        %v4268 = vmul.f32 %v4266, %v4267
        %v4269 = vperm.slane %v805, 7
        %v4270 = vadd.f32 %v4268, %v4269
        %4271 = vst [vmem:[%s801] sm:$0xff] %v4270
        %s4272 = sand.u32 %s418, 1
        %s4273 = scalar_lea.sflag [#allocation4], %s4272
        %s4274 = sand.u32 %s418, 1
        %s4275 = smul.addr %s4274, 8
        %s4276 = scalar_lea.vmem [#allocation25], %s4275
        // Predicated region
        $region145: #{tpu_custom_call.1} parent=87 // pred_check
          %p4277 = pneg %p428
        $region146: #{tpu_custom_call.1} parent=87 // pred_check_branch
          %4279 = sbr.rel (%p4277) target = $region148
        $region147: #{tpu_custom_call.1} parent=87 // pred_region
          %4281 = vsyncadd %s4273, 0
          %s4282 = smul.addr %s43, 8
          %s4283 = scalar_lea.hbm %s17, %s4282
          %s4285 = sshll.u32 %s4276, 4
          %s4286 = int_to_ptr.vmem [resolvable:$true] %s4285
          %s4287 = sshll.u32 %s4283, 4
          %s4288 = int_to_ptr.hbm [resolvable:$true] %s4287
          %4290 = dma.vmem_to_hbm [thread:$0]  %s4286, 128, %s4288, %s4273
        $region148: #{tpu_custom_call.1} parent=87 // pred_fallthru
          _
      $region88: #{tpu_custom_call.1} parent=5 // pred_fallthru
        _
      %p4291 = scmp.le.s32.totalorder 2, %s38
      // Predicated region
      $region149: #{tpu_custom_call.1} parent=5 // pred_check
        %p4292 = pneg %p4291
      $region150: #{tpu_custom_call.1} parent=5 // pred_check_branch
        %4294 = sbr.rel (%p4292) target = $region152
      $region151: #{tpu_custom_call.1} parent=5 // pred_region
        %s4295 = ssub.s32 %s38, 2
        // Predicated region
        $region153: #{tpu_custom_call.1} parent=151 // pred_check
          %p4296 = pneg %p434
        $region154: #{tpu_custom_call.1} parent=151 // pred_check_branch
          %4298 = sbr.rel (%p4296) target = $region156
        $region155: #{tpu_custom_call.1} parent=151 // pred_region
          %s4299 = sand.u32 %s419, 1
          %s4300 = scalar_lea.sflag [#allocation4], %s4299
          %s4301 = sand.u32 %s419, 1
          %s4302 = smul.addr %s4301, 8
          %s4303 = scalar_lea.vmem [#allocation25], %s4302
          %4305 = dma.done %s4300, 128
        $region156: #{tpu_custom_call.1} parent=151 // pred_fallthru
          _
      $region152: #{tpu_custom_call.1} parent=5 // pred_fallthru
        _
    $region6: #{tpu_custom_call.1} parent=1 // loop_footer
      %s42 = sadd.s32 1, %s38
    $region7: #{tpu_custom_call.1} parent=1 // loop_footer_branch
      %37 = sbr.rel target = $region3
    $region8: #{tpu_custom_call.1} parent=1 // loop_exit
      _
    %4306 = vsyncpa [#allocation3], 1
    %s4307 = scalar_lea.sflag [#allocation3], 1
    %4308 = vsyncpa %s4307, 1
    %4309 = vsyncpa [#allocation6], 1
    %s4310 = scalar_lea.sflag [#allocation6], 1
    %4311 = vsyncpa %s4310, 1
    %4312 = vsyncpa [#allocation9], 1
    %4313 = vsyncpa [#allocation12], 1
    %4314 = vsyncpa [#allocation15], 1
    %4315 = vsyncpa [#allocation18], 1
    %4316 = vsyncpa [#allocation21], 1
    %4317 = vsyncpa [#allocation24], 1
    %4318 = vsyncpa [#allocation4], 1
    %s4319 = scalar_lea.sflag [#allocation4], 1
    %4320 = vsyncpa %s4319, 1

</llo_original>
